<compile_context>
chip_gen: v7x
topology: tpu7x:2x2x1
jax: 0.10.0
libtpu: 0.0.40
codegen_flags: <defaults>
</compile_context>

<pallas_src>
import collections
import functools

import jax
import jax.numpy as jnp
import numpy as np
from jax.experimental import pallas as pl
from jax.experimental.pallas import tpu as pltpu


ModelMeta = collections.namedtuple(
    "ModelMeta", ["hidden", "num_classes", "fold_rows", "conv_meta", "head_meta"])


# --------------------------------------------------------------------------
# small helpers
# --------------------------------------------------------------------------

def _rows_up(x, d):
    """result[r, :] == x[r + d, :].  Wrapped rows only ever land in the last
    two rows of each frame's padded block, which the R selection matrices
    below never read (see prepare_params)."""
    if d == 0:
        return x
    return pltpu.roll(x, x.shape[0] - d, axis=0)


def _lanes_up(x, d):
    """result[:, j] == x[:, j + d]; same wrap caveat as _rows_up."""
    if d == 0:
        return x
    return pltpu.roll(x, x.shape[1] - d, axis=1)


def _full_spec(a):
    zeros = (0,) * a.ndim
    return pl.BlockSpec(a.shape, lambda b, _z=zeros: _z)


# --------------------------------------------------------------------------
# the fused Pallas kernel (one grid step == one batch element)
# --------------------------------------------------------------------------

def _fused_kernel(x_ref, audio_ref, m_ref, r_ref, lw_ref, hw_ref, b_ref, hb_ref,
                  out_ref, *, n_steps, hidden, num_classes,
                  conv_meta, fold_rows, head_meta):
    f32, bf16 = jnp.float32, jnp.bfloat16
    n_layers = len(conv_meta)

    def mm(a, b):
        return jnp.dot(a.astype(bf16), b.astype(bf16),
                       preferred_element_type=f32)

    # ---------------- CNN stack (all four layers, VMEM resident) ----------
    x = x_ref[0]                                    # (T*(H+2), (W+2)*C) f32
    for l, (m_off, k, cout, out_lanes, r_rows, r_cols) in enumerate(conv_meta):
        # 3x3 conv fused into ONE banded matmul: lane-concat x shifted by
        # 0 / 1 / 2 image rows (sublane rolls, XLU) against the vstacked
        # per-kernel-row band matrices.
        x_cat = jnp.concatenate([x, _rows_up(x, 1), _rows_up(x, 2)], axis=1)
        y = mm(x_cat, m_ref[pl.ds(m_off, 3 * k), :])
        y = jnp.maximum(y + b_ref[pl.ds(l, 1), pl.ds(0, out_lanes)], 0.0)
        # 2x2 max-pool: pair-max over image rows, then over width blocks.
        y = jnp.maximum(y, _rows_up(y, 1))
        y = jnp.maximum(y, _lanes_up(y, cout))
        # Row compaction + zero re-padding for the next layer (lane compaction
        # is folded into the next layer's band matrix / the LSTM projection);
        # for the last layer this is the AdaptiveAvgPool2d row average.
        r_full = r_ref[l]
        x = mm(r_full[:r_rows, :r_cols], y)
    # x: (T, w4*cout4) last-layer pooled activations (width-average folded
    # into the LSTM input projection below).

    # ---------------- 2-layer LSTM (registers only, fused gates) -----------
    H = hidden
    FR = fold_rows
    w0f = lw_ref[pl.ds(0, FR), :]                  # avgpool(width) o W_ih^0
    whh0 = lw_ref[pl.ds(FR, H), :]
    wih1 = lw_ref[pl.ds(FR + H, H), :]
    whh1 = lw_ref[pl.ds(FR + 2 * H, H), :]
    b0 = b_ref[pl.ds(n_layers, 1), pl.ds(0, 4 * H)]
    b1 = b_ref[pl.ds(n_layers + 1, 1), pl.ds(0, 4 * H)]
    g0 = mm(x, w0f) + b0                            # (T, 4H) layer-0 input proj

    def cell(gates, c):                             # PyTorch gate order i,f,g,o
        i = jax.nn.sigmoid(gates[:, 0 * H:1 * H])
        f = jax.nn.sigmoid(gates[:, 1 * H:2 * H])
        g = jnp.tanh(gates[:, 2 * H:3 * H])
        o = jax.nn.sigmoid(gates[:, 3 * H:4 * H])
        c_new = f * c + i * g
        return o * jnp.tanh(c_new), c_new

    h0 = jnp.zeros((1, H), f32)
    c0 = jnp.zeros((1, H), f32)
    h1 = jnp.zeros((1, H), f32)
    c1 = jnp.zeros((1, H), f32)
    for t in range(n_steps):                        # T small & static -> unrolled
        xg = g0[t:t + 1, :]
        gates0 = xg if t == 0 else xg + mm(h0, whh0)
        h0, c0 = cell(gates0, c0)
        gates1 = mm(h0, wih1) + b1
        if t > 0:
            gates1 = gates1 + mm(h1, whh1)
        h1, c1 = cell(gates1, c1)
    # h1 == lstm_out[:, -1, :] for this batch element

    # ---------------- audio FC + classifier head ---------------------------
    adim, o_w1l, o_w1a, o_w2, fa, ch = head_meta
    a_in = audio_ref[0]                             # (1, adim)
    a = jnp.maximum(mm(a_in, hw_ref[pl.ds(0, adim), :])
                    + hb_ref[pl.ds(0, 1), :], 0.0)
    h = jnp.maximum(mm(h1, hw_ref[pl.ds(o_w1l, H), :])
                    + mm(a[:, :fa], hw_ref[pl.ds(o_w1a, fa), :])
                    + hb_ref[pl.ds(1, 1), :], 0.0)
    logits = mm(h[:, :ch], hw_ref[pl.ds(o_w2, ch), :]) + hb_ref[pl.ds(2, 1), :]
    out_ref[...] = jnp.reshape(logits[:, :num_classes], (1, 1, num_classes))


# --------------------------------------------------------------------------
# wrapper: single pallas_call, batch-parallel grid
# --------------------------------------------------------------------------

def lie_detection_forward(frames, audio, params, *, meta):
    """frames: (B, T, 3, H, W) float32 (PyTorch layout), audio: (B, 20)."""
    B, T, C, H, W = frames.shape
    assert H % 16 == 0 and W % 16 == 0, "H and W must be multiples of 16"
    nc = meta.num_classes
    adim = audio.shape[-1]

    # frames -> zero-padded, row-flattened, batch-major conv input:
    # x[b, t*(H+2) + 1 + h, (1 + w)*C + c] = frames[b, t, c, h, w]
    # TODO(synk): fold this transpose/pad into the kernel (DMA raw frames into
    # a pre-zeroed VMEM scratch) to drop the extra XLA op in front of it.
    x = jnp.transpose(frames, (0, 1, 3, 4, 2))
    x = jnp.pad(x, ((0, 0), (0, 0), (1, 1), (1, 1), (0, 0)))
    x = x.reshape(B, T * (H + 2), (W + 2) * C)
    audio3 = audio.reshape(B, 1, adim)

    kernel = functools.partial(
        _fused_kernel, n_steps=T, hidden=meta.hidden, num_classes=nc,
        conv_meta=meta.conv_meta, fold_rows=meta.fold_rows,
        head_meta=meta.head_meta)

    weights = (params["m_all"], params["r_all"], params["lstm_w"],
               params["head_w"], params["bias"], params["head_b"])

    out = pl.pallas_call(
        kernel,
        out_shape=jax.ShapeDtypeStruct((B, 1, nc), jnp.float32),
        grid=(B,),
        in_specs=[pl.BlockSpec((1, T * (H + 2), (W + 2) * C),
                               lambda b: (b, 0, 0)),
                  pl.BlockSpec((1, 1, adim), lambda b: (b, 0, 0))]
                 + [_full_spec(a) for a in weights],
        out_specs=pl.BlockSpec((1, 1, nc), lambda b: (b, 0, 0)),
        compiler_params=pltpu.CompilerParams(
            dimension_semantics=("parallel",),
            vmem_limit_bytes=64 * 1024 * 1024),
    )(x, audio3, *weights)
    return out.reshape(B, nc)


# --------------------------------------------------------------------------
# parameter preparation (PyTorch layout -> fused-kernel layout, bf16 packed)
# --------------------------------------------------------------------------

def prepare_params(raw, height, width, seq_len):
    """Per conv layer, the three 3x3 kernel rows become banded matrices
    (Wp*Cin, W*Cout) that are vstacked into one fused band matrix; the
    previous layer's pooled-lane compaction is folded in.  R matrices compact
    pooled rows into the next layer's padded row layout (the last one
    averages == AdaptiveAvgPool, whose width average is folded into the LSTM
    layer-0 input projection).  Everything is packed into 6 arrays with
    16-row-aligned segments; matmul weights are stored bf16, biases f32."""
    f32 = np.float32
    T = seq_len
    h, w = height, width
    assert h % 16 == 0 and w % 16 == 0, "H and W must be multiples of 16"

    n_layers = len(raw["conv"])
    prev_csel = None
    cavg = None
    m_blocks, r_list, conv_bias, conv_meta = [], [], [], []
    m_off = 0
    for idx, (w_oihw, b) in enumerate(raw["conv"]):
        w_oihw = np.asarray(w_oihw, f32)
        b = np.asarray(b, f32)
        cout, cin = int(w_oihw.shape[0]), int(w_oihw.shape[1])
        hp, wp = h + 2, w + 2
        w_hwio = np.transpose(w_oihw, (2, 3, 1, 0))           # (3, 3, Cin, Cout)
        bands = []
        for dh in range(3):
            m = np.zeros((wp * cin, w * cout), f32)
            for dw in range(3):
                d = np.zeros((wp, w), f32)
                d[np.arange(w) + dw, np.arange(w)] = 1.0
                m += np.kron(d, w_hwio[dh, dw])
            if prev_csel is not None:                         # fold lane compaction
                m = prev_csel @ m
            bands.append(m)
        mfused = np.concatenate(bands, axis=0)                # (3k, w*cout)
        k = mfused.shape[0] // 3
        pad = (-mfused.shape[0]) % 16                         # bf16 sublane align
        if pad:
            mfused = np.concatenate(
                [mfused, np.zeros((pad, mfused.shape[1]), f32)], axis=0)

        conv_bias.append(np.tile(b, w))                       # (w*cout,)

        h2, w2 = h // 2, w // 2
        if idx < n_layers - 1:
            r1 = np.zeros((h2 + 2, hp), f32)
            r1[1 + np.arange(h2), 2 * np.arange(h2)] = 1.0    # pooled -> padded rows
            csel = np.zeros((w * cout, (w2 + 2) * cout), f32)
            for wpo in range(w2):
                csel[2 * wpo * cout:(2 * wpo + 1) * cout,
                     (1 + wpo) * cout:(2 + wpo) * cout] = np.eye(cout, dtype=f32)
            prev_csel = csel
        else:
            # last layer: AdaptiveAvgPool2d((1,1)) over the h2 x w2 pooled map.
            r1 = np.zeros((1, hp), f32)
            r1[0, 2 * np.arange(h2)] = 1.0 / h2
            cavg = np.zeros((w * cout, cout), f32)
            for wpo in range(w2):
                cavg[2 * wpo * cout:(2 * wpo + 1) * cout, :] += (
                    np.eye(cout, dtype=f32) / w2)
        R = np.kron(np.eye(T, dtype=f32), r1)
        r_list.append(R)
        m_blocks.append(mfused)
        conv_meta.append((int(m_off), int(k), int(cout), int(w * cout),
                          int(R.shape[0]), int(R.shape[1])))
        m_off += mfused.shape[0]
        h, w = h2, w2

    m_all = np.concatenate(m_blocks, axis=0)

    r_rows = max(r.shape[0] for r in r_list)
    r_cols = max(r.shape[1] for r in r_list)
    r_all = np.zeros((n_layers, r_rows, r_cols), f32)
    for l, r in enumerate(r_list):
        r_all[l, :r.shape[0], :r.shape[1]] = r

    # -------- LSTM: fused (in, 4H) gates, b_ih + b_hh pre-summed; the width
    # average of AdaptiveAvgPool is composed into the layer-0 input weights.
    (wih0, whh0, bih0, bhh0), (wih1, whh1, bih1, bhh1) = [
        tuple(np.asarray(a, f32) for a in layer) for layer in raw["lstm"]]
    hidden = int(whh0.shape[1])
    w0fold = cavg @ wih0.T                                    # (w4*cout4, 4H)
    fold_rows = int(w0fold.shape[0])
    lstm_w = np.concatenate([w0fold, whh0.T, wih1.T, whh1.T], axis=0)

    # -------- packed biases (f32): conv rows 0..L-1, LSTM rows L, L+1 -------
    lane_b = max(max(cb.shape[0] for cb in conv_bias), 4 * hidden)
    bias_all = np.zeros((n_layers + 2, lane_b), f32)
    for l, cb in enumerate(conv_bias):
        bias_all[l, :cb.shape[0]] = cb
    bias_all[n_layers, :4 * hidden] = bih0 + bhh0
    bias_all[n_layers + 1, :4 * hidden] = bih1 + bhh1

    # -------- head: audio FC + classifier, packed with aligned offsets ------
    wa, ba = [np.asarray(a, f32) for a in raw["audio_fc"]]
    w1, b1 = [np.asarray(a, f32) for a in raw["cls1"]]
    w2, b2 = [np.asarray(a, f32) for a in raw["cls2"]]
    fa, ch, nc = int(wa.shape[0]), int(w1.shape[0]), int(w2.shape[0])
    adim = int(wa.shape[1])
    head_lanes = max(fa, ch, nc)
    adim_pad = adim + ((-adim) % 16)

    def _padm(mat, rows, lanes):
        out = np.zeros((rows, lanes), f32)
        out[:mat.shape[0], :mat.shape[1]] = mat
        return out

    seg_wa = _padm(wa.T, adim_pad, head_lanes)                # audio -> FA
    seg_w1l = _padm(w1[:, :hidden].T, hidden, head_lanes)     # lstm  -> CH
    seg_w1a = _padm(w1[:, hidden:].T, fa, head_lanes)         # FA    -> CH
    seg_w2 = _padm(w2.T, ch, head_lanes)                      # CH    -> nc
    o_w1l = adim_pad
    o_w1a = o_w1l + hidden
    o_w2 = o_w1a + fa
    head_w = np.concatenate([seg_wa, seg_w1l, seg_w1a, seg_w2], axis=0)

    head_b = np.zeros((3, head_lanes), f32)
    head_b[0, :fa] = ba
    head_b[1, :ch] = b1
    head_b[2, :nc] = b2

    bf16 = jnp.bfloat16
    params = {
        "m_all": jnp.asarray(m_all, bf16),
        "r_all": jnp.asarray(r_all, bf16),
        "lstm_w": jnp.asarray(lstm_w, bf16),
        "head_w": jnp.asarray(head_w, bf16),
        "bias": jnp.asarray(bias_all, jnp.float32),
        "head_b": jnp.asarray(head_b, jnp.float32),
    }
    meta = ModelMeta(hidden=hidden, num_classes=nc, fold_rows=fold_rows,
                     conv_meta=tuple(conv_meta),
                     head_meta=(adim, int(o_w1l), int(o_w1a), int(o_w2), fa, ch))
    return params, meta


# --------------------------------------------------------------------------
# deterministic synthetic parameters (PyTorch layouts) + pure-JAX reference
# --------------------------------------------------------------------------

def init_raw_params(key, num_classes=2):
    ks = iter(jax.random.split(key, 40))

    def rnd(shape, scale=0.1):
        return scale * jax.random.normal(next(ks), shape, dtype=jnp.float32)

    conv = [(rnd((cout, cin, 3, 3)), rnd((cout,)))
            for cin, cout in zip([3, 16, 32, 64], [16, 32, 64, 128])]
    Hh = 64
    lstm = [(rnd((4 * Hh, din)), rnd((4 * Hh, Hh)), rnd((4 * Hh,)), rnd((4 * Hh,)))
            for din in (128, Hh)]
    return {
        "conv": conv,
        "lstm": lstm,
        "audio_fc": (rnd((32, 20)), rnd((32,))),
        "cls1": (rnd((32, Hh + 32)), rnd((32,))),
        "cls2": (rnd((num_classes, 32)), rnd((num_classes,))),
    }


def reference_forward(frames, audio, raw):
    B, T, C, H, W = frames.shape
    x = frames.reshape(B * T, C, H, W).transpose(0, 2, 3, 1)        # NHWC
    for (w_oihw, b) in raw["conv"]:
        w_hwio = jnp.transpose(w_oihw, (2, 3, 1, 0))
        x = jax.lax.conv_general_dilated(
            x, w_hwio, window_strides=(1, 1), padding="SAME",
            dimension_numbers=("NHWC", "HWIO", "NHWC"))
        x = jnp.maximum(x + b, 0.0)
        n_, hc, wc, cc = x.shape
        x = x.reshape(n_, hc // 2, 2, wc // 2, 2, cc).max(axis=(2, 4))
    feat = x.mean(axis=(1, 2)).reshape(B, T, -1)

    def lstm_layer(seq, wih, whh, bih, bhh):
        Hh = whh.shape[1]

        def step(carry, xt):
            h, c = carry
            g = xt @ wih.T + h @ whh.T + bih + bhh
            i, f, gg, o = jnp.split(g, 4, axis=-1)
            i, f, o = jax.nn.sigmoid(i), jax.nn.sigmoid(f), jax.nn.sigmoid(o)
            gg = jnp.tanh(gg)
            c = f * c + i * gg
            h = o * jnp.tanh(c)
            return (h, c), h

        init = (jnp.zeros((seq.shape[0], Hh)), jnp.zeros((seq.shape[0], Hh)))
        _, hs = jax.lax.scan(step, init, jnp.swapaxes(seq, 0, 1))
        return jnp.swapaxes(hs, 0, 1)

    h = feat
    for (wih, whh, bih, bhh) in raw["lstm"]:
        h = lstm_layer(h, wih, whh, bih, bhh)
    lstm_feat = h[:, -1, :]
    wa, ba = raw["audio_fc"]
    a = jnp.maximum(audio @ wa.T + ba, 0.0)
    w1, b1 = raw["cls1"]
    w2, b2 = raw["cls2"]
    comb = jnp.concatenate([lstm_feat, a], axis=1)
    hcls = jnp.maximum(comb @ w1.T + b1, 0.0)
    return hcls @ w2.T + b2


# --------------------------------------------------------------------------

if __name__ == "__main__":
    key = jax.random.PRNGKey(0)
    kf, ka, kp = jax.random.split(key, 3)

    B, T, C, Hs, Ws = 2, 4, 3, 16, 16
    frames = jax.random.normal(kf, (B, T, C, Hs, Ws), dtype=jnp.float32)
    audio = jax.random.normal(ka, (B, 20), dtype=jnp.float32)
    raw = init_raw_params(kp, num_classes=2)
    params, meta = prepare_params(raw, Hs, Ws, T)

    fwd = jax.jit(functools.partial(lie_detection_forward, meta=meta))
    out = jax.block_until_ready(fwd(frames, audio, params))
    assert out.shape == (B, 2) and out.dtype == jnp.float32

    # Loose tolerance: the kernel runs bf16-operand MXU matmuls (explicitly)
    # while the reference runs default-precision (bf16-pass) f32 matmuls with
    # a different (mathematically identical) contraction grouping.
    ref = jax.block_until_ready(jax.jit(reference_forward)(frames, audio, raw))
    np.testing.assert_allclose(np.asarray(out), np.asarray(ref),
                               rtol=0.1, atol=3e-2)

    print("KERNEL_OK")
</pallas_src>

<mosaic_0001>
module attributes {stable_mosaic.version = 11 : i64} {
  func.func @_fused_kernel(%arg0: i32, %arg1: memref<1x72x54xf32, #tpu.memory_space<vmem>>, %arg2: memref<1x1x20xf32, #tpu.memory_space<vmem>>, %arg3: memref<2480x256xbf16, #tpu.memory_space<vmem>>, %arg4: memref<4x40x72xbf16, #tpu.memory_space<vmem>>, %arg5: memref<448x256xbf16, #tpu.memory_space<vmem>>, %arg6: memref<160x32xbf16, #tpu.memory_space<vmem>>, %arg7: memref<6x256xf32, #tpu.memory_space<vmem>>, %arg8: memref<3x32xf32, #tpu.memory_space<vmem>>, %arg9: memref<1x1x2xf32, #tpu.memory_space<vmem>>) attributes {dimension_semantics = [#tpu.dimension_semantics<parallel>], iteration_bounds = array<i64: 2>, scalar_prefetch = 0 : i64, scratch_operands = 0 : i64, tpu.core_type = #tpu.core_type<tc>, window_params = [{transform_indices = @transform_0, window_bounds = array<i64: 1, 72, 54>}, {transform_indices = @transform_1, window_bounds = array<i64: 1, 1, 20>}, {pipeline_mode = #tpu.pipeline_mode<synchronous>, transform_indices = @transform_2, window_bounds = array<i64: 2480, 256>}, {pipeline_mode = #tpu.pipeline_mode<synchronous>, transform_indices = @transform_3, window_bounds = array<i64: 4, 40, 72>}, {pipeline_mode = #tpu.pipeline_mode<synchronous>, transform_indices = @transform_4, window_bounds = array<i64: 448, 256>}, {pipeline_mode = #tpu.pipeline_mode<synchronous>, transform_indices = @transform_5, window_bounds = array<i64: 160, 32>}, {pipeline_mode = #tpu.pipeline_mode<synchronous>, transform_indices = @transform_6, window_bounds = array<i64: 6, 256>}, {pipeline_mode = #tpu.pipeline_mode<synchronous>, transform_indices = @transform_7, window_bounds = array<i64: 3, 32>}, {transform_indices = @transform_8, window_bounds = array<i64: 1, 1, 2>}]} {
    %c0 = arith.constant 0 : index
    %c0_0 = arith.constant 0 : index
    %c0_1 = arith.constant 0 : index
    %0 = vector.load %arg1[%c0, %c0_0, %c0_1] : memref<1x72x54xf32, #tpu.memory_space<vmem>>, vector<1x72x54xf32>
    %1 = vector.shape_cast %0 : vector<1x72x54xf32> to vector<72x54xf32>
    %c71_i32 = arith.constant 71 : i32
    %2 = tpu.dynamic_rotate %1 by %c71_i32 dim 0 : vector<72x54xf32>, i32 -> vector<72x54xf32>
    %c70_i32 = arith.constant 70 : i32
    %3 = tpu.dynamic_rotate %1 by %c70_i32 dim 0 : vector<72x54xf32>, i32 -> vector<72x54xf32>
    %4 = tpu.concatenate %1, %2, %3 in 1 : vector<72x54xf32>, vector<72x54xf32>, vector<72x54xf32> -> vector<72x162xf32>
    %c0_2 = arith.constant 0 : index
    %c0_3 = arith.constant 0 : index
    %5 = vector.load %arg3[%c0_2, %c0_3] : memref<2480x256xbf16, #tpu.memory_space<vmem>>, vector<162x256xbf16>
    %6 = arith.truncf %4 : vector<72x162xf32> to vector<72x162xbf16>
    %cst = arith.constant dense<0.000000e+00> : vector<72x256xf32>
    %7 = tpu.matmul %6, %5, %cst {dimension_numbers = #tpu.dot_dimension_numbers<[1], [0], [0], [1], [0, 0, 1, 1], [], []>} : vector<72x162xbf16>, vector<162x256xbf16>, vector<72x256xf32> -> vector<72x256xf32>
    %c0_4 = arith.constant 0 : index
    %c0_5 = arith.constant 0 : index
    %8 = vector.load %arg7[%c0_4, %c0_5] : memref<6x256xf32, #tpu.memory_space<vmem>>, vector<1x256xf32>
    %9 = vector.broadcast %8 : vector<1x256xf32> to vector<72x256xf32>
    %10 = arith.addf %7, %9 : vector<72x256xf32>
    %cst_6 = arith.constant 0.000000e+00 : f32
    %11 = vector.broadcast %cst_6 : f32 to vector<72x256xf32>
    %12 = arith.maximumf %10, %11 : vector<72x256xf32>
    %c71_i32_7 = arith.constant 71 : i32
    %13 = tpu.dynamic_rotate %12 by %c71_i32_7 dim 0 : vector<72x256xf32>, i32 -> vector<72x256xf32>
    %14 = arith.maximumf %12, %13 : vector<72x256xf32>
    %c240_i32 = arith.constant 240 : i32
    %15 = tpu.dynamic_rotate %14 by %c240_i32 dim 1 : vector<72x256xf32>, i32 -> vector<72x256xf32>
    %16 = arith.maximumf %14, %15 : vector<72x256xf32>
    %c0_8 = arith.constant 0 : index
    %c0_9 = arith.constant 0 : index
    %c0_10 = arith.constant 0 : index
    %17 = vector.load %arg4[%c0_8, %c0_9, %c0_10] : memref<4x40x72xbf16, #tpu.memory_space<vmem>>, vector<1x40x72xbf16>
    %18 = vector.shape_cast %17 : vector<1x40x72xbf16> to vector<40x72xbf16>
    %19 = arith.truncf %16 : vector<72x256xf32> to vector<72x256xbf16>
    %cst_11 = arith.constant dense<0.000000e+00> : vector<40x256xf32>
    %20 = tpu.matmul %18, %19, %cst_11 {dimension_numbers = #tpu.dot_dimension_numbers<[1], [0], [0], [1], [0, 0, 1, 1], [], []>} : vector<40x72xbf16>, vector<72x256xbf16>, vector<40x256xf32> -> vector<40x256xf32>
    %c39_i32 = arith.constant 39 : i32
    %21 = tpu.dynamic_rotate %20 by %c39_i32 dim 0 : vector<40x256xf32>, i32 -> vector<40x256xf32>
    %c38_i32 = arith.constant 38 : i32
    %22 = tpu.dynamic_rotate %20 by %c38_i32 dim 0 : vector<40x256xf32>, i32 -> vector<40x256xf32>
    %23 = tpu.concatenate %20, %21, %22 in 1 : vector<40x256xf32>, vector<40x256xf32>, vector<40x256xf32> -> vector<40x768xf32>
    %c176 = arith.constant 176 : index
    %c0_12 = arith.constant 0 : index
    %24 = vector.load %arg3[%c176, %c0_12] : memref<2480x256xbf16, #tpu.memory_space<vmem>>, vector<768x256xbf16>
    %25 = arith.truncf %23 : vector<40x768xf32> to vector<40x768xbf16>
    %cst_13 = arith.constant dense<0.000000e+00> : vector<40x256xf32>
    %26 = tpu.matmul %25, %24, %cst_13 {dimension_numbers = #tpu.dot_dimension_numbers<[1], [0], [0], [1], [0, 0, 1, 1], [], []>} : vector<40x768xbf16>, vector<768x256xbf16>, vector<40x256xf32> -> vector<40x256xf32>
    %c1 = arith.constant 1 : index
    %c0_14 = arith.constant 0 : index
    %27 = vector.load %arg7[%c1, %c0_14] : memref<6x256xf32, #tpu.memory_space<vmem>>, vector<1x256xf32>
    %28 = vector.broadcast %27 : vector<1x256xf32> to vector<40x256xf32>
    %29 = arith.addf %26, %28 : vector<40x256xf32>
    %cst_15 = arith.constant 0.000000e+00 : f32
    %30 = vector.broadcast %cst_15 : f32 to vector<40x256xf32>
    %31 = arith.maximumf %29, %30 : vector<40x256xf32>
    %c39_i32_16 = arith.constant 39 : i32
    %32 = tpu.dynamic_rotate %31 by %c39_i32_16 dim 0 : vector<40x256xf32>, i32 -> vector<40x256xf32>
    %33 = arith.maximumf %31, %32 : vector<40x256xf32>
    %c224_i32 = arith.constant 224 : i32
    %34 = tpu.dynamic_rotate %33 by %c224_i32 dim 1 : vector<40x256xf32>, i32 -> vector<40x256xf32>
    %35 = arith.maximumf %33, %34 : vector<40x256xf32>
    %c1_17 = arith.constant 1 : index
    %c0_18 = arith.constant 0 : index
    %c0_19 = arith.constant 0 : index
    %36 = vector.load %arg4[%c1_17, %c0_18, %c0_19] : memref<4x40x72xbf16, #tpu.memory_space<vmem>>, vector<1x40x72xbf16>
    %37 = vector.shape_cast %36 : vector<1x40x72xbf16> to vector<40x72xbf16>
    %38 = vector.extract_strided_slice %37 {offsets = [0, 0], sizes = [24, 40], strides = [1, 1]} : vector<40x72xbf16> to vector<24x40xbf16>
    %39 = arith.truncf %35 : vector<40x256xf32> to vector<40x256xbf16>
    %cst_20 = arith.constant dense<0.000000e+00> : vector<24x256xf32>
    %40 = tpu.matmul %38, %39, %cst_20 {dimension_numbers = #tpu.dot_dimension_numbers<[1], [0], [0], [1], [0, 0, 1, 1], [], []>} : vector<24x40xbf16>, vector<40x256xbf16>, vector<24x256xf32> -> vector<24x256xf32>
    %c23_i32 = arith.constant 23 : i32
    %41 = tpu.dynamic_rotate %40 by %c23_i32 dim 0 : vector<24x256xf32>, i32 -> vector<24x256xf32>
    %c22_i32 = arith.constant 22 : i32
    %42 = tpu.dynamic_rotate %40 by %c22_i32 dim 0 : vector<24x256xf32>, i32 -> vector<24x256xf32>
    %43 = tpu.concatenate %40, %41, %42 in 1 : vector<24x256xf32>, vector<24x256xf32>, vector<24x256xf32> -> vector<24x768xf32>
    %c944 = arith.constant 944 : index
    %c0_21 = arith.constant 0 : index
    %44 = vector.load %arg3[%c944, %c0_21] : memref<2480x256xbf16, #tpu.memory_space<vmem>>, vector<768x256xbf16>
    %45 = arith.truncf %43 : vector<24x768xf32> to vector<24x768xbf16>
    %cst_22 = arith.constant dense<0.000000e+00> : vector<24x256xf32>
    %46 = tpu.matmul %45, %44, %cst_22 {dimension_numbers = #tpu.dot_dimension_numbers<[1], [0], [0], [1], [0, 0, 1, 1], [], []>} : vector<24x768xbf16>, vector<768x256xbf16>, vector<24x256xf32> -> vector<24x256xf32>
    %c2 = arith.constant 2 : index
    %c0_23 = arith.constant 0 : index
    %47 = vector.load %arg7[%c2, %c0_23] : memref<6x256xf32, #tpu.memory_space<vmem>>, vector<1x256xf32>
    %48 = vector.broadcast %47 : vector<1x256xf32> to vector<24x256xf32>
    %49 = arith.addf %46, %48 : vector<24x256xf32>
    %cst_24 = arith.constant 0.000000e+00 : f32
    %50 = vector.broadcast %cst_24 : f32 to vector<24x256xf32>
    %51 = arith.maximumf %49, %50 : vector<24x256xf32>
    %c23_i32_25 = arith.constant 23 : i32
    %52 = tpu.dynamic_rotate %51 by %c23_i32_25 dim 0 : vector<24x256xf32>, i32 -> vector<24x256xf32>
    %53 = arith.maximumf %51, %52 : vector<24x256xf32>
    %c192_i32 = arith.constant 192 : i32
    %54 = tpu.dynamic_rotate %53 by %c192_i32 dim 1 : vector<24x256xf32>, i32 -> vector<24x256xf32>
    %55 = arith.maximumf %53, %54 : vector<24x256xf32>
    %c2_26 = arith.constant 2 : index
    %c0_27 = arith.constant 0 : index
    %c0_28 = arith.constant 0 : index
    %56 = vector.load %arg4[%c2_26, %c0_27, %c0_28] : memref<4x40x72xbf16, #tpu.memory_space<vmem>>, vector<1x40x72xbf16>
    %57 = vector.shape_cast %56 : vector<1x40x72xbf16> to vector<40x72xbf16>
    %58 = vector.extract_strided_slice %57 {offsets = [0, 0], sizes = [16, 24], strides = [1, 1]} : vector<40x72xbf16> to vector<16x24xbf16>
    %59 = arith.truncf %55 : vector<24x256xf32> to vector<24x256xbf16>
    %cst_29 = arith.constant dense<0.000000e+00> : vector<16x256xf32>
    %60 = tpu.matmul %58, %59, %cst_29 {dimension_numbers = #tpu.dot_dimension_numbers<[1], [0], [0], [1], [0, 0, 1, 1], [], []>} : vector<16x24xbf16>, vector<24x256xbf16>, vector<16x256xf32> -> vector<16x256xf32>
    %c15_i32 = arith.constant 15 : i32
    %61 = tpu.dynamic_rotate %60 by %c15_i32 dim 0 : vector<16x256xf32>, i32 -> vector<16x256xf32>
    %c14_i32 = arith.constant 14 : i32
    %62 = tpu.dynamic_rotate %60 by %c14_i32 dim 0 : vector<16x256xf32>, i32 -> vector<16x256xf32>
    %63 = tpu.concatenate %60, %61, %62 in 1 : vector<16x256xf32>, vector<16x256xf32>, vector<16x256xf32> -> vector<16x768xf32>
    %c1712 = arith.constant 1712 : index
    %c0_30 = arith.constant 0 : index
    %64 = vector.load %arg3[%c1712, %c0_30] : memref<2480x256xbf16, #tpu.memory_space<vmem>>, vector<768x256xbf16>
    %65 = arith.truncf %63 : vector<16x768xf32> to vector<16x768xbf16>
    %cst_31 = arith.constant dense<0.000000e+00> : vector<16x256xf32>
    %66 = tpu.matmul %65, %64, %cst_31 {dimension_numbers = #tpu.dot_dimension_numbers<[1], [0], [0], [1], [0, 0, 1, 1], [], []>} : vector<16x768xbf16>, vector<768x256xbf16>, vector<16x256xf32> -> vector<16x256xf32>
    %c3 = arith.constant 3 : index
    %c0_32 = arith.constant 0 : index
    %67 = vector.load %arg7[%c3, %c0_32] : memref<6x256xf32, #tpu.memory_space<vmem>>, vector<1x256xf32>
    %68 = vector.broadcast %67 : vector<1x256xf32> to vector<16x256xf32>
    %69 = arith.addf %66, %68 : vector<16x256xf32>
    %cst_33 = arith.constant 0.000000e+00 : f32
    %70 = vector.broadcast %cst_33 : f32 to vector<16x256xf32>
    %71 = arith.maximumf %69, %70 : vector<16x256xf32>
    %c15_i32_34 = arith.constant 15 : i32
    %72 = tpu.dynamic_rotate %71 by %c15_i32_34 dim 0 : vector<16x256xf32>, i32 -> vector<16x256xf32>
    %73 = arith.maximumf %71, %72 : vector<16x256xf32>
    %c128_i32 = arith.constant 128 : i32
    %74 = tpu.dynamic_rotate %73 by %c128_i32 dim 1 : vector<16x256xf32>, i32 -> vector<16x256xf32>
    %75 = arith.maximumf %73, %74 : vector<16x256xf32>
    %c3_35 = arith.constant 3 : index
    %c0_36 = arith.constant 0 : index
    %c0_37 = arith.constant 0 : index
    %76 = vector.load %arg4[%c3_35, %c0_36, %c0_37] : memref<4x40x72xbf16, #tpu.memory_space<vmem>>, vector<1x40x72xbf16>
    %77 = vector.shape_cast %76 : vector<1x40x72xbf16> to vector<40x72xbf16>
    %78 = vector.extract_strided_slice %77 {offsets = [0, 0], sizes = [4, 16], strides = [1, 1]} : vector<40x72xbf16> to vector<4x16xbf16>
    %79 = arith.truncf %75 : vector<16x256xf32> to vector<16x256xbf16>
    %cst_38 = arith.constant dense<0.000000e+00> : vector<4x256xf32>
    %80 = tpu.matmul %78, %79, %cst_38 {dimension_numbers = #tpu.dot_dimension_numbers<[1], [0], [0], [1], [0, 0, 1, 1], [], []>} : vector<4x16xbf16>, vector<16x256xbf16>, vector<4x256xf32> -> vector<4x256xf32>
    %c0_39 = arith.constant 0 : index
    %c0_40 = arith.constant 0 : index
    %81 = vector.load %arg5[%c0_39, %c0_40] : memref<448x256xbf16, #tpu.memory_space<vmem>>, vector<256x256xbf16>
    %c256 = arith.constant 256 : index
    %c0_41 = arith.constant 0 : index
    %82 = vector.load %arg5[%c256, %c0_41] : memref<448x256xbf16, #tpu.memory_space<vmem>>, vector<64x256xbf16>
    %c320 = arith.constant 320 : index
    %c0_42 = arith.constant 0 : index
    %83 = vector.load %arg5[%c320, %c0_42] : memref<448x256xbf16, #tpu.memory_space<vmem>>, vector<64x256xbf16>
    %c384 = arith.constant 384 : index
    %c0_43 = arith.constant 0 : index
    %84 = vector.load %arg5[%c384, %c0_43] : memref<448x256xbf16, #tpu.memory_space<vmem>>, vector<64x256xbf16>
    %c4 = arith.constant 4 : index
    %c0_44 = arith.constant 0 : index
    %85 = vector.load %arg7[%c4, %c0_44] : memref<6x256xf32, #tpu.memory_space<vmem>>, vector<1x256xf32>
    %c5 = arith.constant 5 : index
    %c0_45 = arith.constant 0 : index
    %86 = vector.load %arg7[%c5, %c0_45] : memref<6x256xf32, #tpu.memory_space<vmem>>, vector<1x256xf32>
    %87 = arith.truncf %80 : vector<4x256xf32> to vector<4x256xbf16>
    %cst_46 = arith.constant dense<0.000000e+00> : vector<4x256xf32>
    %88 = tpu.matmul %87, %81, %cst_46 {dimension_numbers = #tpu.dot_dimension_numbers<[1], [0], [0], [1], [0, 0, 1, 1], [], []>} : vector<4x256xbf16>, vector<256x256xbf16>, vector<4x256xf32> -> vector<4x256xf32>
    %89 = vector.broadcast %85 : vector<1x256xf32> to vector<4x256xf32>
    %90 = arith.addf %88, %89 : vector<4x256xf32>
    %cst_47 = arith.constant 0.000000e+00 : f32
    %91 = vector.broadcast %cst_47 : f32 to vector<1x64xf32>
    %cst_48 = arith.constant 0.000000e+00 : f32
    %92 = vector.broadcast %cst_48 : f32 to vector<1x64xf32>
    %93 = vector.extract_strided_slice %90 {offsets = [0, 0], sizes = [1, 256], strides = [1, 1]} : vector<4x256xf32> to vector<1x256xf32>
    %94 = vector.extract_strided_slice %93 {offsets = [0, 0], sizes = [1, 64], strides = [1, 1]} : vector<1x256xf32> to vector<1x64xf32>
    %95 = arith.negf %94 : vector<1x64xf32>
    %96 = math.exp %95 : vector<1x64xf32>
    %cst_49 = arith.constant 1.000000e+00 : f32
    %97 = vector.broadcast %cst_49 : f32 to vector<1x64xf32>
    %98 = arith.addf %97, %96 : vector<1x64xf32>
    %99 = arith.divf %97, %98 : vector<1x64xf32>
    %100 = vector.extract_strided_slice %93 {offsets = [0, 64], sizes = [1, 64], strides = [1, 1]} : vector<1x256xf32> to vector<1x64xf32>
    %101 = arith.negf %100 : vector<1x64xf32>
    %102 = math.exp %101 : vector<1x64xf32>
    %cst_50 = arith.constant 1.000000e+00 : f32
    %103 = vector.broadcast %cst_50 : f32 to vector<1x64xf32>
    %104 = arith.addf %103, %102 : vector<1x64xf32>
    %105 = arith.divf %103, %104 : vector<1x64xf32>
    %106 = vector.extract_strided_slice %93 {offsets = [0, 128], sizes = [1, 64], strides = [1, 1]} : vector<1x256xf32> to vector<1x64xf32>
    %107 = math.tanh %106 : vector<1x64xf32>
    %108 = vector.extract_strided_slice %93 {offsets = [0, 192], sizes = [1, 64], strides = [1, 1]} : vector<1x256xf32> to vector<1x64xf32>
    %109 = arith.negf %108 : vector<1x64xf32>
    %110 = math.exp %109 : vector<1x64xf32>
    %cst_51 = arith.constant 1.000000e+00 : f32
    %111 = vector.broadcast %cst_51 : f32 to vector<1x64xf32>
    %112 = arith.addf %111, %110 : vector<1x64xf32>
    %113 = arith.divf %111, %112 : vector<1x64xf32>
    %114 = arith.mulf %105, %91 : vector<1x64xf32>
    %115 = arith.mulf %99, %107 : vector<1x64xf32>
    %116 = arith.addf %114, %115 : vector<1x64xf32>
    %117 = math.tanh %116 : vector<1x64xf32>
    %118 = arith.mulf %113, %117 : vector<1x64xf32>
    %119 = arith.truncf %118 : vector<1x64xf32> to vector<1x64xbf16>
    %cst_52 = arith.constant dense<0.000000e+00> : vector<1x256xf32>
    %120 = tpu.matmul %119, %83, %cst_52 {dimension_numbers = #tpu.dot_dimension_numbers<[1], [0], [0], [1], [0, 0, 1, 1], [], []>} : vector<1x64xbf16>, vector<64x256xbf16>, vector<1x256xf32> -> vector<1x256xf32>
    %121 = arith.addf %120, %86 : vector<1x256xf32>
    %122 = vector.extract_strided_slice %121 {offsets = [0, 0], sizes = [1, 64], strides = [1, 1]} : vector<1x256xf32> to vector<1x64xf32>
    %123 = arith.negf %122 : vector<1x64xf32>
    %124 = math.exp %123 : vector<1x64xf32>
    %cst_53 = arith.constant 1.000000e+00 : f32
    %125 = vector.broadcast %cst_53 : f32 to vector<1x64xf32>
    %126 = arith.addf %125, %124 : vector<1x64xf32>
    %127 = arith.divf %125, %126 : vector<1x64xf32>
    %128 = vector.extract_strided_slice %121 {offsets = [0, 64], sizes = [1, 64], strides = [1, 1]} : vector<1x256xf32> to vector<1x64xf32>
    %129 = arith.negf %128 : vector<1x64xf32>
    %130 = math.exp %129 : vector<1x64xf32>
    %cst_54 = arith.constant 1.000000e+00 : f32
    %131 = vector.broadcast %cst_54 : f32 to vector<1x64xf32>
    %132 = arith.addf %131, %130 : vector<1x64xf32>
    %133 = arith.divf %131, %132 : vector<1x64xf32>
    %134 = vector.extract_strided_slice %121 {offsets = [0, 128], sizes = [1, 64], strides = [1, 1]} : vector<1x256xf32> to vector<1x64xf32>
    %135 = math.tanh %134 : vector<1x64xf32>
    %136 = vector.extract_strided_slice %121 {offsets = [0, 192], sizes = [1, 64], strides = [1, 1]} : vector<1x256xf32> to vector<1x64xf32>
    %137 = arith.negf %136 : vector<1x64xf32>
    %138 = math.exp %137 : vector<1x64xf32>
    %cst_55 = arith.constant 1.000000e+00 : f32
    %139 = vector.broadcast %cst_55 : f32 to vector<1x64xf32>
    %140 = arith.addf %139, %138 : vector<1x64xf32>
    %141 = arith.divf %139, %140 : vector<1x64xf32>
    %142 = arith.mulf %133, %92 : vector<1x64xf32>
    %143 = arith.mulf %127, %135 : vector<1x64xf32>
    %144 = arith.addf %142, %143 : vector<1x64xf32>
    %145 = math.tanh %144 : vector<1x64xf32>
    %146 = arith.mulf %141, %145 : vector<1x64xf32>
    %147 = vector.extract_strided_slice %90 {offsets = [1, 0], sizes = [1, 256], strides = [1, 1]} : vector<4x256xf32> to vector<1x256xf32>
    %148 = arith.truncf %118 : vector<1x64xf32> to vector<1x64xbf16>
    %cst_56 = arith.constant dense<0.000000e+00> : vector<1x256xf32>
    %149 = tpu.matmul %148, %82, %cst_56 {dimension_numbers = #tpu.dot_dimension_numbers<[1], [0], [0], [1], [0, 0, 1, 1], [], []>} : vector<1x64xbf16>, vector<64x256xbf16>, vector<1x256xf32> -> vector<1x256xf32>
    %150 = arith.addf %147, %149 : vector<1x256xf32>
    %151 = vector.extract_strided_slice %150 {offsets = [0, 0], sizes = [1, 64], strides = [1, 1]} : vector<1x256xf32> to vector<1x64xf32>
    %152 = arith.negf %151 : vector<1x64xf32>
    %153 = math.exp %152 : vector<1x64xf32>
    %cst_57 = arith.constant 1.000000e+00 : f32
    %154 = vector.broadcast %cst_57 : f32 to vector<1x64xf32>
    %155 = arith.addf %154, %153 : vector<1x64xf32>
    %156 = arith.divf %154, %155 : vector<1x64xf32>
    %157 = vector.extract_strided_slice %150 {offsets = [0, 64], sizes = [1, 64], strides = [1, 1]} : vector<1x256xf32> to vector<1x64xf32>
    %158 = arith.negf %157 : vector<1x64xf32>
    %159 = math.exp %158 : vector<1x64xf32>
    %cst_58 = arith.constant 1.000000e+00 : f32
    %160 = vector.broadcast %cst_58 : f32 to vector<1x64xf32>
    %161 = arith.addf %160, %159 : vector<1x64xf32>
    %162 = arith.divf %160, %161 : vector<1x64xf32>
    %163 = vector.extract_strided_slice %150 {offsets = [0, 128], sizes = [1, 64], strides = [1, 1]} : vector<1x256xf32> to vector<1x64xf32>
    %164 = math.tanh %163 : vector<1x64xf32>
    %165 = vector.extract_strided_slice %150 {offsets = [0, 192], sizes = [1, 64], strides = [1, 1]} : vector<1x256xf32> to vector<1x64xf32>
    %166 = arith.negf %165 : vector<1x64xf32>
    %167 = math.exp %166 : vector<1x64xf32>
    %cst_59 = arith.constant 1.000000e+00 : f32
    %168 = vector.broadcast %cst_59 : f32 to vector<1x64xf32>
    %169 = arith.addf %168, %167 : vector<1x64xf32>
    %170 = arith.divf %168, %169 : vector<1x64xf32>
    %171 = arith.mulf %162, %116 : vector<1x64xf32>
    %172 = arith.mulf %156, %164 : vector<1x64xf32>
    %173 = arith.addf %171, %172 : vector<1x64xf32>
    %174 = math.tanh %173 : vector<1x64xf32>
    %175 = arith.mulf %170, %174 : vector<1x64xf32>
    %176 = arith.truncf %175 : vector<1x64xf32> to vector<1x64xbf16>
    %cst_60 = arith.constant dense<0.000000e+00> : vector<1x256xf32>
    %177 = tpu.matmul %176, %83, %cst_60 {dimension_numbers = #tpu.dot_dimension_numbers<[1], [0], [0], [1], [0, 0, 1, 1], [], []>} : vector<1x64xbf16>, vector<64x256xbf16>, vector<1x256xf32> -> vector<1x256xf32>
    %178 = arith.addf %177, %86 : vector<1x256xf32>
    %179 = arith.truncf %146 : vector<1x64xf32> to vector<1x64xbf16>
    %cst_61 = arith.constant dense<0.000000e+00> : vector<1x256xf32>
    %180 = tpu.matmul %179, %84, %cst_61 {dimension_numbers = #tpu.dot_dimension_numbers<[1], [0], [0], [1], [0, 0, 1, 1], [], []>} : vector<1x64xbf16>, vector<64x256xbf16>, vector<1x256xf32> -> vector<1x256xf32>
    %181 = arith.addf %178, %180 : vector<1x256xf32>
    %182 = vector.extract_strided_slice %181 {offsets = [0, 0], sizes = [1, 64], strides = [1, 1]} : vector<1x256xf32> to vector<1x64xf32>
    %183 = arith.negf %182 : vector<1x64xf32>
    %184 = math.exp %183 : vector<1x64xf32>
    %cst_62 = arith.constant 1.000000e+00 : f32
    %185 = vector.broadcast %cst_62 : f32 to vector<1x64xf32>
    %186 = arith.addf %185, %184 : vector<1x64xf32>
    %187 = arith.divf %185, %186 : vector<1x64xf32>
    %188 = vector.extract_strided_slice %181 {offsets = [0, 64], sizes = [1, 64], strides = [1, 1]} : vector<1x256xf32> to vector<1x64xf32>
    %189 = arith.negf %188 : vector<1x64xf32>
    %190 = math.exp %189 : vector<1x64xf32>
    %cst_63 = arith.constant 1.000000e+00 : f32
    %191 = vector.broadcast %cst_63 : f32 to vector<1x64xf32>
    %192 = arith.addf %191, %190 : vector<1x64xf32>
    %193 = arith.divf %191, %192 : vector<1x64xf32>
    %194 = vector.extract_strided_slice %181 {offsets = [0, 128], sizes = [1, 64], strides = [1, 1]} : vector<1x256xf32> to vector<1x64xf32>
    %195 = math.tanh %194 : vector<1x64xf32>
    %196 = vector.extract_strided_slice %181 {offsets = [0, 192], sizes = [1, 64], strides = [1, 1]} : vector<1x256xf32> to vector<1x64xf32>
    %197 = arith.negf %196 : vector<1x64xf32>
    %198 = math.exp %197 : vector<1x64xf32>
    %cst_64 = arith.constant 1.000000e+00 : f32
    %199 = vector.broadcast %cst_64 : f32 to vector<1x64xf32>
    %200 = arith.addf %199, %198 : vector<1x64xf32>
    %201 = arith.divf %199, %200 : vector<1x64xf32>
    %202 = arith.mulf %193, %144 : vector<1x64xf32>
    %203 = arith.mulf %187, %195 : vector<1x64xf32>
    %204 = arith.addf %202, %203 : vector<1x64xf32>
    %205 = math.tanh %204 : vector<1x64xf32>
    %206 = arith.mulf %201, %205 : vector<1x64xf32>
    %207 = vector.extract_strided_slice %90 {offsets = [2, 0], sizes = [1, 256], strides = [1, 1]} : vector<4x256xf32> to vector<1x256xf32>
    %208 = arith.truncf %175 : vector<1x64xf32> to vector<1x64xbf16>
    %cst_65 = arith.constant dense<0.000000e+00> : vector<1x256xf32>
    %209 = tpu.matmul %208, %82, %cst_65 {dimension_numbers = #tpu.dot_dimension_numbers<[1], [0], [0], [1], [0, 0, 1, 1], [], []>} : vector<1x64xbf16>, vector<64x256xbf16>, vector<1x256xf32> -> vector<1x256xf32>
    %210 = arith.addf %207, %209 : vector<1x256xf32>
    %211 = vector.extract_strided_slice %210 {offsets = [0, 0], sizes = [1, 64], strides = [1, 1]} : vector<1x256xf32> to vector<1x64xf32>
    %212 = arith.negf %211 : vector<1x64xf32>
    %213 = math.exp %212 : vector<1x64xf32>
    %cst_66 = arith.constant 1.000000e+00 : f32
    %214 = vector.broadcast %cst_66 : f32 to vector<1x64xf32>
    %215 = arith.addf %214, %213 : vector<1x64xf32>
    %216 = arith.divf %214, %215 : vector<1x64xf32>
    %217 = vector.extract_strided_slice %210 {offsets = [0, 64], sizes = [1, 64], strides = [1, 1]} : vector<1x256xf32> to vector<1x64xf32>
    %218 = arith.negf %217 : vector<1x64xf32>
    %219 = math.exp %218 : vector<1x64xf32>
    %cst_67 = arith.constant 1.000000e+00 : f32
    %220 = vector.broadcast %cst_67 : f32 to vector<1x64xf32>
    %221 = arith.addf %220, %219 : vector<1x64xf32>
    %222 = arith.divf %220, %221 : vector<1x64xf32>
    %223 = vector.extract_strided_slice %210 {offsets = [0, 128], sizes = [1, 64], strides = [1, 1]} : vector<1x256xf32> to vector<1x64xf32>
    %224 = math.tanh %223 : vector<1x64xf32>
    %225 = vector.extract_strided_slice %210 {offsets = [0, 192], sizes = [1, 64], strides = [1, 1]} : vector<1x256xf32> to vector<1x64xf32>
    %226 = arith.negf %225 : vector<1x64xf32>
    %227 = math.exp %226 : vector<1x64xf32>
    %cst_68 = arith.constant 1.000000e+00 : f32
    %228 = vector.broadcast %cst_68 : f32 to vector<1x64xf32>
    %229 = arith.addf %228, %227 : vector<1x64xf32>
    %230 = arith.divf %228, %229 : vector<1x64xf32>
    %231 = arith.mulf %222, %173 : vector<1x64xf32>
    %232 = arith.mulf %216, %224 : vector<1x64xf32>
    %233 = arith.addf %231, %232 : vector<1x64xf32>
    %234 = math.tanh %233 : vector<1x64xf32>
    %235 = arith.mulf %230, %234 : vector<1x64xf32>
    %236 = arith.truncf %235 : vector<1x64xf32> to vector<1x64xbf16>
    %cst_69 = arith.constant dense<0.000000e+00> : vector<1x256xf32>
    %237 = tpu.matmul %236, %83, %cst_69 {dimension_numbers = #tpu.dot_dimension_numbers<[1], [0], [0], [1], [0, 0, 1, 1], [], []>} : vector<1x64xbf16>, vector<64x256xbf16>, vector<1x256xf32> -> vector<1x256xf32>
    %238 = arith.addf %237, %86 : vector<1x256xf32>
    %239 = arith.truncf %206 : vector<1x64xf32> to vector<1x64xbf16>
    %cst_70 = arith.constant dense<0.000000e+00> : vector<1x256xf32>
    %240 = tpu.matmul %239, %84, %cst_70 {dimension_numbers = #tpu.dot_dimension_numbers<[1], [0], [0], [1], [0, 0, 1, 1], [], []>} : vector<1x64xbf16>, vector<64x256xbf16>, vector<1x256xf32> -> vector<1x256xf32>
    %241 = arith.addf %238, %240 : vector<1x256xf32>
    %242 = vector.extract_strided_slice %241 {offsets = [0, 0], sizes = [1, 64], strides = [1, 1]} : vector<1x256xf32> to vector<1x64xf32>
    %243 = arith.negf %242 : vector<1x64xf32>
    %244 = math.exp %243 : vector<1x64xf32>
    %cst_71 = arith.constant 1.000000e+00 : f32
    %245 = vector.broadcast %cst_71 : f32 to vector<1x64xf32>
    %246 = arith.addf %245, %244 : vector<1x64xf32>
    %247 = arith.divf %245, %246 : vector<1x64xf32>
    %248 = vector.extract_strided_slice %241 {offsets = [0, 64], sizes = [1, 64], strides = [1, 1]} : vector<1x256xf32> to vector<1x64xf32>
    %249 = arith.negf %248 : vector<1x64xf32>
    %250 = math.exp %249 : vector<1x64xf32>
    %cst_72 = arith.constant 1.000000e+00 : f32
    %251 = vector.broadcast %cst_72 : f32 to vector<1x64xf32>
    %252 = arith.addf %251, %250 : vector<1x64xf32>
    %253 = arith.divf %251, %252 : vector<1x64xf32>
    %254 = vector.extract_strided_slice %241 {offsets = [0, 128], sizes = [1, 64], strides = [1, 1]} : vector<1x256xf32> to vector<1x64xf32>
    %255 = math.tanh %254 : vector<1x64xf32>
    %256 = vector.extract_strided_slice %241 {offsets = [0, 192], sizes = [1, 64], strides = [1, 1]} : vector<1x256xf32> to vector<1x64xf32>
    %257 = arith.negf %256 : vector<1x64xf32>
    %258 = math.exp %257 : vector<1x64xf32>
    %cst_73 = arith.constant 1.000000e+00 : f32
    %259 = vector.broadcast %cst_73 : f32 to vector<1x64xf32>
    %260 = arith.addf %259, %258 : vector<1x64xf32>
    %261 = arith.divf %259, %260 : vector<1x64xf32>
    %262 = arith.mulf %253, %204 : vector<1x64xf32>
    %263 = arith.mulf %247, %255 : vector<1x64xf32>
    %264 = arith.addf %262, %263 : vector<1x64xf32>
    %265 = math.tanh %264 : vector<1x64xf32>
    %266 = arith.mulf %261, %265 : vector<1x64xf32>
    %267 = vector.extract_strided_slice %90 {offsets = [3, 0], sizes = [1, 256], strides = [1, 1]} : vector<4x256xf32> to vector<1x256xf32>
    %268 = arith.truncf %235 : vector<1x64xf32> to vector<1x64xbf16>
    %cst_74 = arith.constant dense<0.000000e+00> : vector<1x256xf32>
    %269 = tpu.matmul %268, %82, %cst_74 {dimension_numbers = #tpu.dot_dimension_numbers<[1], [0], [0], [1], [0, 0, 1, 1], [], []>} : vector<1x64xbf16>, vector<64x256xbf16>, vector<1x256xf32> -> vector<1x256xf32>
    %270 = arith.addf %267, %269 : vector<1x256xf32>
    %271 = vector.extract_strided_slice %270 {offsets = [0, 0], sizes = [1, 64], strides = [1, 1]} : vector<1x256xf32> to vector<1x64xf32>
    %272 = arith.negf %271 : vector<1x64xf32>
    %273 = math.exp %272 : vector<1x64xf32>
    %cst_75 = arith.constant 1.000000e+00 : f32
    %274 = vector.broadcast %cst_75 : f32 to vector<1x64xf32>
    %275 = arith.addf %274, %273 : vector<1x64xf32>
    %276 = arith.divf %274, %275 : vector<1x64xf32>
    %277 = vector.extract_strided_slice %270 {offsets = [0, 64], sizes = [1, 64], strides = [1, 1]} : vector<1x256xf32> to vector<1x64xf32>
    %278 = arith.negf %277 : vector<1x64xf32>
    %279 = math.exp %278 : vector<1x64xf32>
    %cst_76 = arith.constant 1.000000e+00 : f32
    %280 = vector.broadcast %cst_76 : f32 to vector<1x64xf32>
    %281 = arith.addf %280, %279 : vector<1x64xf32>
    %282 = arith.divf %280, %281 : vector<1x64xf32>
    %283 = vector.extract_strided_slice %270 {offsets = [0, 128], sizes = [1, 64], strides = [1, 1]} : vector<1x256xf32> to vector<1x64xf32>
    %284 = math.tanh %283 : vector<1x64xf32>
    %285 = vector.extract_strided_slice %270 {offsets = [0, 192], sizes = [1, 64], strides = [1, 1]} : vector<1x256xf32> to vector<1x64xf32>
    %286 = arith.negf %285 : vector<1x64xf32>
    %287 = math.exp %286 : vector<1x64xf32>
    %cst_77 = arith.constant 1.000000e+00 : f32
    %288 = vector.broadcast %cst_77 : f32 to vector<1x64xf32>
    %289 = arith.addf %288, %287 : vector<1x64xf32>
    %290 = arith.divf %288, %289 : vector<1x64xf32>
    %291 = arith.mulf %282, %233 : vector<1x64xf32>
    %292 = arith.mulf %276, %284 : vector<1x64xf32>
    %293 = arith.addf %291, %292 : vector<1x64xf32>
    %294 = math.tanh %293 : vector<1x64xf32>
    %295 = arith.mulf %290, %294 : vector<1x64xf32>
    %296 = arith.truncf %295 : vector<1x64xf32> to vector<1x64xbf16>
    %cst_78 = arith.constant dense<0.000000e+00> : vector<1x256xf32>
    %297 = tpu.matmul %296, %83, %cst_78 {dimension_numbers = #tpu.dot_dimension_numbers<[1], [0], [0], [1], [0, 0, 1, 1], [], []>} : vector<1x64xbf16>, vector<64x256xbf16>, vector<1x256xf32> -> vector<1x256xf32>
    %298 = arith.addf %297, %86 : vector<1x256xf32>
    %299 = arith.truncf %266 : vector<1x64xf32> to vector<1x64xbf16>
    %cst_79 = arith.constant dense<0.000000e+00> : vector<1x256xf32>
    %300 = tpu.matmul %299, %84, %cst_79 {dimension_numbers = #tpu.dot_dimension_numbers<[1], [0], [0], [1], [0, 0, 1, 1], [], []>} : vector<1x64xbf16>, vector<64x256xbf16>, vector<1x256xf32> -> vector<1x256xf32>
    %301 = arith.addf %298, %300 : vector<1x256xf32>
    %302 = vector.extract_strided_slice %301 {offsets = [0, 0], sizes = [1, 64], strides = [1, 1]} : vector<1x256xf32> to vector<1x64xf32>
    %303 = arith.negf %302 : vector<1x64xf32>
    %304 = math.exp %303 : vector<1x64xf32>
    %cst_80 = arith.constant 1.000000e+00 : f32
    %305 = vector.broadcast %cst_80 : f32 to vector<1x64xf32>
    %306 = arith.addf %305, %304 : vector<1x64xf32>
    %307 = arith.divf %305, %306 : vector<1x64xf32>
    %308 = vector.extract_strided_slice %301 {offsets = [0, 64], sizes = [1, 64], strides = [1, 1]} : vector<1x256xf32> to vector<1x64xf32>
    %309 = arith.negf %308 : vector<1x64xf32>
    %310 = math.exp %309 : vector<1x64xf32>
    %cst_81 = arith.constant 1.000000e+00 : f32
    %311 = vector.broadcast %cst_81 : f32 to vector<1x64xf32>
    %312 = arith.addf %311, %310 : vector<1x64xf32>
    %313 = arith.divf %311, %312 : vector<1x64xf32>
    %314 = vector.extract_strided_slice %301 {offsets = [0, 128], sizes = [1, 64], strides = [1, 1]} : vector<1x256xf32> to vector<1x64xf32>
    %315 = math.tanh %314 : vector<1x64xf32>
    %316 = vector.extract_strided_slice %301 {offsets = [0, 192], sizes = [1, 64], strides = [1, 1]} : vector<1x256xf32> to vector<1x64xf32>
    %317 = arith.negf %316 : vector<1x64xf32>
    %318 = math.exp %317 : vector<1x64xf32>
    %cst_82 = arith.constant 1.000000e+00 : f32
    %319 = vector.broadcast %cst_82 : f32 to vector<1x64xf32>
    %320 = arith.addf %319, %318 : vector<1x64xf32>
    %321 = arith.divf %319, %320 : vector<1x64xf32>
    %322 = arith.mulf %313, %264 : vector<1x64xf32>
    %323 = arith.mulf %307, %315 : vector<1x64xf32>
    %324 = arith.addf %322, %323 : vector<1x64xf32>
    %325 = math.tanh %324 : vector<1x64xf32>
    %326 = arith.mulf %321, %325 : vector<1x64xf32>
    %c0_83 = arith.constant 0 : index
    %c0_84 = arith.constant 0 : index
    %c0_85 = arith.constant 0 : index
    %327 = vector.load %arg2[%c0_83, %c0_84, %c0_85] : memref<1x1x20xf32, #tpu.memory_space<vmem>>, vector<1x1x20xf32>
    %328 = vector.shape_cast %327 : vector<1x1x20xf32> to vector<1x20xf32>
    %c0_86 = arith.constant 0 : index
    %c0_87 = arith.constant 0 : index
    %329 = vector.load %arg6[%c0_86, %c0_87] : memref<160x32xbf16, #tpu.memory_space<vmem>>, vector<20x32xbf16>
    %330 = arith.truncf %328 : vector<1x20xf32> to vector<1x20xbf16>
    %cst_88 = arith.constant dense<0.000000e+00> : vector<1x32xf32>
    %331 = tpu.matmul %330, %329, %cst_88 {dimension_numbers = #tpu.dot_dimension_numbers<[1], [0], [0], [1], [0, 0, 1, 1], [], []>} : vector<1x20xbf16>, vector<20x32xbf16>, vector<1x32xf32> -> vector<1x32xf32>
    %c0_89 = arith.constant 0 : index
    %c0_90 = arith.constant 0 : index
    %332 = vector.load %arg8[%c0_89, %c0_90] : memref<3x32xf32, #tpu.memory_space<vmem>>, vector<1x32xf32>
    %333 = arith.addf %331, %332 : vector<1x32xf32>
    %cst_91 = arith.constant 0.000000e+00 : f32
    %334 = vector.broadcast %cst_91 : f32 to vector<1x32xf32>
    %335 = arith.maximumf %333, %334 : vector<1x32xf32>
    %c32 = arith.constant 32 : index
    %c0_92 = arith.constant 0 : index
    %336 = vector.load %arg6[%c32, %c0_92] : memref<160x32xbf16, #tpu.memory_space<vmem>>, vector<64x32xbf16>
    %337 = arith.truncf %326 : vector<1x64xf32> to vector<1x64xbf16>
    %cst_93 = arith.constant dense<0.000000e+00> : vector<1x32xf32>
    %338 = tpu.matmul %337, %336, %cst_93 {dimension_numbers = #tpu.dot_dimension_numbers<[1], [0], [0], [1], [0, 0, 1, 1], [], []>} : vector<1x64xbf16>, vector<64x32xbf16>, vector<1x32xf32> -> vector<1x32xf32>
    %c96 = arith.constant 96 : index
    %c0_94 = arith.constant 0 : index
    %339 = vector.load %arg6[%c96, %c0_94] : memref<160x32xbf16, #tpu.memory_space<vmem>>, vector<32x32xbf16>
    %340 = arith.truncf %335 : vector<1x32xf32> to vector<1x32xbf16>
    %cst_95 = arith.constant dense<0.000000e+00> : vector<1x32xf32>
    %341 = tpu.matmul %340, %339, %cst_95 {dimension_numbers = #tpu.dot_dimension_numbers<[1], [0], [0], [1], [0, 0, 1, 1], [], []>} : vector<1x32xbf16>, vector<32x32xbf16>, vector<1x32xf32> -> vector<1x32xf32>
    %342 = arith.addf %338, %341 : vector<1x32xf32>
    %c1_96 = arith.constant 1 : index
    %c0_97 = arith.constant 0 : index
    %343 = vector.load %arg8[%c1_96, %c0_97] : memref<3x32xf32, #tpu.memory_space<vmem>>, vector<1x32xf32>
    %344 = arith.addf %342, %343 : vector<1x32xf32>
    %cst_98 = arith.constant 0.000000e+00 : f32
    %345 = vector.broadcast %cst_98 : f32 to vector<1x32xf32>
    %346 = arith.maximumf %344, %345 : vector<1x32xf32>
    %c128 = arith.constant 128 : index
    %c0_99 = arith.constant 0 : index
    %347 = vector.load %arg6[%c128, %c0_99] : memref<160x32xbf16, #tpu.memory_space<vmem>>, vector<32x32xbf16>
    %348 = arith.truncf %346 : vector<1x32xf32> to vector<1x32xbf16>
    %cst_100 = arith.constant dense<0.000000e+00> : vector<1x32xf32>
    %349 = tpu.matmul %348, %347, %cst_100 {dimension_numbers = #tpu.dot_dimension_numbers<[1], [0], [0], [1], [0, 0, 1, 1], [], []>} : vector<1x32xbf16>, vector<32x32xbf16>, vector<1x32xf32> -> vector<1x32xf32>
    %c2_101 = arith.constant 2 : index
    %c0_102 = arith.constant 0 : index
    %350 = vector.load %arg8[%c2_101, %c0_102] : memref<3x32xf32, #tpu.memory_space<vmem>>, vector<1x32xf32>
    %351 = arith.addf %349, %350 : vector<1x32xf32>
    %352 = vector.extract_strided_slice %351 {offsets = [0, 0], sizes = [1, 2], strides = [1, 1]} : vector<1x32xf32> to vector<1x2xf32>
    %353 = vector.shape_cast %352 : vector<1x2xf32> to vector<1x1x2xf32>
    %c0_103 = arith.constant 0 : index
    %c0_104 = arith.constant 0 : index
    %c0_105 = arith.constant 0 : index
    %354 = vector.load %arg9[%c0_103, %c0_104, %c0_105] : memref<1x1x2xf32, #tpu.memory_space<vmem>>, vector<1x1x2xf32>
    tpu.vector_store %arg9[%c0_103, %c0_104, %c0_105], %353 {strides = array<i32>} : memref<1x1x2xf32, #tpu.memory_space<vmem>>, vector<1x1x2xf32>,
    return
  }
  func.func @transform_0(%arg0: i32) -> (i32, i32, i32) {
    %c0_i32 = arith.constant 0 : i32
    %c0_i32_0 = arith.constant 0 : i32
    %c0_i32_1 = arith.constant 0 : i32
    return %arg0, %c0_i32, %c0_i32_0 : i32, i32, i32
  }
  func.func @transform_1(%arg0: i32) -> (i32, i32, i32) {
    %c0_i32 = arith.constant 0 : i32
    %c0_i32_0 = arith.constant 0 : i32
    %c0_i32_1 = arith.constant 0 : i32
    return %arg0, %c0_i32, %c0_i32_0 : i32, i32, i32
  }
  func.func @transform_2(%arg0: i32) -> (i32, i32) {
    %c0_i32 = arith.constant 0 : i32
    %c0_i32_0 = arith.constant 0 : i32
    %c0_i32_1 = arith.constant 0 : i32
    return %c0_i32, %c0_i32_0 : i32, i32
  }
  func.func @transform_3(%arg0: i32) -> (i32, i32, i32) {
    %c0_i32 = arith.constant 0 : i32
    %c0_i32_0 = arith.constant 0 : i32
    %c0_i32_1 = arith.constant 0 : i32
    %c0_i32_2 = arith.constant 0 : i32
    return %c0_i32, %c0_i32_0, %c0_i32_1 : i32, i32, i32
  }
  func.func @transform_4(%arg0: i32) -> (i32, i32) {
    %c0_i32 = arith.constant 0 : i32
    %c0_i32_0 = arith.constant 0 : i32
    %c0_i32_1 = arith.constant 0 : i32
    return %c0_i32, %c0_i32_0 : i32, i32
  }
  func.func @transform_5(%arg0: i32) -> (i32, i32) {
    %c0_i32 = arith.constant 0 : i32
    %c0_i32_0 = arith.constant 0 : i32
    %c0_i32_1 = arith.constant 0 : i32
    return %c0_i32, %c0_i32_0 : i32, i32
  }
  func.func @transform_6(%arg0: i32) -> (i32, i32) {
    %c0_i32 = arith.constant 0 : i32
    %c0_i32_0 = arith.constant 0 : i32
    %c0_i32_1 = arith.constant 0 : i32
    return %c0_i32, %c0_i32_0 : i32, i32
  }
  func.func @transform_7(%arg0: i32) -> (i32, i32) {
    %c0_i32 = arith.constant 0 : i32
    %c0_i32_0 = arith.constant 0 : i32
    %c0_i32_1 = arith.constant 0 : i32
    return %c0_i32, %c0_i32_0 : i32, i32
  }
  func.func @transform_8(%arg0: i32) -> (i32, i32, i32) {
    %c0_i32 = arith.constant 0 : i32
    %c0_i32_0 = arith.constant 0 : i32
    %c0_i32_1 = arith.constant 0 : i32
    return %arg0, %c0_i32, %c0_i32_0 : i32, i32, i32
  }
}

</mosaic_0001>

<llo_original>
// kernel: lie_detection_forward.1
$region0: #{lie_detection_forward.1}
  #allocation0 [shape = 'u32[]', space=smem, size = 0x4, offset = 0x4, fixed_abs, tag = 'smem constant byte address 0x4 - core index']
  #allocation1 [shape = 'u32[144,128]{1,0:T(1,128)}', space=vmem, size = 0x12000, scoped, tag = 'internal scratch']
  %s0 = inlined_call_operand.hbm [shape: f32[2,72,54], index: 0, kind: input, shape index: {}]
  %s1 = inlined_call_operand.hbm [shape: f32[2,1,20], index: 1, kind: input, shape index: {}]
  %s2 = inlined_call_operand.hbm [shape: bf16[2480,256], index: 2, kind: input, shape index: {}]
  %s3 = inlined_call_operand.hbm [shape: bf16[4,40,72], index: 3, kind: input, shape index: {}]
  %s4 = inlined_call_operand.hbm [shape: bf16[448,256], index: 4, kind: input, shape index: {}]
  %s5 = inlined_call_operand.hbm [shape: bf16[160,32], index: 5, kind: input, shape index: {}]
  %s6 = inlined_call_operand.hbm [shape: f32[6,256], index: 6, kind: input, shape index: {}]
  %s7 = inlined_call_operand.hbm [shape: f32[3,32], index: 7, kind: input, shape index: {}]
  %s8 = inlined_call_operand.hbm [shape: f32[2,1,2], index: 8, kind: output, shape index: {}]
  %s9 = sld [smem:[#allocation0]]
  $region97: #{lie_detection_forward.1} parent=0
    _
  %s11 = ssub.s32 1, %s9
  %s12 = scalar_select 0, %s11, %s9
  $region1: #{lie_detection_forward.1} parent=0
    #allocation2 [shape = 'u8[73728]{0}', space=vmem, size = 0x12000, scoped, tag = 'input window, operand 0']
    #allocation3 [shape = 's32[2]{0}', space=sflag, size = 0x8, scoped, tag = 'scoped memory for lie_detection_forward.1']
    #allocation4 [shape = 's32[2]{0}', space=sflag, size = 0x8, scoped, tag = 'scoped memory for lie_detection_forward.1']
    #allocation5 [shape = 'u8[1024]{0}', space=vmem, size = 0x400, scoped, tag = 'input window, operand 1']
    #allocation6 [shape = 's32[2]{0}', space=sflag, size = 0x8, scoped, tag = 'scoped memory for lie_detection_forward.1']
    #allocation7 [shape = 'u8[1269760]{0}', space=vmem, size = 0x136000, scoped, tag = 'input window, operand 2, single buffered']
    #allocation8 [shape = 'u8[40960]{0}', space=vmem, size = 0xa000, scoped, tag = 'input window, operand 3, single buffered']
    #allocation9 [shape = 's32[1]{0}', space=sflag, size = 0x4, scoped, tag = 'scoped memory for lie_detection_forward.1']
    #allocation10 [shape = 'u8[229376]{0}', space=vmem, size = 0x38000, scoped, tag = 'input window, operand 4, single buffered']
    #allocation11 [shape = 'u8[40960]{0}', space=vmem, size = 0xa000, scoped, tag = 'input window, operand 5, single buffered']
    #allocation12 [shape = 's32[1]{0}', space=sflag, size = 0x4, scoped, tag = 'scoped memory for lie_detection_forward.1']
    #allocation13 [shape = 'u8[8192]{0}', space=vmem, size = 0x2000, scoped, tag = 'input window, operand 6, single buffered']
    #allocation14 [shape = 'u8[2048]{0}', space=vmem, size = 0x800, scoped, tag = 'input window, operand 7, single buffered']
    #allocation15 [shape = 's32[1]{0}', space=sflag, size = 0x4, scoped, tag = 'scoped memory for lie_detection_forward.1']
    #allocation16 [shape = 'u8[1024]{0}', space=vmem, size = 0x400, scoped, tag = 'output window, operand 0']
    %13 = vsyncpa [#allocation3], 0
    %s14 = scalar_lea.sflag [#allocation3], 1
    %15 = vsyncpa %s14, 0
    %16 = vsyncpa [#allocation6], 0
    %s17 = scalar_lea.sflag [#allocation6], 1
    %18 = vsyncpa %s17, 0
    %19 = vsyncpa [#allocation9], 0
    %20 = vsyncpa [#allocation12], 0
    %21 = vsyncpa [#allocation15], 0
    %22 = vsyncpa [#allocation4], 0
    %s23 = scalar_lea.sflag [#allocation4], 1
    %24 = vsyncpa %s23, 0
    loop: start=0, step=1, limit=4
    $region2: #{lie_detection_forward.1} parent=1 // loop_pre_header
      _
    $region3: #{lie_detection_forward.1} parent=1 // loop_header
      %s26 = sphi 0, %s30
      %p27 = scmp.ge.s32.totalorder %s26, 4
      %s36 = sphi 0, %s38
      %s39 = sphi 0, %s36
      %s40 = sphi 0, %s39
      %s56 = sphi 0, %s40
      %s62 = sphi 0, %s64
      %s65 = sphi 0, %s62
      %s66 = sphi 0, %s65
      %s82 = sphi 0, %s66
      %s86 = sphi 0, %s86
      %s88 = sphi 0, %s86
      %s89 = sphi 0, %s88
      %s103 = sphi 0, %s89
      %s107 = sphi 0, %s107
      %s109 = sphi 0, %s107
      %s110 = sphi 0, %s109
      %s124 = sphi 0, %s110
      %s128 = sphi 0, %s128
      %s130 = sphi 0, %s128
      %s131 = sphi 0, %s130
      %s145 = sphi 0, %s131
      %s149 = sphi 0, %s149
      %s151 = sphi 0, %s149
      %s152 = sphi 0, %s151
      %s166 = sphi 0, %s152
      %s170 = sphi 0, %s170
      %s172 = sphi 0, %s170
      %s173 = sphi 0, %s172
      %s187 = sphi 0, %s173
      %s191 = sphi 0, %s191
      %s193 = sphi 0, %s191
      %s194 = sphi 0, %s193
      %s208 = sphi 0, %s194
      %s214 = sphi 0, %s216
      %s217 = sphi 0, %s214
      %s218 = sphi 0, %s217
      %s234 = sphi 0, %s218
    $region4: #{lie_detection_forward.1} parent=1 // loop_header_branch
      %29 = sbr.rel (%p27) target = $region8
    $region5: #{lie_detection_forward.1} parent=1 // loop_body
      %s31 = ssub.s32 %s26, 1
      %s32 = ssub.s32 %s26, 2
      %s33 = sadd.s32 %s26, 1
      %s34 = ssub.s32 %s26, %s33
      %p35 = scmp.eq.s32.totalorder %s34, 0
      %s37 = sadd.s32 %s36, 1
      %s38 = scalar_select %p35, %s36, %s37
      %p41 = pneg %p35
      %p42 = scmp.eq.s32.totalorder %s26, 1
      %p43 = por %p41, %p42
      %p44 = scmp.ne.s32.totalorder %s36, %s39
      %p45 = scmp.eq.s32.totalorder %s26, 0
      %p46 = por %p44, %p45
      %p47 = scmp.ne.s32.totalorder %s36, %s39
      %p48 = scmp.eq.s32.totalorder %s31, 1
      %p49 = por %p47, %p48
      %p50 = scmp.ne.s32.totalorder %s39, %s40
      %p51 = scmp.eq.s32.totalorder %s31, 0
      %p52 = por %p50, %p51
      %p53 = scmp.ne.s32.totalorder %s39, %s40
      %p54 = scmp.eq.s32.totalorder %s32, 1
      %p55 = por %p53, %p54
      %p57 = scmp.ne.s32.totalorder %s40, %s56
      %p58 = scmp.eq.s32.totalorder %s32, 0
      %p59 = por %p57, %p58
      %s60 = ssub.s32 %s26, %s33
      %p61 = scmp.eq.s32.totalorder %s60, 0
      %s63 = sadd.s32 %s62, 1
      %s64 = scalar_select %p61, %s62, %s63
      %p67 = pneg %p61
      %p68 = scmp.eq.s32.totalorder %s26, 1
      %p69 = por %p67, %p68
      %p70 = scmp.ne.s32.totalorder %s62, %s65
      %p71 = scmp.eq.s32.totalorder %s26, 0
      %p72 = por %p70, %p71
      %p73 = scmp.ne.s32.totalorder %s62, %s65
      %p74 = scmp.eq.s32.totalorder %s31, 1
      %p75 = por %p73, %p74
      %p76 = scmp.ne.s32.totalorder %s65, %s66
      %p77 = scmp.eq.s32.totalorder %s31, 0
      %p78 = por %p76, %p77
      %p79 = scmp.ne.s32.totalorder %s65, %s66
      %p80 = scmp.eq.s32.totalorder %s32, 1
      %p81 = por %p79, %p80
      %p83 = scmp.ne.s32.totalorder %s66, %s82
      %p84 = scmp.eq.s32.totalorder %s32, 0
      %p85 = por %p83, %p84
      %s87 = sadd.s32 %s86, 1
      %p90 = scmp.eq.s32.totalorder %s26, 1
      %p91 = scmp.ne.s32.totalorder %s86, %s88
      %p92 = scmp.eq.s32.totalorder %s26, 0
      %p93 = por %p91, %p92
      %p94 = scmp.ne.s32.totalorder %s86, %s88
      %p95 = scmp.eq.s32.totalorder %s31, 1
      %p96 = por %p94, %p95
      %p97 = scmp.ne.s32.totalorder %s88, %s89
      %p98 = scmp.eq.s32.totalorder %s31, 0
      %p99 = por %p97, %p98
      %p100 = scmp.ne.s32.totalorder %s88, %s89
      %p101 = scmp.eq.s32.totalorder %s32, 1
      %p102 = por %p100, %p101
      %p104 = scmp.ne.s32.totalorder %s89, %s103
      %p105 = scmp.eq.s32.totalorder %s32, 0
      %p106 = por %p104, %p105
      %s108 = sadd.s32 %s107, 1
      %p111 = scmp.eq.s32.totalorder %s26, 1
      %p112 = scmp.ne.s32.totalorder %s107, %s109
      %p113 = scmp.eq.s32.totalorder %s26, 0
      %p114 = por %p112, %p113
      %p115 = scmp.ne.s32.totalorder %s107, %s109
      %p116 = scmp.eq.s32.totalorder %s31, 1
      %p117 = por %p115, %p116
      %p118 = scmp.ne.s32.totalorder %s109, %s110
      %p119 = scmp.eq.s32.totalorder %s31, 0
      %p120 = por %p118, %p119
      %p121 = scmp.ne.s32.totalorder %s109, %s110
      %p122 = scmp.eq.s32.totalorder %s32, 1
      %p123 = por %p121, %p122
      %p125 = scmp.ne.s32.totalorder %s110, %s124
      %p126 = scmp.eq.s32.totalorder %s32, 0
      %p127 = por %p125, %p126
      %s129 = sadd.s32 %s128, 1
      %p132 = scmp.eq.s32.totalorder %s26, 1
      %p133 = scmp.ne.s32.totalorder %s128, %s130
      %p134 = scmp.eq.s32.totalorder %s26, 0
      %p135 = por %p133, %p134
      %p136 = scmp.ne.s32.totalorder %s128, %s130
      %p137 = scmp.eq.s32.totalorder %s31, 1
      %p138 = por %p136, %p137
      %p139 = scmp.ne.s32.totalorder %s130, %s131
      %p140 = scmp.eq.s32.totalorder %s31, 0
      %p141 = por %p139, %p140
      %p142 = scmp.ne.s32.totalorder %s130, %s131
      %p143 = scmp.eq.s32.totalorder %s32, 1
      %p144 = por %p142, %p143
      %p146 = scmp.ne.s32.totalorder %s131, %s145
      %p147 = scmp.eq.s32.totalorder %s32, 0
      %p148 = por %p146, %p147
      %s150 = sadd.s32 %s149, 1
      %p153 = scmp.eq.s32.totalorder %s26, 1
      %p154 = scmp.ne.s32.totalorder %s149, %s151
      %p155 = scmp.eq.s32.totalorder %s26, 0
      %p156 = por %p154, %p155
      %p157 = scmp.ne.s32.totalorder %s149, %s151
      %p158 = scmp.eq.s32.totalorder %s31, 1
      %p159 = por %p157, %p158
      %p160 = scmp.ne.s32.totalorder %s151, %s152
      %p161 = scmp.eq.s32.totalorder %s31, 0
      %p162 = por %p160, %p161
      %p163 = scmp.ne.s32.totalorder %s151, %s152
      %p164 = scmp.eq.s32.totalorder %s32, 1
      %p165 = por %p163, %p164
      %p167 = scmp.ne.s32.totalorder %s152, %s166
      %p168 = scmp.eq.s32.totalorder %s32, 0
      %p169 = por %p167, %p168
      %s171 = sadd.s32 %s170, 1
      %p174 = scmp.eq.s32.totalorder %s26, 1
      %p175 = scmp.ne.s32.totalorder %s170, %s172
      %p176 = scmp.eq.s32.totalorder %s26, 0
      %p177 = por %p175, %p176
      %p178 = scmp.ne.s32.totalorder %s170, %s172
      %p179 = scmp.eq.s32.totalorder %s31, 1
      %p180 = por %p178, %p179
      %p181 = scmp.ne.s32.totalorder %s172, %s173
      %p182 = scmp.eq.s32.totalorder %s31, 0
      %p183 = por %p181, %p182
      %p184 = scmp.ne.s32.totalorder %s172, %s173
      %p185 = scmp.eq.s32.totalorder %s32, 1
      %p186 = por %p184, %p185
      %p188 = scmp.ne.s32.totalorder %s173, %s187
      %p189 = scmp.eq.s32.totalorder %s32, 0
      %p190 = por %p188, %p189
      %s192 = sadd.s32 %s191, 1
      %p195 = scmp.eq.s32.totalorder %s26, 1
      %p196 = scmp.ne.s32.totalorder %s191, %s193
      %p197 = scmp.eq.s32.totalorder %s26, 0
      %p198 = por %p196, %p197
      %p199 = scmp.ne.s32.totalorder %s191, %s193
      %p200 = scmp.eq.s32.totalorder %s31, 1
      %p201 = por %p199, %p200
      %p202 = scmp.ne.s32.totalorder %s193, %s194
      %p203 = scmp.eq.s32.totalorder %s31, 0
      %p204 = por %p202, %p203
      %p205 = scmp.ne.s32.totalorder %s193, %s194
      %p206 = scmp.eq.s32.totalorder %s32, 1
      %p207 = por %p205, %p206
      %p209 = scmp.ne.s32.totalorder %s194, %s208
      %p210 = scmp.eq.s32.totalorder %s32, 0
      %p211 = por %p209, %p210
      %s212 = ssub.s32 %s26, %s33
      %p213 = scmp.eq.s32.totalorder %s212, 0
      %s215 = sadd.s32 %s214, 1
      %s216 = scalar_select %p213, %s214, %s215
      %p219 = pneg %p213
      %p220 = scmp.eq.s32.totalorder %s26, 1
      %p221 = por %p219, %p220
      %p222 = scmp.ne.s32.totalorder %s214, %s217
      %p223 = scmp.eq.s32.totalorder %s26, 0
      %p224 = por %p222, %p223
      %p225 = scmp.ne.s32.totalorder %s214, %s217
      %p226 = scmp.eq.s32.totalorder %s31, 1
      %p227 = por %p225, %p226
      %p228 = scmp.ne.s32.totalorder %s217, %s218
      %p229 = scmp.eq.s32.totalorder %s31, 0
      %p230 = por %p228, %p229
      %p231 = scmp.ne.s32.totalorder %s217, %s218
      %p232 = scmp.eq.s32.totalorder %s32, 1
      %p233 = por %p231, %p232
      %p235 = scmp.ne.s32.totalorder %s218, %s234
      %p236 = scmp.eq.s32.totalorder %s32, 0
      %p237 = por %p235, %p236
      %p238 = scmp.le.s32.totalorder 1, %s26
      %p239 = scmp.lt.s32.totalorder %s26, 3
      %p240 = pnand %p238, %p239
      %p241 = pneg %p240
      // Predicated region
      $region9: #{lie_detection_forward.1} parent=5 // pred_check
        _
      $region10: #{lie_detection_forward.1} parent=5 // pred_check_branch
        %243 = sbr.rel (%p240) target = $region12
      $region11: #{lie_detection_forward.1} parent=5 // pred_region
        %s244 = ssub.s32 %s26, 1
        // Predicated region
        $region13: #{lie_detection_forward.1} parent=11 // pred_check
          %p245 = pneg %p99
        $region14: #{lie_detection_forward.1} parent=11 // pred_check_branch
          %247 = sbr.rel (%p245) target = $region16
        $region15: #{lie_detection_forward.1} parent=11 // pred_region
          %s249 = ssub.s32 39680, 39680
          %250 = vsyncadd [#allocation6], %s249
          %s251 = sshll.u32 [#allocation7], 4
          %s252 = int_to_ptr.vmem [resolvable:$true] %s251
          %257 = dma.hbm_to_vmem [thread:$0]  %s2, 39680, %s252, [#allocation6], 128, 128, 8
        $region16: #{lie_detection_forward.1} parent=11 // pred_fallthru
          _
        // Predicated region
        $region17: #{lie_detection_forward.1} parent=11 // pred_check
          %p258 = pneg %p120
        $region18: #{lie_detection_forward.1} parent=11 // pred_check_branch
          %260 = sbr.rel (%p258) target = $region20
        $region19: #{lie_detection_forward.1} parent=11 // pred_region
          %s262 = ssub.s32 1280, 1280
          %263 = vsyncadd [#allocation9], %s262
          %s264 = sshll.u32 [#allocation8], 4
          %s265 = int_to_ptr.vmem [resolvable:$true] %s264
          %270 = dma.hbm_to_vmem [thread:$0]  %s3, 1280, %s265, [#allocation9], 64, 64, 4
        $region20: #{lie_detection_forward.1} parent=11 // pred_fallthru
          _
        // Predicated region
        $region21: #{lie_detection_forward.1} parent=11 // pred_check
          %p271 = pneg %p141
        $region22: #{lie_detection_forward.1} parent=11 // pred_check_branch
          %273 = sbr.rel (%p271) target = $region24
        $region23: #{lie_detection_forward.1} parent=11 // pred_region
          %s275 = ssub.s32 7168, 7168
          %276 = vsyncadd [#allocation9], %s275
          %s277 = sshll.u32 [#allocation10], 4
          %s278 = int_to_ptr.vmem [resolvable:$true] %s277
          %283 = dma.hbm_to_vmem [thread:$0]  %s4, 7168, %s278, [#allocation9], 128, 128, 8
        $region24: #{lie_detection_forward.1} parent=11 // pred_fallthru
          _
        // Predicated region
        $region25: #{lie_detection_forward.1} parent=11 // pred_check
          %p284 = pneg %p162
        $region26: #{lie_detection_forward.1} parent=11 // pred_check_branch
          %286 = sbr.rel (%p284) target = $region28
        $region27: #{lie_detection_forward.1} parent=11 // pred_region
          %s288 = ssub.s32 1280, 1280
          %289 = vsyncadd [#allocation12], %s288
          %s290 = sshll.u32 [#allocation11], 4
          %s291 = int_to_ptr.vmem [resolvable:$true] %s290
          %296 = dma.hbm_to_vmem [thread:$0]  %s5, 1280, %s291, [#allocation12], 64, 64, 4
        $region28: #{lie_detection_forward.1} parent=11 // pred_fallthru
          _
        // Predicated region
        $region29: #{lie_detection_forward.1} parent=11 // pred_check
          %p297 = pneg %p183
        $region30: #{lie_detection_forward.1} parent=11 // pred_check_branch
          %299 = sbr.rel (%p297) target = $region32
        $region31: #{lie_detection_forward.1} parent=11 // pred_region
          %s301 = ssub.s32 256, 256
          %302 = vsyncadd [#allocation12], %s301
          %s304 = sshll.u32 [#allocation13], 4
          %s305 = int_to_ptr.vmem [resolvable:$true] %s304
          %307 = dma.hbm_to_vmem [thread:$0]  %s6, 256, %s305, [#allocation12]
        $region32: #{lie_detection_forward.1} parent=11 // pred_fallthru
          _
        // Predicated region
        $region33: #{lie_detection_forward.1} parent=11 // pred_check
          %p308 = pneg %p204
        $region34: #{lie_detection_forward.1} parent=11 // pred_check_branch
          %310 = sbr.rel (%p308) target = $region36
        $region35: #{lie_detection_forward.1} parent=11 // pred_region
          %s312 = ssub.s32 64, 64
          %313 = vsyncadd [#allocation15], %s312
          %s315 = sshll.u32 [#allocation14], 4
          %s316 = int_to_ptr.vmem [resolvable:$true] %s315
          %318 = dma.hbm_to_vmem [thread:$0]  %s7, 64, %s316, [#allocation15]
        $region36: #{lie_detection_forward.1} parent=11 // pred_fallthru
          _
      $region12: #{lie_detection_forward.1} parent=5 // pred_fallthru
        _
      %p319 = scmp.lt.s32.totalorder %s26, 2
      // Predicated region
      $region37: #{lie_detection_forward.1} parent=5 // pred_check
        %p320 = pneg %p319
      $region38: #{lie_detection_forward.1} parent=5 // pred_check_branch
        %322 = sbr.rel (%p320) target = $region40
      $region39: #{lie_detection_forward.1} parent=5 // pred_region
        // Predicated region
        $region41: #{lie_detection_forward.1} parent=39 // pred_check
          %p323 = pneg %p46
        $region42: #{lie_detection_forward.1} parent=39 // pred_check_branch
          %325 = sbr.rel (%p323) target = $region44
        $region43: #{lie_detection_forward.1} parent=39 // pred_region
          %s326 = sand.u32 %s36, 1
          %s327 = scalar_lea.sflag [#allocation3], %s326
          %s328 = sand.u32 %s36, 1
          %s329 = smul.addr %s328, 72
          %s330 = scalar_lea.vmem [#allocation2], %s329
          %s332 = ssub.s32 1152, 1152
          %333 = vsyncadd %s327, %s332
          %s334 = smul.addr %s26, 9
          %s335 = smul.addr %s334, 128
          %s336 = scalar_lea.hbm %s0, %s335
          %s337 = sshll.u32 %s330, 4
          %s338 = int_to_ptr.vmem [resolvable:$true] %s337
          %343 = dma.hbm_to_vmem [thread:$0]  %s336, 1152, %s338, %s327, 128, 128, 8
        $region44: #{lie_detection_forward.1} parent=39 // pred_fallthru
          _
        // Predicated region
        $region45: #{lie_detection_forward.1} parent=39 // pred_check
          %p344 = pneg %p72
        $region46: #{lie_detection_forward.1} parent=39 // pred_check_branch
          %346 = sbr.rel (%p344) target = $region48
        $region47: #{lie_detection_forward.1} parent=39 // pred_region
          %s347 = sand.u32 %s26, 1
          %s348 = scalar_lea.sflag [#allocation6], %s347
          %s349 = sand.u32 %s62, 1
          %s350 = scalar_lea.vmem [#allocation5], %s349
          %s352 = ssub.s32 16, 16
          %353 = vsyncadd %s348, %s352
          %s354 = smul.addr %s26, 16
          %s355 = scalar_lea.hbm %s1, %s354
          %s357 = sshll.u32 %s350, 4
          %s358 = int_to_ptr.vmem [resolvable:$true] %s357
          %360 = dma.hbm_to_vmem [thread:$0]  %s355, 16, %s358, %s348
        $region48: #{lie_detection_forward.1} parent=39 // pred_fallthru
          _
      $region40: #{lie_detection_forward.1} parent=5 // pred_fallthru
        _
      %p361 = scmp.le.s32.totalorder 1, %s26
      %p362 = scmp.lt.s32.totalorder %s26, 3
      %p363 = pnand %p361, %p362
      %p364 = pneg %p363
      // Predicated region
      $region49: #{lie_detection_forward.1} parent=5 // pred_check
        _
      $region50: #{lie_detection_forward.1} parent=5 // pred_check_branch
        %366 = sbr.rel (%p363) target = $region52
      $region51: #{lie_detection_forward.1} parent=5 // pred_region
        %s367 = ssub.s32 %s26, 1
        %s368 = sand.u32 %s39, 1
        %s369 = scalar_lea.sflag [#allocation3], %s368
        %s370 = sand.u32 %s39, 1
        %s371 = smul.addr %s370, 72
        %s372 = scalar_lea.vmem [#allocation2], %s371
        // Predicated region
        $region53: #{lie_detection_forward.1} parent=51 // pred_check
          %p373 = pneg %p52
        $region54: #{lie_detection_forward.1} parent=51 // pred_check_branch
          %375 = sbr.rel (%p373) target = $region56
        $region55: #{lie_detection_forward.1} parent=51 // pred_region
          %376 = dma.done %s369, 1152
        $region56: #{lie_detection_forward.1} parent=51 // pred_fallthru
          _
        %s377 = sand.u32 %s31, 1
        %s378 = scalar_lea.sflag [#allocation6], %s377
        %s379 = sand.u32 %s65, 1
        %s380 = scalar_lea.vmem [#allocation5], %s379
        // Predicated region
        $region57: #{lie_detection_forward.1} parent=51 // pred_check
          %p381 = pneg %p78
        $region58: #{lie_detection_forward.1} parent=51 // pred_check_branch
          %383 = sbr.rel (%p381) target = $region60
        $region59: #{lie_detection_forward.1} parent=51 // pred_region
          %384 = dma.done %s378, 16
        $region60: #{lie_detection_forward.1} parent=51 // pred_fallthru
          _
        // Predicated region
        $region61: #{lie_detection_forward.1} parent=51 // pred_check
          %p385 = pneg %p99
        $region62: #{lie_detection_forward.1} parent=51 // pred_check_branch
          %387 = sbr.rel (%p385) target = $region64
        $region63: #{lie_detection_forward.1} parent=51 // pred_region
          %388 = dma.done [#allocation6], 39680
        $region64: #{lie_detection_forward.1} parent=51 // pred_fallthru
          _
        // Predicated region
        $region65: #{lie_detection_forward.1} parent=51 // pred_check
          %p389 = pneg %p120
        $region66: #{lie_detection_forward.1} parent=51 // pred_check_branch
          %391 = sbr.rel (%p389) target = $region68
        $region67: #{lie_detection_forward.1} parent=51 // pred_region
          %392 = dma.done [#allocation9], 1280
        $region68: #{lie_detection_forward.1} parent=51 // pred_fallthru
          _
        // Predicated region
        $region69: #{lie_detection_forward.1} parent=51 // pred_check
          %p393 = pneg %p141
        $region70: #{lie_detection_forward.1} parent=51 // pred_check_branch
          %395 = sbr.rel (%p393) target = $region72
        $region71: #{lie_detection_forward.1} parent=51 // pred_region
          %396 = dma.done [#allocation9], 7168
        $region72: #{lie_detection_forward.1} parent=51 // pred_fallthru
          _
        // Predicated region
        $region73: #{lie_detection_forward.1} parent=51 // pred_check
          %p397 = pneg %p162
        $region74: #{lie_detection_forward.1} parent=51 // pred_check_branch
          %399 = sbr.rel (%p397) target = $region76
        $region75: #{lie_detection_forward.1} parent=51 // pred_region
          %400 = dma.done [#allocation12], 1280
        $region76: #{lie_detection_forward.1} parent=51 // pred_fallthru
          _
        // Predicated region
        $region77: #{lie_detection_forward.1} parent=51 // pred_check
          %p401 = pneg %p183
        $region78: #{lie_detection_forward.1} parent=51 // pred_check_branch
          %403 = sbr.rel (%p401) target = $region80
        $region79: #{lie_detection_forward.1} parent=51 // pred_region
          %404 = dma.done [#allocation12], 256
        $region80: #{lie_detection_forward.1} parent=51 // pred_fallthru
          _
        // Predicated region
        $region81: #{lie_detection_forward.1} parent=51 // pred_check
          %p405 = pneg %p204
        $region82: #{lie_detection_forward.1} parent=51 // pred_check_branch
          %407 = sbr.rel (%p405) target = $region84
        $region83: #{lie_detection_forward.1} parent=51 // pred_region
          %408 = dma.done [#allocation15], 64
        $region84: #{lie_detection_forward.1} parent=51 // pred_fallthru
          _
        %s409 = sand.u32 %s39, 1
        %s410 = scalar_lea.sflag [#allocation3], %s409
        %s411 = sand.u32 %s39, 1
        %s412 = smul.addr %s411, 72
        %s413 = scalar_lea.vmem [#allocation2], %s412
        %p414 = pneg %p52
        %p415 = pneg %p49
        %s416 = sand.u32 %s31, 1
        %s417 = scalar_lea.sflag [#allocation6], %s416
        %s418 = sand.u32 %s65, 1
        %s419 = scalar_lea.vmem [#allocation5], %s418
        %p420 = pneg %p78
        %p421 = pneg %p75
        %p422 = pneg %p99
        %p423 = pneg %p96
        %p424 = pneg %p120
        %p425 = pneg %p117
        %p426 = pneg %p141
        %p427 = pneg %p138
        %p428 = pneg %p162
        %p429 = pneg %p159
        %p430 = pneg %p183
        %p431 = pneg %p180
        %p432 = pneg %p204
        %p433 = pneg %p201
        %p434 = pneg %p230
        %p435 = pneg %p227
        %s436 = sand.u32 %s217, 1
        %s437 = scalar_lea.sflag [#allocation4], %s436
        %s438 = sand.u32 %s217, 1
        %s439 = scalar_lea.vmem [#allocation16], %s438
        %v441 = vld [vmem:[%s372] sm:$0xff]
        %v442 = vld [vmem:[%s372 + $0x8] sm:$0xff]
        %v443 = vld [vmem:[%s372 + $0x10] sm:$0xff]
        %v444 = vld [vmem:[%s372 + $0x18] sm:$0xff]
        %v445 = vld [vmem:[%s372 + $0x20] sm:$0xff]
        %v446 = vld [vmem:[%s372 + $0x28] sm:$0xff]
        %v447 = vld [vmem:[%s372 + $0x30] sm:$0xff]
        %v448 = vld [vmem:[%s372 + $0x38] sm:$0xff]
        %v449 = vld [vmem:[%s372 + $0x40] sm:$0xff]
        %v450 = vrot.slane %v441, 1
        %v451 = vrot.slane %v442, 1
        %v452 = vrot.slane %v443, 1
        %v453 = vrot.slane %v444, 1
        %v454 = vrot.slane %v445, 1
        %v455 = vrot.slane %v446, 1
        %v456 = vrot.slane %v447, 1
        %v457 = vrot.slane %v448, 1
        %v458 = vrot.slane %v449, 1
        %v459 = vlaneseq
        %v460 = vshrl.u32 %v459, 7
        %vm461 = vcmp.lt.s32.totalorder %v460, 7
        %v462 = vsel %vm461, %v457, %v458
        %v463 = vsel %vm461, %v456, %v457
        %v464 = vsel %vm461, %v455, %v456
        %v465 = vsel %vm461, %v454, %v455
        %v466 = vsel %vm461, %v453, %v454
        %v467 = vsel %vm461, %v452, %v453
        %v468 = vsel %vm461, %v451, %v452
        %v469 = vsel %vm461, %v450, %v451
        %v470 = vsel %vm461, %v458, %v450
        %v471 = vrot.slane %v441, 2
        %v472 = vrot.slane %v442, 2
        %v473 = vrot.slane %v443, 2
        %v474 = vrot.slane %v444, 2
        %v475 = vrot.slane %v445, 2
        %v476 = vrot.slane %v446, 2
        %v477 = vrot.slane %v447, 2
        %v478 = vrot.slane %v448, 2
        %v479 = vrot.slane %v449, 2
        %vm480 = vcmp.lt.s32.totalorder %v460, 6
        %v481 = vsel %vm480, %v478, %v479
        %v482 = vsel %vm480, %v477, %v478
        %v483 = vsel %vm480, %v476, %v477
        %v484 = vsel %vm480, %v475, %v476
        %v485 = vsel %vm480, %v474, %v475
        %v486 = vsel %vm480, %v473, %v474
        %v487 = vsel %vm480, %v472, %v473
        %v488 = vsel %vm480, %v471, %v472
        %v489 = vsel %vm480, %v479, %v471
        %499 = vrot.lane.b32.xlu0 %v469, 54
        %v500 = vpop.permute.xlu0 %499
        %501 = vrot.lane.b32.xlu0 %v468, 54
        %v502 = vpop.permute.xlu0 %501
        %503 = vrot.lane.b32.xlu0 %v467, 54
        %v504 = vpop.permute.xlu0 %503
        %505 = vrot.lane.b32.xlu0 %v466, 54
        %v506 = vpop.permute.xlu0 %505
        %507 = vrot.lane.b32.xlu0 %v465, 54
        %v508 = vpop.permute.xlu0 %507
        %509 = vrot.lane.b32.xlu0 %v464, 54
        %v510 = vpop.permute.xlu0 %509
        %511 = vrot.lane.b32.xlu0 %v463, 54
        %v512 = vpop.permute.xlu0 %511
        %513 = vrot.lane.b32.xlu0 %v462, 54
        %v514 = vpop.permute.xlu0 %513
        %515 = vrot.lane.b32.xlu0 %v470, 54
        %v516 = vpop.permute.xlu0 %515
        %535 = vrot.lane.b32.xlu0 %v488, 108
        %v536 = vpop.permute.xlu0 %535
        %537 = vrot.lane.b32.xlu0 %v487, 108
        %v538 = vpop.permute.xlu0 %537
        %539 = vrot.lane.b32.xlu0 %v486, 108
        %v540 = vpop.permute.xlu0 %539
        %541 = vrot.lane.b32.xlu0 %v485, 108
        %v542 = vpop.permute.xlu0 %541
        %543 = vrot.lane.b32.xlu0 %v484, 108
        %v544 = vpop.permute.xlu0 %543
        %545 = vrot.lane.b32.xlu0 %v483, 108
        %v546 = vpop.permute.xlu0 %545
        %547 = vrot.lane.b32.xlu0 %v482, 108
        %v548 = vpop.permute.xlu0 %547
        %549 = vrot.lane.b32.xlu0 %v481, 108
        %v550 = vpop.permute.xlu0 %549
        %551 = vrot.lane.b32.xlu0 %v489, 108
        %v552 = vpop.permute.xlu0 %551
        %vm562 = vcmask 441344
        %v563 = vsel %vm562, %v441, %v500
        %v564 = vsel %vm562, %v442, %v502
        %v565 = vsel %vm562, %v443, %v504
        %v566 = vsel %vm562, %v444, %v506
        %v567 = vsel %vm562, %v445, %v508
        %v568 = vsel %vm562, %v446, %v510
        %v569 = vsel %vm562, %v447, %v512
        %v570 = vsel %vm562, %v448, %v514
        %v571 = vsel %vm562, %v449, %v516
        %vm572 = vcmask 883712
        %v573 = vsel %vm572, %v563, %v536
        %v574 = vsel %vm572, %v564, %v538
        %v575 = vsel %vm572, %v565, %v540
        %v576 = vsel %vm572, %v566, %v542
        %v577 = vsel %vm572, %v567, %v544
        %v578 = vsel %vm572, %v568, %v546
        %v579 = vsel %vm572, %v569, %v548
        %v580 = vsel %vm572, %v570, %v550
        %v581 = vsel %vm572, %v571, %v552
        %v582 = vld [vmem:[#allocation7] sm:$0xff]
        %v583 = vld [vmem:[#allocation7 + $0x8] sm:$0xff]
        %v584 = vld [vmem:[#allocation7 + $0x10] sm:$0xff]
        %v585 = vld [vmem:[#allocation7 + $0x18] sm:$0xff]
        %v586 = vld [vmem:[#allocation7 + $0x20] sm:$0xff]
        %v587 = vld [vmem:[#allocation7 + $0x28] sm:$0xff]
        %v588 = vld [vmem:[#allocation7 + $0x30] sm:$0xff]
        %v589 = vld [vmem:[#allocation7 + $0x38] sm:$0xff]
        %v590 = vld [vmem:[#allocation7 + $0x40] sm:$0xff]
        %v591 = vld [vmem:[#allocation7 + $0x48] sm:$0xff]
        %v592 = vld [vmem:[#allocation7 + $0x50] sm:$0xff]
        %v593 = vld [vmem:[#allocation7 + $0x58] sm:$0xff]
        %v594 = vld [vmem:[#allocation7 + $0x60] sm:$0xff]
        %v595 = vld [vmem:[#allocation7 + $0x68] sm:$0xff]
        %v596 = vld [vmem:[#allocation7 + $0x70] sm:$0xff]
        %v597 = vld [vmem:[#allocation7 + $0x78] sm:$0xff]
        %v598 = vld [vmem:[#allocation7 + $0x80] sm:$0xff]
        %v599 = vld [vmem:[#allocation7 + $0x88] sm:$0xff]
        %v600 = vld [vmem:[#allocation7 + $0x90] sm:$0xff]
        %v601 = vld [vmem:[#allocation7 + $0x98] sm:$0xff]
        %v602 = vld [vmem:[#allocation7 + $0xa0] sm:$0x11]
        %v603 = vpack.c.bf16 %v574, %v573
        %v604 = vpack.c.bf16 %v538, %v536
        %v605 = vpack.c.bf16 %v576, %v575
        %v606 = vpack.c.bf16 %v542, %v540
        %v607 = vpack.c.bf16 %v578, %v577
        %v608 = vpack.c.bf16 %v546, %v544
        %v609 = vpack.c.bf16 %v580, %v579
        %v610 = vpack.c.bf16 %v550, %v548
        %v611 = vpack.c.bf16 %v581, %v581
        %v612 = vpack.c.bf16 %v552, %v552
        %v613 = vld [vmem:[#allocation13] ss:$8 sm:$0x3]
        %v615 = vlaneseq
        %v616 = vshrl.u32 %v615, 7
        %v617 = vsub.s32 0, %v616
        %v618 = vrot.slane %v613, %v617
        %v619 = vlaneseq
        %v620 = vshrl.u32 %v619, 7
        %v621 = vsub.s32 1, %v620
        %v622 = vrot.slane %v613, %v621
        %v646 = vunpack.c.l.b16 %v582
        %v647 = vunpack.c.h.b16 %v582
        %v648 = vunpack.c.l.b16 %v583
        %v649 = vunpack.c.h.b16 %v583
        %v650 = vunpack.c.l.b16 %v584
        %v651 = vunpack.c.h.b16 %v584
        %v652 = vunpack.c.l.b16 %v585
        %v653 = vunpack.c.h.b16 %v585
        %v654 = vunpack.c.l.b16 %v586
        %v655 = vunpack.c.h.b16 %v586
        %v656 = vunpack.c.l.b16 %v587
        %v657 = vunpack.c.h.b16 %v587
        %v658 = vunpack.c.l.b16 %v588
        %v659 = vunpack.c.h.b16 %v588
        %v660 = vunpack.c.l.b16 %v589
        %v661 = vunpack.c.h.b16 %v589
        %v662 = vunpack.c.l.b16 %v590
        %v663 = vunpack.c.h.b16 %v590
        %v664 = vunpack.c.l.b16 %v591
        %v665 = vunpack.c.h.b16 %v591
        %v666 = vunpack.c.l.b16 %v592
        %v667 = vunpack.c.h.b16 %v592
        %v668 = vunpack.c.l.b16 %v593
        %v669 = vunpack.c.h.b16 %v593
        %v670 = vunpack.c.l.b16 %v594
        %v671 = vunpack.c.h.b16 %v594
        %v672 = vunpack.c.l.b16 %v595
        %v673 = vunpack.c.h.b16 %v595
        %v674 = vunpack.c.l.b16 %v596
        %v675 = vunpack.c.h.b16 %v596
        %v676 = vunpack.c.l.b16 %v597
        %v677 = vunpack.c.h.b16 %v597
        %v678 = vunpack.c.l.b16 %v598
        %v679 = vunpack.c.h.b16 %v598
        %v680 = vunpack.c.l.b16 %v599
        %v681 = vunpack.c.h.b16 %v599
        %v682 = vunpack.c.l.b16 %v600
        %v683 = vunpack.c.h.b16 %v600
        %v684 = vunpack.c.l.b16 %v601
        %v685 = vunpack.c.h.b16 %v601
        %v686 = vunpack.c.l.b16 %v602
        %v687 = vunpack.c.h.b16 %v602
        %v688 = vpack.c.b16 %v648, %v646
        %v689 = vpack.c.b16 %v649, %v647
        %v690 = vpack.c.b16 %v652, %v650
        %v691 = vpack.c.b16 %v653, %v651
        %v692 = vpack.c.b16 %v656, %v654
        %v693 = vpack.c.b16 %v657, %v655
        %v694 = vpack.c.b16 %v660, %v658
        %v695 = vpack.c.b16 %v661, %v659
        %v696 = vpack.c.b16 %v664, %v662
        %v697 = vpack.c.b16 %v665, %v663
        %v698 = vpack.c.b16 %v668, %v666
        %v699 = vpack.c.b16 %v669, %v667
        %v700 = vpack.c.b16 %v672, %v670
        %v701 = vpack.c.b16 %v673, %v671
        %v702 = vpack.c.b16 %v676, %v674
        %v703 = vpack.c.b16 %v677, %v675
        %v704 = vpack.c.b16 %v680, %v678
        %v705 = vpack.c.b16 %v681, %v679
        %v706 = vpack.c.b16 %v684, %v682
        %v707 = vpack.c.b16 %v685, %v683
        %v708 = vpack.c.b16 %v686, %v686
        %v709 = vpack.c.b16 %v687, %v687
        %vm730 = vcmask 277504
        %v732 = vsel %vm730, %v604, 0
        %v735 = vsel %vm730, %v606, 0
        %v738 = vsel %vm730, %v608, 0
        %v741 = vsel %vm730, %v610, 0
        %v744 = vsel %vm730, %v612, 0
        %vm746 = vcmask 1040384
        %v748 = vsel %vm746, %v708, 0
        %v751 = vsel %vm746, %v709, 0
        %753 = vmatprep.subr.bf16.mxu0 %v689
        %754 = vmatpush1.bf16.msra.mxu0 %v688
        %755 = vmatprep.subr.bf16.mxu0 %v691
        %756 = vmatpush1.bf16.msra.mxu0 %v690
        %757 = vmatprep.subr.bf16.mxu0 %v693
        %758 = vmatpush1.bf16.msra.mxu0 %v692
        %759 = vmatprep.subr.bf16.mxu0 %v695
        %760 = vmatpush1.bf16.msra.mxu0 %v694
        %761 = vmatprep.subr.bf16.mxu0 %v697
        %762 = vmatpush1.bf16.msra.mxu0 %v696
        %763 = vmatprep.subr.bf16.mxu0 %v699
        %764 = vmatpush1.bf16.msra.mxu0 %v698
        %765 = vmatprep.subr.bf16.mxu0 %v701
        %766 = vmatpush1.bf16.msra.mxu0 %v700
        %767 = vmatprep.subr.bf16.mxu0 %v703
        %768 = vmatpush1.bf16.msra.mxu0 %v702
        %769 = vmatprep.subr.bf16.mxu0 %v705
        %770 = vmatpush1.bf16.msra.mxu0 %v704
        %771 = vmatprep.subr.bf16.mxu0 %v707
        %772 = vmatpush1.bf16.msra.mxu0 %v706
        %773 = vmatprep.subr.bf16.mxu0 %v751
        %774 = vmatpush1.bf16.msra.mxu0 %v748
        %775 = vmatprep.subr.bf16.mxu0 0
        %776 = vmatpush1.bf16.msra.mxu0 0
        %777 = vmatprep.subr.bf16.mxu0 0
        %778 = vmatpush1.bf16.msra.mxu0 0
        %779 = vmatprep.subr.bf16.mxu0 0
        %780 = vmatpush1.bf16.msra.mxu0 0
        %781 = vmatprep.subr.bf16.mxu0 0
        %782 = vmatpush1.bf16.msra.mxu0 0
        %783 = vmatprep.subr.bf16.mxu0 0
        %784 = vmatpush1.bf16.msra.mxu0 0
        %785 = vmatprep.mubr.bf16.mxu0 %v732
        %786 = vmatmul.mubr.bf16.gmra.mrb[0].mxu0 %v603
        %v787 = vpop.f32.mrb[0].mxu0
        %v788 = vadd.f32 %v618, %v787
        %v789 = vpop.f32.mrb[0].mxu0
        %v790 = vadd.f32 %v622, %v789
        %v791 = vpop.f32.mrb[0].mxu0
        %v792 = vadd.f32 %v618, %v791
        %v793 = vpop.f32.mrb[0].mxu0
        %v794 = vadd.f32 %v622, %v793
        %795 = vmatprep.mubr.bf16.mxu0 %v735
        %796 = vmatmul.mubr.bf16.gmra.mrb[0].mxu0 %v605
        %v797 = vpop.f32.mrb[0].mxu0
        %v798 = vadd.f32 %v618, %v797
        %v799 = vpop.f32.mrb[0].mxu0
        %v800 = vadd.f32 %v622, %v799
        %v801 = vpop.f32.mrb[0].mxu0
        %v802 = vadd.f32 %v618, %v801
        %v803 = vpop.f32.mrb[0].mxu0
        %v804 = vadd.f32 %v622, %v803
        %805 = vmatprep.mubr.bf16.mxu0 %v738
        %806 = vmatmul.mubr.bf16.gmra.mrb[0].mxu0 %v607
        %v807 = vpop.f32.mrb[0].mxu0
        %v808 = vadd.f32 %v618, %v807
        %v809 = vpop.f32.mrb[0].mxu0
        %v810 = vadd.f32 %v622, %v809
        %v811 = vpop.f32.mrb[0].mxu0
        %v812 = vadd.f32 %v618, %v811
        %v813 = vpop.f32.mrb[0].mxu0
        %v814 = vadd.f32 %v622, %v813
        %815 = vmatprep.mubr.bf16.mxu0 %v741
        %816 = vmatmul.mubr.bf16.gmra.mrb[0].mxu0 %v609
        %v817 = vpop.f32.mrb[0].mxu0
        %v818 = vadd.f32 %v618, %v817
        %v819 = vpop.f32.mrb[0].mxu0
        %v820 = vadd.f32 %v622, %v819
        %v821 = vpop.f32.mrb[0].mxu0
        %v822 = vadd.f32 %v618, %v821
        %v823 = vpop.f32.mrb[0].mxu0
        %v824 = vadd.f32 %v622, %v823
        %825 = vmatprep.mubr.bf16.mxu0 %v744
        %826 = vmatmul.mubr.bf16.gmra.mrb[0].mxu0 %v611
        %v827 = vpop.f32.mrb[0].mxu0
        %v828 = vadd.f32 %v618, %v827
        %v829 = vpop.f32.mrb[0].mxu0
        %v830 = vadd.f32 %v622, %v829
        %v831 = vpop.f32.mrb[0].mxu0
        %v832 = vpop.f32.mrb[0].mxu0
        %833 = vdwg.mxu0
        %v834 = vmax.f32 %v788, 0.0
        %v835 = vmax.f32 %v790, 0.0
        %v836 = vmax.f32 %v792, 0.0
        %v837 = vmax.f32 %v794, 0.0
        %v838 = vmax.f32 %v798, 0.0
        %v839 = vmax.f32 %v800, 0.0
        %v840 = vmax.f32 %v802, 0.0
        %v841 = vmax.f32 %v804, 0.0
        %v842 = vmax.f32 %v808, 0.0
        %v843 = vmax.f32 %v810, 0.0
        %v844 = vmax.f32 %v812, 0.0
        %v845 = vmax.f32 %v814, 0.0
        %v846 = vmax.f32 %v818, 0.0
        %v847 = vmax.f32 %v820, 0.0
        %v848 = vmax.f32 %v822, 0.0
        %v849 = vmax.f32 %v824, 0.0
        %v850 = vmax.f32 %v828, 0.0
        %v851 = vmax.f32 %v830, 0.0
        %v852 = vrot.slane %v834, 1
        %v853 = vrot.slane %v835, 1
        %v854 = vrot.slane %v836, 1
        %v855 = vrot.slane %v837, 1
        %v856 = vrot.slane %v838, 1
        %v857 = vrot.slane %v839, 1
        %v858 = vrot.slane %v840, 1
        %v859 = vrot.slane %v841, 1
        %v860 = vrot.slane %v842, 1
        %v861 = vrot.slane %v843, 1
        %v862 = vrot.slane %v844, 1
        %v863 = vrot.slane %v845, 1
        %v864 = vrot.slane %v846, 1
        %v865 = vrot.slane %v847, 1
        %v866 = vrot.slane %v848, 1
        %v867 = vrot.slane %v849, 1
        %v868 = vrot.slane %v850, 1
        %v869 = vrot.slane %v851, 1
        %v870 = vsel %vm461, %v866, %v868
        %v871 = vsel %vm461, %v867, %v869
        %v872 = vsel %vm461, %v864, %v866
        %v873 = vsel %vm461, %v865, %v867
        %v874 = vsel %vm461, %v862, %v864
        %v875 = vsel %vm461, %v863, %v865
        %v876 = vsel %vm461, %v860, %v862
        %v877 = vsel %vm461, %v861, %v863
        %v878 = vsel %vm461, %v858, %v860
        %v879 = vsel %vm461, %v859, %v861
        %v880 = vsel %vm461, %v856, %v858
        %v881 = vsel %vm461, %v857, %v859
        %v882 = vsel %vm461, %v854, %v856
        %v883 = vsel %vm461, %v855, %v857
        %v884 = vsel %vm461, %v852, %v854
        %v885 = vsel %vm461, %v853, %v855
        %v886 = vsel %vm461, %v868, %v852
        %v887 = vsel %vm461, %v869, %v853
        %v888 = vmax.f32 %v834, %v884
        %v889 = vmax.f32 %v835, %v885
        %v890 = vmax.f32 %v836, %v882
        %v891 = vmax.f32 %v837, %v883
        %v892 = vmax.f32 %v838, %v880
        %v893 = vmax.f32 %v839, %v881
        %v894 = vmax.f32 %v840, %v878
        %v895 = vmax.f32 %v841, %v879
        %v896 = vmax.f32 %v842, %v876
        %v897 = vmax.f32 %v843, %v877
        %v898 = vmax.f32 %v844, %v874
        %v899 = vmax.f32 %v845, %v875
        %v900 = vmax.f32 %v846, %v872
        %v901 = vmax.f32 %v847, %v873
        %v902 = vmax.f32 %v848, %v870
        %v903 = vmax.f32 %v849, %v871
        %v904 = vmax.f32 %v850, %v886
        %v905 = vmax.f32 %v851, %v887
        %906 = vrot.lane.b32.xlu0 %v888, 112
        %v907 = vpop.permute.xlu0 %906
        %908 = vrot.lane.b32.xlu0 %v890, 112
        %v909 = vpop.permute.xlu0 %908
        %910 = vrot.lane.b32.xlu0 %v892, 112
        %v911 = vpop.permute.xlu0 %910
        %912 = vrot.lane.b32.xlu0 %v894, 112
        %v913 = vpop.permute.xlu0 %912
        %914 = vrot.lane.b32.xlu0 %v896, 112
        %v915 = vpop.permute.xlu0 %914
        %916 = vrot.lane.b32.xlu0 %v898, 112
        %v917 = vpop.permute.xlu0 %916
        %918 = vrot.lane.b32.xlu0 %v900, 112
        %v919 = vpop.permute.xlu0 %918
        %920 = vrot.lane.b32.xlu0 %v902, 112
        %v921 = vpop.permute.xlu0 %920
        %922 = vrot.lane.b32.xlu0 %v904, 112
        %v923 = vpop.permute.xlu0 %922
        %924 = vrot.lane.b32.xlu0 %v889, 112
        %v925 = vpop.permute.xlu0 %924
        %926 = vrot.lane.b32.xlu0 %v891, 112
        %v927 = vpop.permute.xlu0 %926
        %928 = vrot.lane.b32.xlu0 %v893, 112
        %v929 = vpop.permute.xlu0 %928
        %930 = vrot.lane.b32.xlu0 %v895, 112
        %v931 = vpop.permute.xlu0 %930
        %932 = vrot.lane.b32.xlu0 %v897, 112
        %v933 = vpop.permute.xlu0 %932
        %934 = vrot.lane.b32.xlu0 %v899, 112
        %v935 = vpop.permute.xlu0 %934
        %936 = vrot.lane.b32.xlu0 %v901, 112
        %v937 = vpop.permute.xlu0 %936
        %938 = vrot.lane.b32.xlu0 %v903, 112
        %v939 = vpop.permute.xlu0 %938
        %940 = vrot.lane.b32.xlu0 %v905, 112
        %v941 = vpop.permute.xlu0 %940
        %v942 = vlaneseq
        %v943 = vand.u32 %v942, 127
        %vm944 = vcmp.lt.s32.totalorder %v943, 112
        %v945 = vsel %vm944, %v907, %v925
        %v946 = vsel %vm944, %v909, %v927
        %v947 = vsel %vm944, %v911, %v929
        %v948 = vsel %vm944, %v913, %v931
        %v949 = vsel %vm944, %v915, %v933
        %v950 = vsel %vm944, %v917, %v935
        %v951 = vsel %vm944, %v919, %v937
        %v952 = vsel %vm944, %v921, %v939
        %v953 = vsel %vm944, %v923, %v941
        %v954 = vsel %vm944, %v925, %v907
        %v955 = vsel %vm944, %v927, %v909
        %v956 = vsel %vm944, %v929, %v911
        %v957 = vsel %vm944, %v931, %v913
        %v958 = vsel %vm944, %v933, %v915
        %v959 = vsel %vm944, %v935, %v917
        %v960 = vsel %vm944, %v937, %v919
        %v961 = vsel %vm944, %v939, %v921
        %v962 = vsel %vm944, %v941, %v923
        %v963 = vmax.f32 %v888, %v945
        %v964 = vmax.f32 %v889, %v954
        %v965 = vmax.f32 %v890, %v946
        %v966 = vmax.f32 %v891, %v955
        %v967 = vmax.f32 %v892, %v947
        %v968 = vmax.f32 %v893, %v956
        %v969 = vmax.f32 %v894, %v948
        %v970 = vmax.f32 %v895, %v957
        %v971 = vmax.f32 %v896, %v949
        %v972 = vmax.f32 %v897, %v958
        %v973 = vmax.f32 %v898, %v950
        %v974 = vmax.f32 %v899, %v959
        %v975 = vmax.f32 %v900, %v951
        %v976 = vmax.f32 %v901, %v960
        %v977 = vmax.f32 %v902, %v952
        %v978 = vmax.f32 %v903, %v961
        %v979 = vmax.f32 %v904, %v953
        %v980 = vmax.f32 %v905, %v962
        %v981 = vld [vmem:[#allocation8] sm:$0xf]
        %v982 = vld [vmem:[#allocation8 + $0x4] sm:$0xf]
        %v983 = vld [vmem:[#allocation8 + $0x8] sm:$0xf]
        %v984 = vld [vmem:[#allocation8 + $0xc] sm:$0xf]
        %v985 = vld [vmem:[#allocation8 + $0x10] sm:$0xf]
        %v986 = vpack.c.bf16 %v965, %v963
        %v987 = vpack.c.bf16 %v966, %v964
        %v988 = vpack.c.bf16 %v969, %v967
        %v989 = vpack.c.bf16 %v970, %v968
        %v990 = vpack.c.bf16 %v973, %v971
        %v991 = vpack.c.bf16 %v974, %v972
        %v992 = vpack.c.bf16 %v977, %v975
        %v993 = vpack.c.bf16 %v978, %v976
        %v994 = vpack.c.bf16 %v979, %v979
        %v995 = vpack.c.bf16 %v980, %v980
        %v1001 = vunpack.c.l.b16 %v981
        %v1002 = vunpack.c.l.b16 %v982
        %v1003 = vunpack.c.l.b16 %v983
        %v1004 = vunpack.c.l.b16 %v984
        %v1005 = vunpack.c.l.b16 %v985
        %v1006 = vpack.c.b16 %v1002, %v1001
        %v1007 = vpack.c.b16 %v1004, %v1003
        %v1008 = vpack.c.b16 %v1005, %v1005
        %vm1009 = vcmask 588800
        %v1011 = vsel %vm1009, %v1006, 0
        %v1014 = vsel %vm1009, %v1007, 0
        %v1017 = vsel %vm1009, %v1008, 0
        %vm1019 = vcmask 1043456
        %v1021 = vsel %vm1019, %v994, 0
        %v1024 = vsel %vm1019, %v995, 0
        %1026 = vmatprep.subr.bf16.mxu0 %v987
        %1027 = vmatpush1.bf16.msra.mxu0 %v986
        %1028 = vmatprep.subr.bf16.mxu0 %v989
        %1029 = vmatpush1.bf16.msra.mxu0 %v988
        %1030 = vmatprep.subr.bf16.mxu0 %v991
        %1031 = vmatpush1.bf16.msra.mxu0 %v990
        %1032 = vmatprep.subr.bf16.mxu0 %v993
        %1033 = vmatpush1.bf16.msra.mxu0 %v992
        %1034 = vmatprep.subr.bf16.mxu0 %v1024
        %1035 = vmatpush1.bf16.msra.mxu0 %v1021
        %1036 = vmatprep.subr.bf16.mxu0 0
        %1037 = vmatpush1.bf16.msra.mxu0 0
        %1038 = vmatprep.subr.bf16.mxu0 0
        %1039 = vmatpush1.bf16.msra.mxu0 0
        %1040 = vmatprep.subr.bf16.mxu0 0
        %1041 = vmatpush1.bf16.msra.mxu0 0
        %1042 = vmatprep.subr.bf16.mxu0 0
        %1043 = vmatpush1.bf16.msra.mxu0 0
        %1044 = vmatprep.subr.bf16.mxu0 0
        %1045 = vmatpush1.bf16.msra.mxu0 0
        %1046 = vmatprep.subr.bf16.mxu0 0
        %1047 = vmatpush1.bf16.msra.mxu0 0
        %1048 = vmatprep.subr.bf16.mxu0 0
        %1049 = vmatpush1.bf16.msra.mxu0 0
        %1050 = vmatprep.subr.bf16.mxu0 0
        %1051 = vmatpush1.bf16.msra.mxu0 0
        %1052 = vmatprep.subr.bf16.mxu0 0
        %1053 = vmatpush1.bf16.msra.mxu0 0
        %1054 = vmatprep.subr.bf16.mxu0 0
        %1055 = vmatpush1.bf16.msra.mxu0 0
        %1056 = vmatprep.subr.bf16.mxu0 0
        %1057 = vmatpush1.bf16.msra.mxu0 0
        %1058 = vmatprep.mubr.bf16.mxu0 0
        %1059 = vmatmul.mubr.bf16.gmra.mrb[0].mxu0 %v1011
        %v1060 = vpop.f32.mrb[0].mxu0
        %v1061 = vadd.f32 0.0, %v1060
        %v1062 = vpop.f32.mrb[0].mxu0
        %v1063 = vadd.f32 0.0, %v1062
        %v1064 = vpop.f32.mrb[0].mxu0
        %v1065 = vadd.f32 0.0, %v1064
        %v1066 = vpop.f32.mrb[0].mxu0
        %v1067 = vadd.f32 0.0, %v1066
        %1068 = vmatprep.mubr.bf16.mxu0 0
        %1069 = vmatmul.mubr.bf16.gmra.mrb[0].mxu0 %v1014
        %v1070 = vpop.f32.mrb[0].mxu0
        %v1071 = vadd.f32 0.0, %v1070
        %v1072 = vpop.f32.mrb[0].mxu0
        %v1073 = vadd.f32 0.0, %v1072
        %v1074 = vpop.f32.mrb[0].mxu0
        %v1075 = vadd.f32 0.0, %v1074
        %v1076 = vpop.f32.mrb[0].mxu0
        %v1077 = vadd.f32 0.0, %v1076
        %1078 = vmatprep.mubr.bf16.mxu0 0
        %1079 = vmatmul.mubr.bf16.gmra.mrb[0].mxu0 %v1017
        %v1080 = vpop.f32.mrb[0].mxu0
        %v1081 = vadd.f32 0.0, %v1080
        %v1082 = vpop.f32.mrb[0].mxu0
        %v1083 = vadd.f32 0.0, %v1082
        %v1084 = vpop.f32.mrb[0].mxu0
        %v1085 = vpop.f32.mrb[0].mxu0
        %1086 = vdwg.mxu0
        %v1087 = vrot.slane %v1061, 1
        %v1088 = vrot.slane %v1063, 1
        %v1089 = vrot.slane %v1065, 1
        %v1090 = vrot.slane %v1067, 1
        %v1091 = vrot.slane %v1071, 1
        %v1092 = vrot.slane %v1073, 1
        %v1093 = vrot.slane %v1075, 1
        %v1094 = vrot.slane %v1077, 1
        %v1095 = vrot.slane %v1081, 1
        %v1096 = vrot.slane %v1083, 1
        %v1097 = vsel %vm461, %v1093, %v1095
        %v1098 = vsel %vm461, %v1094, %v1096
        %v1099 = vsel %vm461, %v1091, %v1093
        %v1100 = vsel %vm461, %v1092, %v1094
        %v1101 = vsel %vm461, %v1089, %v1091
        %v1102 = vsel %vm461, %v1090, %v1092
        %v1103 = vsel %vm461, %v1087, %v1089
        %v1104 = vsel %vm461, %v1088, %v1090
        %v1105 = vsel %vm461, %v1095, %v1087
        %v1106 = vsel %vm461, %v1096, %v1088
        %v1107 = vrot.slane %v1061, 2
        %v1108 = vrot.slane %v1063, 2
        %v1109 = vrot.slane %v1065, 2
        %v1110 = vrot.slane %v1067, 2
        %v1111 = vrot.slane %v1071, 2
        %v1112 = vrot.slane %v1073, 2
        %v1113 = vrot.slane %v1075, 2
        %v1114 = vrot.slane %v1077, 2
        %v1115 = vrot.slane %v1081, 2
        %v1116 = vrot.slane %v1083, 2
        %v1117 = vsel %vm480, %v1113, %v1115
        %v1118 = vsel %vm480, %v1114, %v1116
        %v1119 = vsel %vm480, %v1111, %v1113
        %v1120 = vsel %vm480, %v1112, %v1114
        %v1121 = vsel %vm480, %v1109, %v1111
        %v1122 = vsel %vm480, %v1110, %v1112
        %v1123 = vsel %vm480, %v1107, %v1109
        %v1124 = vsel %vm480, %v1108, %v1110
        %v1125 = vsel %vm480, %v1115, %v1107
        %v1126 = vsel %vm480, %v1116, %v1108
        %v1127 = vld [vmem:[#allocation7 + $0xb0] sm:$0xff]
        %v1128 = vld [vmem:[#allocation7 + $0xb8] sm:$0xff]
        %v1129 = vld [vmem:[#allocation7 + $0xc0] sm:$0xff]
        %v1130 = vld [vmem:[#allocation7 + $0xc8] sm:$0xff]
        %v1131 = vld [vmem:[#allocation7 + $0xd0] sm:$0xff]
        %v1132 = vld [vmem:[#allocation7 + $0xd8] sm:$0xff]
        %v1133 = vld [vmem:[#allocation7 + $0xe0] sm:$0xff]
        %v1134 = vld [vmem:[#allocation7 + $0xe8] sm:$0xff]
        %v1135 = vld [vmem:[#allocation7 + $0xf0] sm:$0xff]
        %v1136 = vld [vmem:[#allocation7 + $0xf8] sm:$0xff]
        %v1137 = vld [vmem:[#allocation7 + $0x100] sm:$0xff]
        %v1138 = vld [vmem:[#allocation7 + $0x108] sm:$0xff]
        %v1139 = vld [vmem:[#allocation7 + $0x110] sm:$0xff]
        %v1140 = vld [vmem:[#allocation7 + $0x118] sm:$0xff]
        %v1141 = vld [vmem:[#allocation7 + $0x120] sm:$0xff]
        %v1142 = vld [vmem:[#allocation7 + $0x128] sm:$0xff]
        %v1143 = vld [vmem:[#allocation7 + $0x130] sm:$0xff]
        %v1144 = vld [vmem:[#allocation7 + $0x138] sm:$0xff]
        %v1145 = vld [vmem:[#allocation7 + $0x140] sm:$0xff]
        %v1146 = vld [vmem:[#allocation7 + $0x148] sm:$0xff]
        %v1147 = vld [vmem:[#allocation7 + $0x150] sm:$0xff]
        %v1148 = vld [vmem:[#allocation7 + $0x158] sm:$0xff]
        %v1149 = vld [vmem:[#allocation7 + $0x160] sm:$0xff]
        %v1150 = vld [vmem:[#allocation7 + $0x168] sm:$0xff]
        %v1151 = vld [vmem:[#allocation7 + $0x170] sm:$0xff]
        %v1152 = vld [vmem:[#allocation7 + $0x178] sm:$0xff]
        %v1153 = vld [vmem:[#allocation7 + $0x180] sm:$0xff]
        %v1154 = vld [vmem:[#allocation7 + $0x188] sm:$0xff]
        %v1155 = vld [vmem:[#allocation7 + $0x190] sm:$0xff]
        %v1156 = vld [vmem:[#allocation7 + $0x198] sm:$0xff]
        %v1157 = vld [vmem:[#allocation7 + $0x1a0] sm:$0xff]
        %v1158 = vld [vmem:[#allocation7 + $0x1a8] sm:$0xff]
        %v1159 = vld [vmem:[#allocation7 + $0x1b0] sm:$0xff]
        %v1160 = vld [vmem:[#allocation7 + $0x1b8] sm:$0xff]
        %v1161 = vld [vmem:[#allocation7 + $0x1c0] sm:$0xff]
        %v1162 = vld [vmem:[#allocation7 + $0x1c8] sm:$0xff]
        %v1163 = vld [vmem:[#allocation7 + $0x1d0] sm:$0xff]
        %v1164 = vld [vmem:[#allocation7 + $0x1d8] sm:$0xff]
        %v1165 = vld [vmem:[#allocation7 + $0x1e0] sm:$0xff]
        %v1166 = vld [vmem:[#allocation7 + $0x1e8] sm:$0xff]
        %v1167 = vld [vmem:[#allocation7 + $0x1f0] sm:$0xff]
        %v1168 = vld [vmem:[#allocation7 + $0x1f8] sm:$0xff]
        %v1169 = vld [vmem:[#allocation7 + $0x200] sm:$0xff]
        %v1170 = vld [vmem:[#allocation7 + $0x208] sm:$0xff]
        %v1171 = vld [vmem:[#allocation7 + $0x210] sm:$0xff]
        %v1172 = vld [vmem:[#allocation7 + $0x218] sm:$0xff]
        %v1173 = vld [vmem:[#allocation7 + $0x220] sm:$0xff]
        %v1174 = vld [vmem:[#allocation7 + $0x228] sm:$0xff]
        %v1175 = vld [vmem:[#allocation7 + $0x230] sm:$0xff]
        %v1176 = vld [vmem:[#allocation7 + $0x238] sm:$0xff]
        %v1177 = vld [vmem:[#allocation7 + $0x240] sm:$0xff]
        %v1178 = vld [vmem:[#allocation7 + $0x248] sm:$0xff]
        %v1179 = vld [vmem:[#allocation7 + $0x250] sm:$0xff]
        %v1180 = vld [vmem:[#allocation7 + $0x258] sm:$0xff]
        %v1181 = vld [vmem:[#allocation7 + $0x260] sm:$0xff]
        %v1182 = vld [vmem:[#allocation7 + $0x268] sm:$0xff]
        %v1183 = vld [vmem:[#allocation7 + $0x270] sm:$0xff]
        %v1184 = vld [vmem:[#allocation7 + $0x278] sm:$0xff]
        %v1185 = vld [vmem:[#allocation7 + $0x280] sm:$0xff]
        %v1186 = vld [vmem:[#allocation7 + $0x288] sm:$0xff]
        %v1187 = vld [vmem:[#allocation7 + $0x290] sm:$0xff]
        %v1188 = vld [vmem:[#allocation7 + $0x298] sm:$0xff]
        %v1189 = vld [vmem:[#allocation7 + $0x2a0] sm:$0xff]
        %v1190 = vld [vmem:[#allocation7 + $0x2a8] sm:$0xff]
        %v1191 = vld [vmem:[#allocation7 + $0x2b0] sm:$0xff]
        %v1192 = vld [vmem:[#allocation7 + $0x2b8] sm:$0xff]
        %v1193 = vld [vmem:[#allocation7 + $0x2c0] sm:$0xff]
        %v1194 = vld [vmem:[#allocation7 + $0x2c8] sm:$0xff]
        %v1195 = vld [vmem:[#allocation7 + $0x2d0] sm:$0xff]
        %v1196 = vld [vmem:[#allocation7 + $0x2d8] sm:$0xff]
        %v1197 = vld [vmem:[#allocation7 + $0x2e0] sm:$0xff]
        %v1198 = vld [vmem:[#allocation7 + $0x2e8] sm:$0xff]
        %v1199 = vld [vmem:[#allocation7 + $0x2f0] sm:$0xff]
        %v1200 = vld [vmem:[#allocation7 + $0x2f8] sm:$0xff]
        %v1201 = vld [vmem:[#allocation7 + $0x300] sm:$0xff]
        %v1202 = vld [vmem:[#allocation7 + $0x308] sm:$0xff]
        %v1203 = vld [vmem:[#allocation7 + $0x310] sm:$0xff]
        %v1204 = vld [vmem:[#allocation7 + $0x318] sm:$0xff]
        %v1205 = vld [vmem:[#allocation7 + $0x320] sm:$0xff]
        %v1206 = vld [vmem:[#allocation7 + $0x328] sm:$0xff]
        %v1207 = vld [vmem:[#allocation7 + $0x330] sm:$0xff]
        %v1208 = vld [vmem:[#allocation7 + $0x338] sm:$0xff]
        %v1209 = vld [vmem:[#allocation7 + $0x340] sm:$0xff]
        %v1210 = vld [vmem:[#allocation7 + $0x348] sm:$0xff]
        %v1211 = vld [vmem:[#allocation7 + $0x350] sm:$0xff]
        %v1212 = vld [vmem:[#allocation7 + $0x358] sm:$0xff]
        %v1213 = vld [vmem:[#allocation7 + $0x360] sm:$0xff]
        %v1214 = vld [vmem:[#allocation7 + $0x368] sm:$0xff]
        %v1215 = vld [vmem:[#allocation7 + $0x370] sm:$0xff]
        %v1216 = vld [vmem:[#allocation7 + $0x378] sm:$0xff]
        %v1217 = vld [vmem:[#allocation7 + $0x380] sm:$0xff]
        %v1218 = vld [vmem:[#allocation7 + $0x388] sm:$0xff]
        %v1219 = vld [vmem:[#allocation7 + $0x390] sm:$0xff]
        %v1220 = vld [vmem:[#allocation7 + $0x398] sm:$0xff]
        %v1221 = vld [vmem:[#allocation7 + $0x3a0] sm:$0xff]
        %v1222 = vld [vmem:[#allocation7 + $0x3a8] sm:$0xff]
        %v1223 = vpack.c.bf16 %v1065, %v1061
        %v1224 = vpack.c.bf16 %v1067, %v1063
        %v1225 = vpack.c.bf16 %v1101, %v1103
        %v1226 = vpack.c.bf16 %v1102, %v1104
        %v1227 = vpack.c.bf16 %v1121, %v1123
        %v1228 = vpack.c.bf16 %v1122, %v1124
        %v1229 = vpack.c.bf16 %v1075, %v1071
        %v1230 = vpack.c.bf16 %v1077, %v1073
        %v1231 = vpack.c.bf16 %v1097, %v1099
        %v1232 = vpack.c.bf16 %v1098, %v1100
        %v1233 = vpack.c.bf16 %v1117, %v1119
        %v1234 = vpack.c.bf16 %v1118, %v1120
        %v1235 = vpack.c.bf16 %v1081, %v1081
        %v1236 = vpack.c.bf16 %v1083, %v1083
        %v1237 = vpack.c.bf16 %v1105, %v1105
        %v1238 = vpack.c.bf16 %v1106, %v1106
        %v1239 = vpack.c.bf16 %v1125, %v1125
        %v1240 = vpack.c.bf16 %v1126, %v1126
        %s1241 = scalar_lea.vmem [#allocation13], 1
        %v1242 = vld [vmem:[%s1241] ss:$8 sm:$0x3]
        %v1244 = vlaneseq
        %v1245 = vshrl.u32 %v1244, 7
        %v1246 = vsub.s32 0, %v1245
        %v1247 = vrot.slane %v1242, %v1246
        %v1248 = vlaneseq
        %v1249 = vshrl.u32 %v1248, 7
        %v1250 = vsub.s32 1, %v1249
        %v1251 = vrot.slane %v1242, %v1250
        %v1350 = vunpack.c.l.b16 %v1127
        %v1351 = vunpack.c.h.b16 %v1127
        %v1352 = vunpack.c.l.b16 %v1128
        %v1353 = vunpack.c.h.b16 %v1128
        %v1354 = vunpack.c.l.b16 %v1129
        %v1355 = vunpack.c.h.b16 %v1129
        %v1356 = vunpack.c.l.b16 %v1130
        %v1357 = vunpack.c.h.b16 %v1130
        %v1358 = vunpack.c.l.b16 %v1131
        %v1359 = vunpack.c.h.b16 %v1131
        %v1360 = vunpack.c.l.b16 %v1132
        %v1361 = vunpack.c.h.b16 %v1132
        %v1362 = vunpack.c.l.b16 %v1133
        %v1363 = vunpack.c.h.b16 %v1133
        %v1364 = vunpack.c.l.b16 %v1134
        %v1365 = vunpack.c.h.b16 %v1134
        %v1366 = vunpack.c.l.b16 %v1135
        %v1367 = vunpack.c.h.b16 %v1135
        %v1368 = vunpack.c.l.b16 %v1136
        %v1369 = vunpack.c.h.b16 %v1136
        %v1370 = vunpack.c.l.b16 %v1137
        %v1371 = vunpack.c.h.b16 %v1137
        %v1372 = vunpack.c.l.b16 %v1138
        %v1373 = vunpack.c.h.b16 %v1138
        %v1374 = vunpack.c.l.b16 %v1139
        %v1375 = vunpack.c.h.b16 %v1139
        %v1376 = vunpack.c.l.b16 %v1140
        %v1377 = vunpack.c.h.b16 %v1140
        %v1378 = vunpack.c.l.b16 %v1141
        %v1379 = vunpack.c.h.b16 %v1141
        %v1380 = vunpack.c.l.b16 %v1142
        %v1381 = vunpack.c.h.b16 %v1142
        %v1382 = vunpack.c.l.b16 %v1143
        %v1383 = vunpack.c.h.b16 %v1143
        %v1384 = vunpack.c.l.b16 %v1144
        %v1385 = vunpack.c.h.b16 %v1144
        %v1386 = vunpack.c.l.b16 %v1145
        %v1387 = vunpack.c.h.b16 %v1145
        %v1388 = vunpack.c.l.b16 %v1146
        %v1389 = vunpack.c.h.b16 %v1146
        %v1390 = vunpack.c.l.b16 %v1147
        %v1391 = vunpack.c.h.b16 %v1147
        %v1392 = vunpack.c.l.b16 %v1148
        %v1393 = vunpack.c.h.b16 %v1148
        %v1394 = vunpack.c.l.b16 %v1149
        %v1395 = vunpack.c.h.b16 %v1149
        %v1396 = vunpack.c.l.b16 %v1150
        %v1397 = vunpack.c.h.b16 %v1150
        %v1398 = vunpack.c.l.b16 %v1151
        %v1399 = vunpack.c.h.b16 %v1151
        %v1400 = vunpack.c.l.b16 %v1152
        %v1401 = vunpack.c.h.b16 %v1152
        %v1402 = vunpack.c.l.b16 %v1153
        %v1403 = vunpack.c.h.b16 %v1153
        %v1404 = vunpack.c.l.b16 %v1154
        %v1405 = vunpack.c.h.b16 %v1154
        %v1406 = vunpack.c.l.b16 %v1155
        %v1407 = vunpack.c.h.b16 %v1155
        %v1408 = vunpack.c.l.b16 %v1156
        %v1409 = vunpack.c.h.b16 %v1156
        %v1410 = vunpack.c.l.b16 %v1157
        %v1411 = vunpack.c.h.b16 %v1157
        %v1412 = vunpack.c.l.b16 %v1158
        %v1413 = vunpack.c.h.b16 %v1158
        %v1414 = vunpack.c.l.b16 %v1159
        %v1415 = vunpack.c.h.b16 %v1159
        %v1416 = vunpack.c.l.b16 %v1160
        %v1417 = vunpack.c.h.b16 %v1160
        %v1418 = vunpack.c.l.b16 %v1161
        %v1419 = vunpack.c.h.b16 %v1161
        %v1420 = vunpack.c.l.b16 %v1162
        %v1421 = vunpack.c.h.b16 %v1162
        %v1422 = vunpack.c.l.b16 %v1163
        %v1423 = vunpack.c.h.b16 %v1163
        %v1424 = vunpack.c.l.b16 %v1164
        %v1425 = vunpack.c.h.b16 %v1164
        %v1426 = vunpack.c.l.b16 %v1165
        %v1427 = vunpack.c.h.b16 %v1165
        %v1428 = vunpack.c.l.b16 %v1166
        %v1429 = vunpack.c.h.b16 %v1166
        %v1430 = vunpack.c.l.b16 %v1167
        %v1431 = vunpack.c.h.b16 %v1167
        %v1432 = vunpack.c.l.b16 %v1168
        %v1433 = vunpack.c.h.b16 %v1168
        %v1434 = vunpack.c.l.b16 %v1169
        %v1435 = vunpack.c.h.b16 %v1169
        %v1436 = vunpack.c.l.b16 %v1170
        %v1437 = vunpack.c.h.b16 %v1170
        %v1438 = vunpack.c.l.b16 %v1171
        %v1439 = vunpack.c.h.b16 %v1171
        %v1440 = vunpack.c.l.b16 %v1172
        %v1441 = vunpack.c.h.b16 %v1172
        %v1442 = vunpack.c.l.b16 %v1173
        %v1443 = vunpack.c.h.b16 %v1173
        %v1444 = vunpack.c.l.b16 %v1174
        %v1445 = vunpack.c.h.b16 %v1174
        %v1446 = vunpack.c.l.b16 %v1175
        %v1447 = vunpack.c.h.b16 %v1175
        %v1448 = vunpack.c.l.b16 %v1176
        %v1449 = vunpack.c.h.b16 %v1176
        %v1450 = vunpack.c.l.b16 %v1177
        %v1451 = vunpack.c.h.b16 %v1177
        %v1452 = vunpack.c.l.b16 %v1178
        %v1453 = vunpack.c.h.b16 %v1178
        %v1454 = vunpack.c.l.b16 %v1179
        %v1455 = vunpack.c.h.b16 %v1179
        %v1456 = vunpack.c.l.b16 %v1180
        %v1457 = vunpack.c.h.b16 %v1180
        %v1458 = vunpack.c.l.b16 %v1181
        %v1459 = vunpack.c.h.b16 %v1181
        %v1460 = vunpack.c.l.b16 %v1182
        %v1461 = vunpack.c.h.b16 %v1182
        %v1462 = vunpack.c.l.b16 %v1183
        %v1463 = vunpack.c.h.b16 %v1183
        %v1464 = vunpack.c.l.b16 %v1184
        %v1465 = vunpack.c.h.b16 %v1184
        %v1466 = vunpack.c.l.b16 %v1185
        %v1467 = vunpack.c.h.b16 %v1185
        %v1468 = vunpack.c.l.b16 %v1186
        %v1469 = vunpack.c.h.b16 %v1186
        %v1470 = vunpack.c.l.b16 %v1187
        %v1471 = vunpack.c.h.b16 %v1187
        %v1472 = vunpack.c.l.b16 %v1188
        %v1473 = vunpack.c.h.b16 %v1188
        %v1474 = vunpack.c.l.b16 %v1189
        %v1475 = vunpack.c.h.b16 %v1189
        %v1476 = vunpack.c.l.b16 %v1190
        %v1477 = vunpack.c.h.b16 %v1190
        %v1478 = vunpack.c.l.b16 %v1191
        %v1479 = vunpack.c.h.b16 %v1191
        %v1480 = vunpack.c.l.b16 %v1192
        %v1481 = vunpack.c.h.b16 %v1192
        %v1482 = vunpack.c.l.b16 %v1193
        %v1483 = vunpack.c.h.b16 %v1193
        %v1484 = vunpack.c.l.b16 %v1194
        %v1485 = vunpack.c.h.b16 %v1194
        %v1486 = vunpack.c.l.b16 %v1195
        %v1487 = vunpack.c.h.b16 %v1195
        %v1488 = vunpack.c.l.b16 %v1196
        %v1489 = vunpack.c.h.b16 %v1196
        %v1490 = vunpack.c.l.b16 %v1197
        %v1491 = vunpack.c.h.b16 %v1197
        %v1492 = vunpack.c.l.b16 %v1198
        %v1493 = vunpack.c.h.b16 %v1198
        %v1494 = vunpack.c.l.b16 %v1199
        %v1495 = vunpack.c.h.b16 %v1199
        %v1496 = vunpack.c.l.b16 %v1200
        %v1497 = vunpack.c.h.b16 %v1200
        %v1498 = vunpack.c.l.b16 %v1201
        %v1499 = vunpack.c.h.b16 %v1201
        %v1500 = vunpack.c.l.b16 %v1202
        %v1501 = vunpack.c.h.b16 %v1202
        %v1502 = vunpack.c.l.b16 %v1203
        %v1503 = vunpack.c.h.b16 %v1203
        %v1504 = vunpack.c.l.b16 %v1204
        %v1505 = vunpack.c.h.b16 %v1204
        %v1506 = vunpack.c.l.b16 %v1205
        %v1507 = vunpack.c.h.b16 %v1205
        %v1508 = vunpack.c.l.b16 %v1206
        %v1509 = vunpack.c.h.b16 %v1206
        %v1510 = vunpack.c.l.b16 %v1207
        %v1511 = vunpack.c.h.b16 %v1207
        %v1512 = vunpack.c.l.b16 %v1208
        %v1513 = vunpack.c.h.b16 %v1208
        %v1514 = vunpack.c.l.b16 %v1209
        %v1515 = vunpack.c.h.b16 %v1209
        %v1516 = vunpack.c.l.b16 %v1210
        %v1517 = vunpack.c.h.b16 %v1210
        %v1518 = vunpack.c.l.b16 %v1211
        %v1519 = vunpack.c.h.b16 %v1211
        %v1520 = vunpack.c.l.b16 %v1212
        %v1521 = vunpack.c.h.b16 %v1212
        %v1522 = vunpack.c.l.b16 %v1213
        %v1523 = vunpack.c.h.b16 %v1213
        %v1524 = vunpack.c.l.b16 %v1214
        %v1525 = vunpack.c.h.b16 %v1214
        %v1526 = vunpack.c.l.b16 %v1215
        %v1527 = vunpack.c.h.b16 %v1215
        %v1528 = vunpack.c.l.b16 %v1216
        %v1529 = vunpack.c.h.b16 %v1216
        %v1530 = vunpack.c.l.b16 %v1217
        %v1531 = vunpack.c.h.b16 %v1217
        %v1532 = vunpack.c.l.b16 %v1218
        %v1533 = vunpack.c.h.b16 %v1218
        %v1534 = vunpack.c.l.b16 %v1219
        %v1535 = vunpack.c.h.b16 %v1219
        %v1536 = vunpack.c.l.b16 %v1220
        %v1537 = vunpack.c.h.b16 %v1220
        %v1538 = vunpack.c.l.b16 %v1221
        %v1539 = vunpack.c.h.b16 %v1221
        %v1540 = vunpack.c.l.b16 %v1222
        %v1541 = vunpack.c.h.b16 %v1222
        %v1542 = vpack.c.b16 %v1352, %v1350
        %v1543 = vpack.c.b16 %v1353, %v1351
        %v1544 = vpack.c.b16 %v1356, %v1354
        %v1545 = vpack.c.b16 %v1357, %v1355
        %v1546 = vpack.c.b16 %v1360, %v1358
        %v1547 = vpack.c.b16 %v1361, %v1359
        %v1548 = vpack.c.b16 %v1364, %v1362
        %v1549 = vpack.c.b16 %v1365, %v1363
        %v1550 = vpack.c.b16 %v1368, %v1366
        %v1551 = vpack.c.b16 %v1369, %v1367
        %v1552 = vpack.c.b16 %v1372, %v1370
        %v1553 = vpack.c.b16 %v1373, %v1371
        %v1554 = vpack.c.b16 %v1376, %v1374
        %v1555 = vpack.c.b16 %v1377, %v1375
        %v1556 = vpack.c.b16 %v1380, %v1378
        %v1557 = vpack.c.b16 %v1381, %v1379
        %v1558 = vpack.c.b16 %v1384, %v1382
        %v1559 = vpack.c.b16 %v1385, %v1383
        %v1560 = vpack.c.b16 %v1388, %v1386
        %v1561 = vpack.c.b16 %v1389, %v1387
        %v1562 = vpack.c.b16 %v1392, %v1390
        %v1563 = vpack.c.b16 %v1393, %v1391
        %v1564 = vpack.c.b16 %v1396, %v1394
        %v1565 = vpack.c.b16 %v1397, %v1395
        %v1566 = vpack.c.b16 %v1400, %v1398
        %v1567 = vpack.c.b16 %v1401, %v1399
        %v1568 = vpack.c.b16 %v1404, %v1402
        %v1569 = vpack.c.b16 %v1405, %v1403
        %v1570 = vpack.c.b16 %v1408, %v1406
        %v1571 = vpack.c.b16 %v1409, %v1407
        %v1572 = vpack.c.b16 %v1412, %v1410
        %v1573 = vpack.c.b16 %v1413, %v1411
        %v1574 = vpack.c.b16 %v1416, %v1414
        %v1575 = vpack.c.b16 %v1417, %v1415
        %v1576 = vpack.c.b16 %v1420, %v1418
        %v1577 = vpack.c.b16 %v1421, %v1419
        %v1578 = vpack.c.b16 %v1424, %v1422
        %v1579 = vpack.c.b16 %v1425, %v1423
        %v1580 = vpack.c.b16 %v1428, %v1426
        %v1581 = vpack.c.b16 %v1429, %v1427
        %v1582 = vpack.c.b16 %v1432, %v1430
        %v1583 = vpack.c.b16 %v1433, %v1431
        %v1584 = vpack.c.b16 %v1436, %v1434
        %v1585 = vpack.c.b16 %v1437, %v1435
        %v1586 = vpack.c.b16 %v1440, %v1438
        %v1587 = vpack.c.b16 %v1441, %v1439
        %v1588 = vpack.c.b16 %v1444, %v1442
        %v1589 = vpack.c.b16 %v1445, %v1443
        %v1590 = vpack.c.b16 %v1448, %v1446
        %v1591 = vpack.c.b16 %v1449, %v1447
        %v1592 = vpack.c.b16 %v1452, %v1450
        %v1593 = vpack.c.b16 %v1453, %v1451
        %v1594 = vpack.c.b16 %v1456, %v1454
        %v1595 = vpack.c.b16 %v1457, %v1455
        %v1596 = vpack.c.b16 %v1460, %v1458
        %v1597 = vpack.c.b16 %v1461, %v1459
        %v1598 = vpack.c.b16 %v1464, %v1462
        %v1599 = vpack.c.b16 %v1465, %v1463
        %v1600 = vpack.c.b16 %v1468, %v1466
        %v1601 = vpack.c.b16 %v1469, %v1467
        %v1602 = vpack.c.b16 %v1472, %v1470
        %v1603 = vpack.c.b16 %v1473, %v1471
        %v1604 = vpack.c.b16 %v1476, %v1474
        %v1605 = vpack.c.b16 %v1477, %v1475
        %v1606 = vpack.c.b16 %v1480, %v1478
        %v1607 = vpack.c.b16 %v1481, %v1479
        %v1608 = vpack.c.b16 %v1484, %v1482
        %v1609 = vpack.c.b16 %v1485, %v1483
        %v1610 = vpack.c.b16 %v1488, %v1486
        %v1611 = vpack.c.b16 %v1489, %v1487
        %v1612 = vpack.c.b16 %v1492, %v1490
        %v1613 = vpack.c.b16 %v1493, %v1491
        %v1614 = vpack.c.b16 %v1496, %v1494
        %v1615 = vpack.c.b16 %v1497, %v1495
        %v1616 = vpack.c.b16 %v1500, %v1498
        %v1617 = vpack.c.b16 %v1501, %v1499
        %v1618 = vpack.c.b16 %v1504, %v1502
        %v1619 = vpack.c.b16 %v1505, %v1503
        %v1620 = vpack.c.b16 %v1508, %v1506
        %v1621 = vpack.c.b16 %v1509, %v1507
        %v1622 = vpack.c.b16 %v1512, %v1510
        %v1623 = vpack.c.b16 %v1513, %v1511
        %v1624 = vpack.c.b16 %v1516, %v1514
        %v1625 = vpack.c.b16 %v1517, %v1515
        %v1626 = vpack.c.b16 %v1520, %v1518
        %v1627 = vpack.c.b16 %v1521, %v1519
        %v1628 = vpack.c.b16 %v1524, %v1522
        %v1629 = vpack.c.b16 %v1525, %v1523
        %v1630 = vpack.c.b16 %v1528, %v1526
        %v1631 = vpack.c.b16 %v1529, %v1527
        %v1632 = vpack.c.b16 %v1532, %v1530
        %v1633 = vpack.c.b16 %v1533, %v1531
        %v1634 = vpack.c.b16 %v1536, %v1534
        %v1635 = vpack.c.b16 %v1537, %v1535
        %v1636 = vpack.c.b16 %v1540, %v1538
        %v1637 = vpack.c.b16 %v1541, %v1539
        %1734 = vmatprep.subr.bf16.mxu0 %v1543
        %1735 = vmatpush1.bf16.msra.mxu0 %v1542
        %1736 = vmatprep.subr.bf16.mxu0 %v1545
        %1737 = vmatpush1.bf16.msra.mxu0 %v1544
        %1738 = vmatprep.subr.bf16.mxu0 %v1547
        %1739 = vmatpush1.bf16.msra.mxu0 %v1546
        %1740 = vmatprep.subr.bf16.mxu0 %v1549
        %1741 = vmatpush1.bf16.msra.mxu0 %v1548
        %1742 = vmatprep.subr.bf16.mxu0 %v1551
        %1743 = vmatpush1.bf16.msra.mxu0 %v1550
        %1744 = vmatprep.subr.bf16.mxu0 %v1553
        %1745 = vmatpush1.bf16.msra.mxu0 %v1552
        %1746 = vmatprep.subr.bf16.mxu0 %v1555
        %1747 = vmatpush1.bf16.msra.mxu0 %v1554
        %1748 = vmatprep.subr.bf16.mxu0 %v1557
        %1749 = vmatpush1.bf16.msra.mxu0 %v1556
        %1750 = vmatprep.subr.bf16.mxu0 %v1559
        %1751 = vmatpush1.bf16.msra.mxu0 %v1558
        %1752 = vmatprep.subr.bf16.mxu0 %v1561
        %1753 = vmatpush1.bf16.msra.mxu0 %v1560
        %1754 = vmatprep.subr.bf16.mxu0 %v1563
        %1755 = vmatpush1.bf16.msra.mxu0 %v1562
        %1756 = vmatprep.subr.bf16.mxu0 %v1565
        %1757 = vmatpush1.bf16.msra.mxu0 %v1564
        %1758 = vmatprep.subr.bf16.mxu0 %v1567
        %1759 = vmatpush1.bf16.msra.mxu0 %v1566
        %1760 = vmatprep.subr.bf16.mxu0 %v1569
        %1761 = vmatpush1.bf16.msra.mxu0 %v1568
        %1762 = vmatprep.subr.bf16.mxu0 %v1571
        %1763 = vmatpush1.bf16.msra.mxu0 %v1570
        %1764 = vmatprep.subr.bf16.mxu0 %v1573
        %1765 = vmatpush1.bf16.msra.mxu0 %v1572
        %1766 = vmatprep.mubr.bf16.mxu0 %v1224
        %1767 = vmatmul.mubr.bf16.gmra.mrb[0].mxu0 %v1223
        %v1768 = vpop.f32.mrb[0].mxu0
        %v1769 = vadd.f32 %v1247, %v1768
        %v1770 = vpop.f32.mrb[0].mxu0
        %v1771 = vadd.f32 %v1251, %v1770
        %v1772 = vpop.f32.mrb[0].mxu0
        %v1773 = vadd.f32 %v1247, %v1772
        %v1774 = vpop.f32.mrb[0].mxu0
        %v1775 = vadd.f32 %v1251, %v1774
        %1776 = vmatprep.mubr.bf16.mxu0 %v1230
        %1777 = vmatmul.mubr.bf16.gmra.mrb[0].mxu0 %v1229
        %v1778 = vpop.f32.mrb[0].mxu0
        %v1779 = vadd.f32 %v1247, %v1778
        %v1780 = vpop.f32.mrb[0].mxu0
        %v1781 = vadd.f32 %v1251, %v1780
        %v1782 = vpop.f32.mrb[0].mxu0
        %v1783 = vadd.f32 %v1247, %v1782
        %v1784 = vpop.f32.mrb[0].mxu0
        %v1785 = vadd.f32 %v1251, %v1784
        %1786 = vmatprep.mubr.bf16.mxu0 %v1236
        %1787 = vmatmul.mubr.bf16.gmra.mrb[0].mxu0 %v1235
        %v1788 = vpop.f32.mrb[0].mxu0
        %v1789 = vadd.f32 %v1247, %v1788
        %v1790 = vpop.f32.mrb[0].mxu0
        %v1791 = vadd.f32 %v1251, %v1790
        %v1792 = vpop.f32.mrb[0].mxu0
        %v1793 = vpop.f32.mrb[0].mxu0
        %1794 = vdwg.mxu0
        %1795 = vmatprep.subr.bf16.mxu0 %v1575
        %1796 = vmatpush1.bf16.msra.mxu0 %v1574
        %1797 = vmatprep.subr.bf16.mxu0 %v1577
        %1798 = vmatpush1.bf16.msra.mxu0 %v1576
        %1799 = vmatprep.subr.bf16.mxu0 %v1579
        %1800 = vmatpush1.bf16.msra.mxu0 %v1578
        %1801 = vmatprep.subr.bf16.mxu0 %v1581
        %1802 = vmatpush1.bf16.msra.mxu0 %v1580
        %1803 = vmatprep.subr.bf16.mxu0 %v1583
        %1804 = vmatpush1.bf16.msra.mxu0 %v1582
        %1805 = vmatprep.subr.bf16.mxu0 %v1585
        %1806 = vmatpush1.bf16.msra.mxu0 %v1584
        %1807 = vmatprep.subr.bf16.mxu0 %v1587
        %1808 = vmatpush1.bf16.msra.mxu0 %v1586
        %1809 = vmatprep.subr.bf16.mxu0 %v1589
        %1810 = vmatpush1.bf16.msra.mxu0 %v1588
        %1811 = vmatprep.subr.bf16.mxu0 %v1591
        %1812 = vmatpush1.bf16.msra.mxu0 %v1590
        %1813 = vmatprep.subr.bf16.mxu0 %v1593
        %1814 = vmatpush1.bf16.msra.mxu0 %v1592
        %1815 = vmatprep.subr.bf16.mxu0 %v1595
        %1816 = vmatpush1.bf16.msra.mxu0 %v1594
        %1817 = vmatprep.subr.bf16.mxu0 %v1597
        %1818 = vmatpush1.bf16.msra.mxu0 %v1596
        %1819 = vmatprep.subr.bf16.mxu0 %v1599
        %1820 = vmatpush1.bf16.msra.mxu0 %v1598
        %1821 = vmatprep.subr.bf16.mxu0 %v1601
        %1822 = vmatpush1.bf16.msra.mxu0 %v1600
        %1823 = vmatprep.subr.bf16.mxu0 %v1603
        %1824 = vmatpush1.bf16.msra.mxu0 %v1602
        %1825 = vmatprep.subr.bf16.mxu0 %v1605
        %1826 = vmatpush1.bf16.msra.mxu0 %v1604
        %1827 = vmatprep.mubr.bf16.mxu0 %v1226
        %1828 = vmatmul.mubr.bf16.gmra.mrb[0].mxu0 %v1225
        %v1829 = vpop.f32.mrb[0].mxu0
        %v1830 = vadd.f32 %v1769, %v1829
        %v1831 = vpop.f32.mrb[0].mxu0
        %v1832 = vadd.f32 %v1771, %v1831
        %v1833 = vpop.f32.mrb[0].mxu0
        %v1834 = vadd.f32 %v1773, %v1833
        %v1835 = vpop.f32.mrb[0].mxu0
        %v1836 = vadd.f32 %v1775, %v1835
        %1837 = vmatprep.mubr.bf16.mxu0 %v1232
        %1838 = vmatmul.mubr.bf16.gmra.mrb[0].mxu0 %v1231
        %v1839 = vpop.f32.mrb[0].mxu0
        %v1840 = vadd.f32 %v1779, %v1839
        %v1841 = vpop.f32.mrb[0].mxu0
        %v1842 = vadd.f32 %v1781, %v1841
        %v1843 = vpop.f32.mrb[0].mxu0
        %v1844 = vadd.f32 %v1783, %v1843
        %v1845 = vpop.f32.mrb[0].mxu0
        %v1846 = vadd.f32 %v1785, %v1845
        %1847 = vmatprep.mubr.bf16.mxu0 %v1238
        %1848 = vmatmul.mubr.bf16.gmra.mrb[0].mxu0 %v1237
        %v1849 = vpop.f32.mrb[0].mxu0
        %v1850 = vadd.f32 %v1789, %v1849
        %v1851 = vpop.f32.mrb[0].mxu0
        %v1852 = vadd.f32 %v1791, %v1851
        %v1853 = vpop.f32.mrb[0].mxu0
        %v1854 = vpop.f32.mrb[0].mxu0
        %1855 = vdwg.mxu0
        %1856 = vmatprep.subr.bf16.mxu0 %v1607
        %1857 = vmatpush1.bf16.msra.mxu0 %v1606
        %1858 = vmatprep.subr.bf16.mxu0 %v1609
        %1859 = vmatpush1.bf16.msra.mxu0 %v1608
        %1860 = vmatprep.subr.bf16.mxu0 %v1611
        %1861 = vmatpush1.bf16.msra.mxu0 %v1610
        %1862 = vmatprep.subr.bf16.mxu0 %v1613
        %1863 = vmatpush1.bf16.msra.mxu0 %v1612
        %1864 = vmatprep.subr.bf16.mxu0 %v1615
        %1865 = vmatpush1.bf16.msra.mxu0 %v1614
        %1866 = vmatprep.subr.bf16.mxu0 %v1617
        %1867 = vmatpush1.bf16.msra.mxu0 %v1616
        %1868 = vmatprep.subr.bf16.mxu0 %v1619
        %1869 = vmatpush1.bf16.msra.mxu0 %v1618
        %1870 = vmatprep.subr.bf16.mxu0 %v1621
        %1871 = vmatpush1.bf16.msra.mxu0 %v1620
        %1872 = vmatprep.subr.bf16.mxu0 %v1623
        %1873 = vmatpush1.bf16.msra.mxu0 %v1622
        %1874 = vmatprep.subr.bf16.mxu0 %v1625
        %1875 = vmatpush1.bf16.msra.mxu0 %v1624
        %1876 = vmatprep.subr.bf16.mxu0 %v1627
        %1877 = vmatpush1.bf16.msra.mxu0 %v1626
        %1878 = vmatprep.subr.bf16.mxu0 %v1629
        %1879 = vmatpush1.bf16.msra.mxu0 %v1628
        %1880 = vmatprep.subr.bf16.mxu0 %v1631
        %1881 = vmatpush1.bf16.msra.mxu0 %v1630
        %1882 = vmatprep.subr.bf16.mxu0 %v1633
        %1883 = vmatpush1.bf16.msra.mxu0 %v1632
        %1884 = vmatprep.subr.bf16.mxu0 %v1635
        %1885 = vmatpush1.bf16.msra.mxu0 %v1634
        %1886 = vmatprep.subr.bf16.mxu0 %v1637
        %1887 = vmatpush1.bf16.msra.mxu0 %v1636
        %1888 = vmatprep.mubr.bf16.mxu0 %v1228
        %1889 = vmatmul.mubr.bf16.gmra.mrb[0].mxu0 %v1227
        %v1890 = vpop.f32.mrb[0].mxu0
        %v1891 = vadd.f32 %v1830, %v1890
        %v1892 = vpop.f32.mrb[0].mxu0
        %v1893 = vadd.f32 %v1832, %v1892
        %v1894 = vpop.f32.mrb[0].mxu0
        %v1895 = vadd.f32 %v1834, %v1894
        %v1896 = vpop.f32.mrb[0].mxu0
        %v1897 = vadd.f32 %v1836, %v1896
        %1898 = vmatprep.mubr.bf16.mxu0 %v1234
        %1899 = vmatmul.mubr.bf16.gmra.mrb[0].mxu0 %v1233
        %v1900 = vpop.f32.mrb[0].mxu0
        %v1901 = vadd.f32 %v1840, %v1900
        %v1902 = vpop.f32.mrb[0].mxu0
        %v1903 = vadd.f32 %v1842, %v1902
        %v1904 = vpop.f32.mrb[0].mxu0
        %v1905 = vadd.f32 %v1844, %v1904
        %v1906 = vpop.f32.mrb[0].mxu0
        %v1907 = vadd.f32 %v1846, %v1906
        %1908 = vmatprep.mubr.bf16.mxu0 %v1240
        %1909 = vmatmul.mubr.bf16.gmra.mrb[0].mxu0 %v1239
        %v1910 = vpop.f32.mrb[0].mxu0
        %v1911 = vadd.f32 %v1850, %v1910
        %v1912 = vpop.f32.mrb[0].mxu0
        %v1913 = vadd.f32 %v1852, %v1912
        %v1914 = vpop.f32.mrb[0].mxu0
        %v1915 = vpop.f32.mrb[0].mxu0
        %1916 = vdwg.mxu0
        %v1917 = vmax.f32 %v1891, 0.0
        %v1918 = vmax.f32 %v1893, 0.0
        %v1919 = vmax.f32 %v1895, 0.0
        %v1920 = vmax.f32 %v1897, 0.0
        %v1921 = vmax.f32 %v1901, 0.0
        %v1922 = vmax.f32 %v1903, 0.0
        %v1923 = vmax.f32 %v1905, 0.0
        %v1924 = vmax.f32 %v1907, 0.0
        %v1925 = vmax.f32 %v1911, 0.0
        %v1926 = vmax.f32 %v1913, 0.0
        %v1927 = vrot.slane %v1917, 1
        %v1928 = vrot.slane %v1918, 1
        %v1929 = vrot.slane %v1919, 1
        %v1930 = vrot.slane %v1920, 1
        %v1931 = vrot.slane %v1921, 1
        %v1932 = vrot.slane %v1922, 1
        %v1933 = vrot.slane %v1923, 1
        %v1934 = vrot.slane %v1924, 1
        %v1935 = vrot.slane %v1925, 1
        %v1936 = vrot.slane %v1926, 1
        %v1937 = vsel %vm461, %v1933, %v1935
        %v1938 = vsel %vm461, %v1934, %v1936
        %v1939 = vsel %vm461, %v1931, %v1933
        %v1940 = vsel %vm461, %v1932, %v1934
        %v1941 = vsel %vm461, %v1929, %v1931
        %v1942 = vsel %vm461, %v1930, %v1932
        %v1943 = vsel %vm461, %v1927, %v1929
        %v1944 = vsel %vm461, %v1928, %v1930
        %v1945 = vsel %vm461, %v1935, %v1927
        %v1946 = vsel %vm461, %v1936, %v1928
        %v1947 = vmax.f32 %v1917, %v1943
        %v1948 = vmax.f32 %v1918, %v1944
        %v1949 = vmax.f32 %v1919, %v1941
        %v1950 = vmax.f32 %v1920, %v1942
        %v1951 = vmax.f32 %v1921, %v1939
        %v1952 = vmax.f32 %v1922, %v1940
        %v1953 = vmax.f32 %v1923, %v1937
        %v1954 = vmax.f32 %v1924, %v1938
        %v1955 = vmax.f32 %v1925, %v1945
        %v1956 = vmax.f32 %v1926, %v1946
        %1957 = vrot.lane.b32.xlu0 %v1947, 96
        %v1958 = vpop.permute.xlu0 %1957
        %1959 = vrot.lane.b32.xlu0 %v1949, 96
        %v1960 = vpop.permute.xlu0 %1959
        %1961 = vrot.lane.b32.xlu0 %v1951, 96
        %v1962 = vpop.permute.xlu0 %1961
        %1963 = vrot.lane.b32.xlu0 %v1953, 96
        %v1964 = vpop.permute.xlu0 %1963
        %1965 = vrot.lane.b32.xlu0 %v1955, 96
        %v1966 = vpop.permute.xlu0 %1965
        %1967 = vrot.lane.b32.xlu0 %v1948, 96
        %v1968 = vpop.permute.xlu0 %1967
        %1969 = vrot.lane.b32.xlu0 %v1950, 96
        %v1970 = vpop.permute.xlu0 %1969
        %1971 = vrot.lane.b32.xlu0 %v1952, 96
        %v1972 = vpop.permute.xlu0 %1971
        %1973 = vrot.lane.b32.xlu0 %v1954, 96
        %v1974 = vpop.permute.xlu0 %1973
        %1975 = vrot.lane.b32.xlu0 %v1956, 96
        %v1976 = vpop.permute.xlu0 %1975
        %vm1977 = vcmp.lt.s32.totalorder %v943, 96
        %v1978 = vsel %vm1977, %v1958, %v1968
        %v1979 = vsel %vm1977, %v1960, %v1970
        %v1980 = vsel %vm1977, %v1962, %v1972
        %v1981 = vsel %vm1977, %v1964, %v1974
        %v1982 = vsel %vm1977, %v1966, %v1976
        %v1983 = vsel %vm1977, %v1968, %v1958
        %v1984 = vsel %vm1977, %v1970, %v1960
        %v1985 = vsel %vm1977, %v1972, %v1962
        %v1986 = vsel %vm1977, %v1974, %v1964
        %v1987 = vsel %vm1977, %v1976, %v1966
        %v1988 = vmax.f32 %v1947, %v1978
        %v1989 = vmax.f32 %v1948, %v1983
        %v1990 = vmax.f32 %v1949, %v1979
        %v1991 = vmax.f32 %v1950, %v1984
        %v1992 = vmax.f32 %v1951, %v1980
        %v1993 = vmax.f32 %v1952, %v1985
        %v1994 = vmax.f32 %v1953, %v1981
        %v1995 = vmax.f32 %v1954, %v1986
        %v1996 = vmax.f32 %v1955, %v1982
        %v1997 = vmax.f32 %v1956, %v1987
        %s1998 = scalar_lea.vmem [#allocation8], 20
        %v1999 = vld [vmem:[%s1998] sm:$0xf]
        %v2000 = vld [vmem:[%s1998 + $0x4] sm:$0xf]
        %v2001 = vld [vmem:[%s1998 + $0x8] sm:$0xf]
        %v2002 = vpack.c.bf16 %v1990, %v1988
        %v2003 = vpack.c.bf16 %v1991, %v1989
        %v2004 = vpack.c.bf16 %v1994, %v1992
        %v2005 = vpack.c.bf16 %v1995, %v1993
        %v2006 = vpack.c.bf16 %v1996, %v1996
        %v2007 = vpack.c.bf16 %v1997, %v1997
        %v2011 = vunpack.c.l.b16 %v1999
        %v2012 = vunpack.c.l.b16 %v2000
        %v2013 = vunpack.c.l.b16 %v2001
        %v2014 = vpack.c.b16 %v2012, %v2011
        %v2015 = vpack.c.b16 %v2013, %v2013
        %vm2016 = vcmask 326656
        %v2018 = vsel %vm2016, %v2014, 0
        %v2021 = vsel %vm2016, %v2015, 0
        %v2024 = vsel %vm1019, %v2006, 0
        %v2027 = vsel %vm1019, %v2007, 0
        %2029 = vmatprep.subr.bf16.mxu0 %v2003
        %2030 = vmatpush1.bf16.msra.mxu0 %v2002
        %2031 = vmatprep.subr.bf16.mxu0 %v2005
        %2032 = vmatpush1.bf16.msra.mxu0 %v2004
        %2033 = vmatprep.subr.bf16.mxu0 %v2027
        %2034 = vmatpush1.bf16.msra.mxu0 %v2024
        %2035 = vmatprep.subr.bf16.mxu0 0
        %2036 = vmatpush1.bf16.msra.mxu0 0
        %2037 = vmatprep.subr.bf16.mxu0 0
        %2038 = vmatpush1.bf16.msra.mxu0 0
        %2039 = vmatprep.subr.bf16.mxu0 0
        %2040 = vmatpush1.bf16.msra.mxu0 0
        %2041 = vmatprep.subr.bf16.mxu0 0
        %2042 = vmatpush1.bf16.msra.mxu0 0
        %2043 = vmatprep.subr.bf16.mxu0 0
        %2044 = vmatpush1.bf16.msra.mxu0 0
        %2045 = vmatprep.subr.bf16.mxu0 0
        %2046 = vmatpush1.bf16.msra.mxu0 0
        %2047 = vmatprep.subr.bf16.mxu0 0
        %2048 = vmatpush1.bf16.msra.mxu0 0
        %2049 = vmatprep.subr.bf16.mxu0 0
        %2050 = vmatpush1.bf16.msra.mxu0 0
        %2051 = vmatprep.subr.bf16.mxu0 0
        %2052 = vmatpush1.bf16.msra.mxu0 0
        %2053 = vmatprep.subr.bf16.mxu0 0
        %2054 = vmatpush1.bf16.msra.mxu0 0
        %2055 = vmatprep.subr.bf16.mxu0 0
        %2056 = vmatpush1.bf16.msra.mxu0 0
        %2057 = vmatprep.subr.bf16.mxu0 0
        %2058 = vmatpush1.bf16.msra.mxu0 0
        %2059 = vmatprep.subr.bf16.mxu0 0
        %2060 = vmatpush1.bf16.msra.mxu0 0
        %2061 = vmatprep.mubr.bf16.mxu0 0
        %2062 = vmatmul.mubr.bf16.gmra.mrb[0].mxu0 %v2018
        %v2063 = vpop.f32.mrb[0].mxu0
        %v2064 = vadd.f32 0.0, %v2063
        %v2065 = vpop.f32.mrb[0].mxu0
        %v2066 = vadd.f32 0.0, %v2065
        %v2067 = vpop.f32.mrb[0].mxu0
        %v2068 = vadd.f32 0.0, %v2067
        %v2069 = vpop.f32.mrb[0].mxu0
        %v2070 = vadd.f32 0.0, %v2069
        %2071 = vmatprep.mubr.bf16.mxu0 0
        %2072 = vmatmul.mubr.bf16.gmra.mrb[0].mxu0 %v2021
        %v2073 = vpop.f32.mrb[0].mxu0
        %v2074 = vadd.f32 0.0, %v2073
        %v2075 = vpop.f32.mrb[0].mxu0
        %v2076 = vadd.f32 0.0, %v2075
        %v2077 = vpop.f32.mrb[0].mxu0
        %v2078 = vpop.f32.mrb[0].mxu0
        %2079 = vdwg.mxu0
        %v2080 = vrot.slane %v2064, 1
        %v2081 = vrot.slane %v2066, 1
        %v2082 = vrot.slane %v2068, 1
        %v2083 = vrot.slane %v2070, 1
        %v2084 = vrot.slane %v2074, 1
        %v2085 = vrot.slane %v2076, 1
        %v2086 = vsel %vm461, %v2082, %v2084
        %v2087 = vsel %vm461, %v2083, %v2085
        %v2088 = vsel %vm461, %v2080, %v2082
        %v2089 = vsel %vm461, %v2081, %v2083
        %v2090 = vsel %vm461, %v2084, %v2080
        %v2091 = vsel %vm461, %v2085, %v2081
        %v2092 = vrot.slane %v2064, 2
        %v2093 = vrot.slane %v2066, 2
        %v2094 = vrot.slane %v2068, 2
        %v2095 = vrot.slane %v2070, 2
        %v2096 = vrot.slane %v2074, 2
        %v2097 = vrot.slane %v2076, 2
        %v2098 = vsel %vm480, %v2094, %v2096
        %v2099 = vsel %vm480, %v2095, %v2097
        %v2100 = vsel %vm480, %v2092, %v2094
        %v2101 = vsel %vm480, %v2093, %v2095
        %v2102 = vsel %vm480, %v2096, %v2092
        %v2103 = vsel %vm480, %v2097, %v2093
        %v2104 = vld [vmem:[#allocation7 + $0x3b0] sm:$0xff]
        %v2105 = vld [vmem:[#allocation7 + $0x3b8] sm:$0xff]
        %v2106 = vld [vmem:[#allocation7 + $0x3c0] sm:$0xff]
        %v2107 = vld [vmem:[#allocation7 + $0x3c8] sm:$0xff]
        %v2108 = vld [vmem:[#allocation7 + $0x3d0] sm:$0xff]
        %v2109 = vld [vmem:[#allocation7 + $0x3d8] sm:$0xff]
        %v2110 = vld [vmem:[#allocation7 + $0x3e0] sm:$0xff]
        %v2111 = vld [vmem:[#allocation7 + $0x3e8] sm:$0xff]
        %v2112 = vld [vmem:[#allocation7 + $0x3f0] sm:$0xff]
        %v2113 = vld [vmem:[#allocation7 + $0x3f8] sm:$0xff]
        %v2114 = vld [vmem:[#allocation7 + $0x400] sm:$0xff]
        %v2115 = vld [vmem:[#allocation7 + $0x408] sm:$0xff]
        %v2116 = vld [vmem:[#allocation7 + $0x410] sm:$0xff]
        %v2117 = vld [vmem:[#allocation7 + $0x418] sm:$0xff]
        %v2118 = vld [vmem:[#allocation7 + $0x420] sm:$0xff]
        %v2119 = vld [vmem:[#allocation7 + $0x428] sm:$0xff]
        %v2120 = vld [vmem:[#allocation7 + $0x430] sm:$0xff]
        %v2121 = vld [vmem:[#allocation7 + $0x438] sm:$0xff]
        %v2122 = vld [vmem:[#allocation7 + $0x440] sm:$0xff]
        %v2123 = vld [vmem:[#allocation7 + $0x448] sm:$0xff]
        %v2124 = vld [vmem:[#allocation7 + $0x450] sm:$0xff]
        %v2125 = vld [vmem:[#allocation7 + $0x458] sm:$0xff]
        %v2126 = vld [vmem:[#allocation7 + $0x460] sm:$0xff]
        %v2127 = vld [vmem:[#allocation7 + $0x468] sm:$0xff]
        %v2128 = vld [vmem:[#allocation7 + $0x470] sm:$0xff]
        %v2129 = vld [vmem:[#allocation7 + $0x478] sm:$0xff]
        %v2130 = vld [vmem:[#allocation7 + $0x480] sm:$0xff]
        %v2131 = vld [vmem:[#allocation7 + $0x488] sm:$0xff]
        %v2132 = vld [vmem:[#allocation7 + $0x490] sm:$0xff]
        %v2133 = vld [vmem:[#allocation7 + $0x498] sm:$0xff]
        %v2134 = vld [vmem:[#allocation7 + $0x4a0] sm:$0xff]
        %v2135 = vld [vmem:[#allocation7 + $0x4a8] sm:$0xff]
        %v2136 = vld [vmem:[#allocation7 + $0x4b0] sm:$0xff]
        %v2137 = vld [vmem:[#allocation7 + $0x4b8] sm:$0xff]
        %v2138 = vld [vmem:[#allocation7 + $0x4c0] sm:$0xff]
        %v2139 = vld [vmem:[#allocation7 + $0x4c8] sm:$0xff]
        %v2140 = vld [vmem:[#allocation7 + $0x4d0] sm:$0xff]
        %v2141 = vld [vmem:[#allocation7 + $0x4d8] sm:$0xff]
        %v2142 = vld [vmem:[#allocation7 + $0x4e0] sm:$0xff]
        %v2143 = vld [vmem:[#allocation7 + $0x4e8] sm:$0xff]
        %v2144 = vld [vmem:[#allocation7 + $0x4f0] sm:$0xff]
        %v2145 = vld [vmem:[#allocation7 + $0x4f8] sm:$0xff]
        %v2146 = vld [vmem:[#allocation7 + $0x500] sm:$0xff]
        %v2147 = vld [vmem:[#allocation7 + $0x508] sm:$0xff]
        %v2148 = vld [vmem:[#allocation7 + $0x510] sm:$0xff]
        %v2149 = vld [vmem:[#allocation7 + $0x518] sm:$0xff]
        %v2150 = vld [vmem:[#allocation7 + $0x520] sm:$0xff]
        %v2151 = vld [vmem:[#allocation7 + $0x528] sm:$0xff]
        %v2152 = vld [vmem:[#allocation7 + $0x530] sm:$0xff]
        %v2153 = vld [vmem:[#allocation7 + $0x538] sm:$0xff]
        %v2154 = vld [vmem:[#allocation7 + $0x540] sm:$0xff]
        %v2155 = vld [vmem:[#allocation7 + $0x548] sm:$0xff]
        %v2156 = vld [vmem:[#allocation7 + $0x550] sm:$0xff]
        %v2157 = vld [vmem:[#allocation7 + $0x558] sm:$0xff]
        %v2158 = vld [vmem:[#allocation7 + $0x560] sm:$0xff]
        %v2159 = vld [vmem:[#allocation7 + $0x568] sm:$0xff]
        %v2160 = vld [vmem:[#allocation7 + $0x570] sm:$0xff]
        %v2161 = vld [vmem:[#allocation7 + $0x578] sm:$0xff]
        %v2162 = vld [vmem:[#allocation7 + $0x580] sm:$0xff]
        %v2163 = vld [vmem:[#allocation7 + $0x588] sm:$0xff]
        %v2164 = vld [vmem:[#allocation7 + $0x590] sm:$0xff]
        %v2165 = vld [vmem:[#allocation7 + $0x598] sm:$0xff]
        %v2166 = vld [vmem:[#allocation7 + $0x5a0] sm:$0xff]
        %v2167 = vld [vmem:[#allocation7 + $0x5a8] sm:$0xff]
        %v2168 = vld [vmem:[#allocation7 + $0x5b0] sm:$0xff]
        %v2169 = vld [vmem:[#allocation7 + $0x5b8] sm:$0xff]
        %v2170 = vld [vmem:[#allocation7 + $0x5c0] sm:$0xff]
        %v2171 = vld [vmem:[#allocation7 + $0x5c8] sm:$0xff]
        %v2172 = vld [vmem:[#allocation7 + $0x5d0] sm:$0xff]
        %v2173 = vld [vmem:[#allocation7 + $0x5d8] sm:$0xff]
        %v2174 = vld [vmem:[#allocation7 + $0x5e0] sm:$0xff]
        %v2175 = vld [vmem:[#allocation7 + $0x5e8] sm:$0xff]
        %v2176 = vld [vmem:[#allocation7 + $0x5f0] sm:$0xff]
        %v2177 = vld [vmem:[#allocation7 + $0x5f8] sm:$0xff]
        %v2178 = vld [vmem:[#allocation7 + $0x600] sm:$0xff]
        %v2179 = vld [vmem:[#allocation7 + $0x608] sm:$0xff]
        %v2180 = vld [vmem:[#allocation7 + $0x610] sm:$0xff]
        %v2181 = vld [vmem:[#allocation7 + $0x618] sm:$0xff]
        %v2182 = vld [vmem:[#allocation7 + $0x620] sm:$0xff]
        %v2183 = vld [vmem:[#allocation7 + $0x628] sm:$0xff]
        %v2184 = vld [vmem:[#allocation7 + $0x630] sm:$0xff]
        %v2185 = vld [vmem:[#allocation7 + $0x638] sm:$0xff]
        %v2186 = vld [vmem:[#allocation7 + $0x640] sm:$0xff]
        %v2187 = vld [vmem:[#allocation7 + $0x648] sm:$0xff]
        %v2188 = vld [vmem:[#allocation7 + $0x650] sm:$0xff]
        %v2189 = vld [vmem:[#allocation7 + $0x658] sm:$0xff]
        %v2190 = vld [vmem:[#allocation7 + $0x660] sm:$0xff]
        %v2191 = vld [vmem:[#allocation7 + $0x668] sm:$0xff]
        %v2192 = vld [vmem:[#allocation7 + $0x670] sm:$0xff]
        %v2193 = vld [vmem:[#allocation7 + $0x678] sm:$0xff]
        %v2194 = vld [vmem:[#allocation7 + $0x680] sm:$0xff]
        %v2195 = vld [vmem:[#allocation7 + $0x688] sm:$0xff]
        %v2196 = vld [vmem:[#allocation7 + $0x690] sm:$0xff]
        %v2197 = vld [vmem:[#allocation7 + $0x698] sm:$0xff]
        %v2198 = vld [vmem:[#allocation7 + $0x6a0] sm:$0xff]
        %v2199 = vld [vmem:[#allocation7 + $0x6a8] sm:$0xff]
        %v2200 = vpack.c.bf16 %v2068, %v2064
        %v2201 = vpack.c.bf16 %v2070, %v2066
        %v2202 = vpack.c.bf16 %v2086, %v2088
        %v2203 = vpack.c.bf16 %v2087, %v2089
        %v2204 = vpack.c.bf16 %v2098, %v2100
        %v2205 = vpack.c.bf16 %v2099, %v2101
        %v2206 = vpack.c.bf16 %v2074, %v2074
        %v2207 = vpack.c.bf16 %v2076, %v2076
        %v2208 = vpack.c.bf16 %v2090, %v2090
        %v2209 = vpack.c.bf16 %v2091, %v2091
        %v2210 = vpack.c.bf16 %v2102, %v2102
        %v2211 = vpack.c.bf16 %v2103, %v2103
        %s2212 = scalar_lea.vmem [#allocation13], 2
        %v2213 = vld [vmem:[%s2212] ss:$8 sm:$0x3]
        %v2215 = vlaneseq
        %v2216 = vshrl.u32 %v2215, 7
        %v2217 = vsub.s32 0, %v2216
        %v2218 = vrot.slane %v2213, %v2217
        %v2219 = vlaneseq
        %v2220 = vshrl.u32 %v2219, 7
        %v2221 = vsub.s32 1, %v2220
        %v2222 = vrot.slane %v2213, %v2221
        %v2321 = vunpack.c.l.b16 %v2104
        %v2322 = vunpack.c.h.b16 %v2104
        %v2323 = vunpack.c.l.b16 %v2105
        %v2324 = vunpack.c.h.b16 %v2105
        %v2325 = vunpack.c.l.b16 %v2106
        %v2326 = vunpack.c.h.b16 %v2106
        %v2327 = vunpack.c.l.b16 %v2107
        %v2328 = vunpack.c.h.b16 %v2107
        %v2329 = vunpack.c.l.b16 %v2108
        %v2330 = vunpack.c.h.b16 %v2108
        %v2331 = vunpack.c.l.b16 %v2109
        %v2332 = vunpack.c.h.b16 %v2109
        %v2333 = vunpack.c.l.b16 %v2110
        %v2334 = vunpack.c.h.b16 %v2110
        %v2335 = vunpack.c.l.b16 %v2111
        %v2336 = vunpack.c.h.b16 %v2111
        %v2337 = vunpack.c.l.b16 %v2112
        %v2338 = vunpack.c.h.b16 %v2112
        %v2339 = vunpack.c.l.b16 %v2113
        %v2340 = vunpack.c.h.b16 %v2113
        %v2341 = vunpack.c.l.b16 %v2114
        %v2342 = vunpack.c.h.b16 %v2114
        %v2343 = vunpack.c.l.b16 %v2115
        %v2344 = vunpack.c.h.b16 %v2115
        %v2345 = vunpack.c.l.b16 %v2116
        %v2346 = vunpack.c.h.b16 %v2116
        %v2347 = vunpack.c.l.b16 %v2117
        %v2348 = vunpack.c.h.b16 %v2117
        %v2349 = vunpack.c.l.b16 %v2118
        %v2350 = vunpack.c.h.b16 %v2118
        %v2351 = vunpack.c.l.b16 %v2119
        %v2352 = vunpack.c.h.b16 %v2119
        %v2353 = vunpack.c.l.b16 %v2120
        %v2354 = vunpack.c.h.b16 %v2120
        %v2355 = vunpack.c.l.b16 %v2121
        %v2356 = vunpack.c.h.b16 %v2121
        %v2357 = vunpack.c.l.b16 %v2122
        %v2358 = vunpack.c.h.b16 %v2122
        %v2359 = vunpack.c.l.b16 %v2123
        %v2360 = vunpack.c.h.b16 %v2123
        %v2361 = vunpack.c.l.b16 %v2124
        %v2362 = vunpack.c.h.b16 %v2124
        %v2363 = vunpack.c.l.b16 %v2125
        %v2364 = vunpack.c.h.b16 %v2125
        %v2365 = vunpack.c.l.b16 %v2126
        %v2366 = vunpack.c.h.b16 %v2126
        %v2367 = vunpack.c.l.b16 %v2127
        %v2368 = vunpack.c.h.b16 %v2127
        %v2369 = vunpack.c.l.b16 %v2128
        %v2370 = vunpack.c.h.b16 %v2128
        %v2371 = vunpack.c.l.b16 %v2129
        %v2372 = vunpack.c.h.b16 %v2129
        %v2373 = vunpack.c.l.b16 %v2130
        %v2374 = vunpack.c.h.b16 %v2130
        %v2375 = vunpack.c.l.b16 %v2131
        %v2376 = vunpack.c.h.b16 %v2131
        %v2377 = vunpack.c.l.b16 %v2132
        %v2378 = vunpack.c.h.b16 %v2132
        %v2379 = vunpack.c.l.b16 %v2133
        %v2380 = vunpack.c.h.b16 %v2133
        %v2381 = vunpack.c.l.b16 %v2134
        %v2382 = vunpack.c.h.b16 %v2134
        %v2383 = vunpack.c.l.b16 %v2135
        %v2384 = vunpack.c.h.b16 %v2135
        %v2385 = vunpack.c.l.b16 %v2136
        %v2386 = vunpack.c.h.b16 %v2136
        %v2387 = vunpack.c.l.b16 %v2137
        %v2388 = vunpack.c.h.b16 %v2137
        %v2389 = vunpack.c.l.b16 %v2138
        %v2390 = vunpack.c.h.b16 %v2138
        %v2391 = vunpack.c.l.b16 %v2139
        %v2392 = vunpack.c.h.b16 %v2139
        %v2393 = vunpack.c.l.b16 %v2140
        %v2394 = vunpack.c.h.b16 %v2140
        %v2395 = vunpack.c.l.b16 %v2141
        %v2396 = vunpack.c.h.b16 %v2141
        %v2397 = vunpack.c.l.b16 %v2142
        %v2398 = vunpack.c.h.b16 %v2142
        %v2399 = vunpack.c.l.b16 %v2143
        %v2400 = vunpack.c.h.b16 %v2143
        %v2401 = vunpack.c.l.b16 %v2144
        %v2402 = vunpack.c.h.b16 %v2144
        %v2403 = vunpack.c.l.b16 %v2145
        %v2404 = vunpack.c.h.b16 %v2145
        %v2405 = vunpack.c.l.b16 %v2146
        %v2406 = vunpack.c.h.b16 %v2146
        %v2407 = vunpack.c.l.b16 %v2147
        %v2408 = vunpack.c.h.b16 %v2147
        %v2409 = vunpack.c.l.b16 %v2148
        %v2410 = vunpack.c.h.b16 %v2148
        %v2411 = vunpack.c.l.b16 %v2149
        %v2412 = vunpack.c.h.b16 %v2149
        %v2413 = vunpack.c.l.b16 %v2150
        %v2414 = vunpack.c.h.b16 %v2150
        %v2415 = vunpack.c.l.b16 %v2151
        %v2416 = vunpack.c.h.b16 %v2151
        %v2417 = vunpack.c.l.b16 %v2152
        %v2418 = vunpack.c.h.b16 %v2152
        %v2419 = vunpack.c.l.b16 %v2153
        %v2420 = vunpack.c.h.b16 %v2153
        %v2421 = vunpack.c.l.b16 %v2154
        %v2422 = vunpack.c.h.b16 %v2154
        %v2423 = vunpack.c.l.b16 %v2155
        %v2424 = vunpack.c.h.b16 %v2155
        %v2425 = vunpack.c.l.b16 %v2156
        %v2426 = vunpack.c.h.b16 %v2156
        %v2427 = vunpack.c.l.b16 %v2157
        %v2428 = vunpack.c.h.b16 %v2157
        %v2429 = vunpack.c.l.b16 %v2158
        %v2430 = vunpack.c.h.b16 %v2158
        %v2431 = vunpack.c.l.b16 %v2159
        %v2432 = vunpack.c.h.b16 %v2159
        %v2433 = vunpack.c.l.b16 %v2160
        %v2434 = vunpack.c.h.b16 %v2160
        %v2435 = vunpack.c.l.b16 %v2161
        %v2436 = vunpack.c.h.b16 %v2161
        %v2437 = vunpack.c.l.b16 %v2162
        %v2438 = vunpack.c.h.b16 %v2162
        %v2439 = vunpack.c.l.b16 %v2163
        %v2440 = vunpack.c.h.b16 %v2163
        %v2441 = vunpack.c.l.b16 %v2164
        %v2442 = vunpack.c.h.b16 %v2164
        %v2443 = vunpack.c.l.b16 %v2165
        %v2444 = vunpack.c.h.b16 %v2165
        %v2445 = vunpack.c.l.b16 %v2166
        %v2446 = vunpack.c.h.b16 %v2166
        %v2447 = vunpack.c.l.b16 %v2167
        %v2448 = vunpack.c.h.b16 %v2167
        %v2449 = vunpack.c.l.b16 %v2168
        %v2450 = vunpack.c.h.b16 %v2168
        %v2451 = vunpack.c.l.b16 %v2169
        %v2452 = vunpack.c.h.b16 %v2169
        %v2453 = vunpack.c.l.b16 %v2170
        %v2454 = vunpack.c.h.b16 %v2170
        %v2455 = vunpack.c.l.b16 %v2171
        %v2456 = vunpack.c.h.b16 %v2171
        %v2457 = vunpack.c.l.b16 %v2172
        %v2458 = vunpack.c.h.b16 %v2172
        %v2459 = vunpack.c.l.b16 %v2173
        %v2460 = vunpack.c.h.b16 %v2173
        %v2461 = vunpack.c.l.b16 %v2174
        %v2462 = vunpack.c.h.b16 %v2174
        %v2463 = vunpack.c.l.b16 %v2175
        %v2464 = vunpack.c.h.b16 %v2175
        %v2465 = vunpack.c.l.b16 %v2176
        %v2466 = vunpack.c.h.b16 %v2176
        %v2467 = vunpack.c.l.b16 %v2177
        %v2468 = vunpack.c.h.b16 %v2177
        %v2469 = vunpack.c.l.b16 %v2178
        %v2470 = vunpack.c.h.b16 %v2178
        %v2471 = vunpack.c.l.b16 %v2179
        %v2472 = vunpack.c.h.b16 %v2179
        %v2473 = vunpack.c.l.b16 %v2180
        %v2474 = vunpack.c.h.b16 %v2180
        %v2475 = vunpack.c.l.b16 %v2181
        %v2476 = vunpack.c.h.b16 %v2181
        %v2477 = vunpack.c.l.b16 %v2182
        %v2478 = vunpack.c.h.b16 %v2182
        %v2479 = vunpack.c.l.b16 %v2183
        %v2480 = vunpack.c.h.b16 %v2183
        %v2481 = vunpack.c.l.b16 %v2184
        %v2482 = vunpack.c.h.b16 %v2184
        %v2483 = vunpack.c.l.b16 %v2185
        %v2484 = vunpack.c.h.b16 %v2185
        %v2485 = vunpack.c.l.b16 %v2186
        %v2486 = vunpack.c.h.b16 %v2186
        %v2487 = vunpack.c.l.b16 %v2187
        %v2488 = vunpack.c.h.b16 %v2187
        %v2489 = vunpack.c.l.b16 %v2188
        %v2490 = vunpack.c.h.b16 %v2188
        %v2491 = vunpack.c.l.b16 %v2189
        %v2492 = vunpack.c.h.b16 %v2189
        %v2493 = vunpack.c.l.b16 %v2190
        %v2494 = vunpack.c.h.b16 %v2190
        %v2495 = vunpack.c.l.b16 %v2191
        %v2496 = vunpack.c.h.b16 %v2191
        %v2497 = vunpack.c.l.b16 %v2192
        %v2498 = vunpack.c.h.b16 %v2192
        %v2499 = vunpack.c.l.b16 %v2193
        %v2500 = vunpack.c.h.b16 %v2193
        %v2501 = vunpack.c.l.b16 %v2194
        %v2502 = vunpack.c.h.b16 %v2194
        %v2503 = vunpack.c.l.b16 %v2195
        %v2504 = vunpack.c.h.b16 %v2195
        %v2505 = vunpack.c.l.b16 %v2196
        %v2506 = vunpack.c.h.b16 %v2196
        %v2507 = vunpack.c.l.b16 %v2197
        %v2508 = vunpack.c.h.b16 %v2197
        %v2509 = vunpack.c.l.b16 %v2198
        %v2510 = vunpack.c.h.b16 %v2198
        %v2511 = vunpack.c.l.b16 %v2199
        %v2512 = vunpack.c.h.b16 %v2199
        %v2513 = vpack.c.b16 %v2323, %v2321
        %v2514 = vpack.c.b16 %v2324, %v2322
        %v2515 = vpack.c.b16 %v2327, %v2325
        %v2516 = vpack.c.b16 %v2328, %v2326
        %v2517 = vpack.c.b16 %v2331, %v2329
        %v2518 = vpack.c.b16 %v2332, %v2330
        %v2519 = vpack.c.b16 %v2335, %v2333
        %v2520 = vpack.c.b16 %v2336, %v2334
        %v2521 = vpack.c.b16 %v2339, %v2337
        %v2522 = vpack.c.b16 %v2340, %v2338
        %v2523 = vpack.c.b16 %v2343, %v2341
        %v2524 = vpack.c.b16 %v2344, %v2342
        %v2525 = vpack.c.b16 %v2347, %v2345
        %v2526 = vpack.c.b16 %v2348, %v2346
        %v2527 = vpack.c.b16 %v2351, %v2349
        %v2528 = vpack.c.b16 %v2352, %v2350
        %v2529 = vpack.c.b16 %v2355, %v2353
        %v2530 = vpack.c.b16 %v2356, %v2354
        %v2531 = vpack.c.b16 %v2359, %v2357
        %v2532 = vpack.c.b16 %v2360, %v2358
        %v2533 = vpack.c.b16 %v2363, %v2361
        %v2534 = vpack.c.b16 %v2364, %v2362
        %v2535 = vpack.c.b16 %v2367, %v2365
        %v2536 = vpack.c.b16 %v2368, %v2366
        %v2537 = vpack.c.b16 %v2371, %v2369
        %v2538 = vpack.c.b16 %v2372, %v2370
        %v2539 = vpack.c.b16 %v2375, %v2373
        %v2540 = vpack.c.b16 %v2376, %v2374
        %v2541 = vpack.c.b16 %v2379, %v2377
        %v2542 = vpack.c.b16 %v2380, %v2378
        %v2543 = vpack.c.b16 %v2383, %v2381
        %v2544 = vpack.c.b16 %v2384, %v2382
        %v2545 = vpack.c.b16 %v2387, %v2385
        %v2546 = vpack.c.b16 %v2388, %v2386
        %v2547 = vpack.c.b16 %v2391, %v2389
        %v2548 = vpack.c.b16 %v2392, %v2390
        %v2549 = vpack.c.b16 %v2395, %v2393
        %v2550 = vpack.c.b16 %v2396, %v2394
        %v2551 = vpack.c.b16 %v2399, %v2397
        %v2552 = vpack.c.b16 %v2400, %v2398
        %v2553 = vpack.c.b16 %v2403, %v2401
        %v2554 = vpack.c.b16 %v2404, %v2402
        %v2555 = vpack.c.b16 %v2407, %v2405
        %v2556 = vpack.c.b16 %v2408, %v2406
        %v2557 = vpack.c.b16 %v2411, %v2409
        %v2558 = vpack.c.b16 %v2412, %v2410
        %v2559 = vpack.c.b16 %v2415, %v2413
        %v2560 = vpack.c.b16 %v2416, %v2414
        %v2561 = vpack.c.b16 %v2419, %v2417
        %v2562 = vpack.c.b16 %v2420, %v2418
        %v2563 = vpack.c.b16 %v2423, %v2421
        %v2564 = vpack.c.b16 %v2424, %v2422
        %v2565 = vpack.c.b16 %v2427, %v2425
        %v2566 = vpack.c.b16 %v2428, %v2426
        %v2567 = vpack.c.b16 %v2431, %v2429
        %v2568 = vpack.c.b16 %v2432, %v2430
        %v2569 = vpack.c.b16 %v2435, %v2433
        %v2570 = vpack.c.b16 %v2436, %v2434
        %v2571 = vpack.c.b16 %v2439, %v2437
        %v2572 = vpack.c.b16 %v2440, %v2438
        %v2573 = vpack.c.b16 %v2443, %v2441
        %v2574 = vpack.c.b16 %v2444, %v2442
        %v2575 = vpack.c.b16 %v2447, %v2445
        %v2576 = vpack.c.b16 %v2448, %v2446
        %v2577 = vpack.c.b16 %v2451, %v2449
        %v2578 = vpack.c.b16 %v2452, %v2450
        %v2579 = vpack.c.b16 %v2455, %v2453
        %v2580 = vpack.c.b16 %v2456, %v2454
        %v2581 = vpack.c.b16 %v2459, %v2457
        %v2582 = vpack.c.b16 %v2460, %v2458
        %v2583 = vpack.c.b16 %v2463, %v2461
        %v2584 = vpack.c.b16 %v2464, %v2462
        %v2585 = vpack.c.b16 %v2467, %v2465
        %v2586 = vpack.c.b16 %v2468, %v2466
        %v2587 = vpack.c.b16 %v2471, %v2469
        %v2588 = vpack.c.b16 %v2472, %v2470
        %v2589 = vpack.c.b16 %v2475, %v2473
        %v2590 = vpack.c.b16 %v2476, %v2474
        %v2591 = vpack.c.b16 %v2479, %v2477
        %v2592 = vpack.c.b16 %v2480, %v2478
        %v2593 = vpack.c.b16 %v2483, %v2481
        %v2594 = vpack.c.b16 %v2484, %v2482
        %v2595 = vpack.c.b16 %v2487, %v2485
        %v2596 = vpack.c.b16 %v2488, %v2486
        %v2597 = vpack.c.b16 %v2491, %v2489
        %v2598 = vpack.c.b16 %v2492, %v2490
        %v2599 = vpack.c.b16 %v2495, %v2493
        %v2600 = vpack.c.b16 %v2496, %v2494
        %v2601 = vpack.c.b16 %v2499, %v2497
        %v2602 = vpack.c.b16 %v2500, %v2498
        %v2603 = vpack.c.b16 %v2503, %v2501
        %v2604 = vpack.c.b16 %v2504, %v2502
        %v2605 = vpack.c.b16 %v2507, %v2505
        %v2606 = vpack.c.b16 %v2508, %v2506
        %v2607 = vpack.c.b16 %v2511, %v2509
        %v2608 = vpack.c.b16 %v2512, %v2510
        %2705 = vmatprep.subr.bf16.mxu0 %v2514
        %2706 = vmatpush1.bf16.msra.mxu0 %v2513
        %2707 = vmatprep.subr.bf16.mxu0 %v2516
        %2708 = vmatpush1.bf16.msra.mxu0 %v2515
        %2709 = vmatprep.subr.bf16.mxu0 %v2518
        %2710 = vmatpush1.bf16.msra.mxu0 %v2517
        %2711 = vmatprep.subr.bf16.mxu0 %v2520
        %2712 = vmatpush1.bf16.msra.mxu0 %v2519
        %2713 = vmatprep.subr.bf16.mxu0 %v2522
        %2714 = vmatpush1.bf16.msra.mxu0 %v2521
        %2715 = vmatprep.subr.bf16.mxu0 %v2524
        %2716 = vmatpush1.bf16.msra.mxu0 %v2523
        %2717 = vmatprep.subr.bf16.mxu0 %v2526
        %2718 = vmatpush1.bf16.msra.mxu0 %v2525
        %2719 = vmatprep.subr.bf16.mxu0 %v2528
        %2720 = vmatpush1.bf16.msra.mxu0 %v2527
        %2721 = vmatprep.subr.bf16.mxu0 %v2530
        %2722 = vmatpush1.bf16.msra.mxu0 %v2529
        %2723 = vmatprep.subr.bf16.mxu0 %v2532
        %2724 = vmatpush1.bf16.msra.mxu0 %v2531
        %2725 = vmatprep.subr.bf16.mxu0 %v2534
        %2726 = vmatpush1.bf16.msra.mxu0 %v2533
        %2727 = vmatprep.subr.bf16.mxu0 %v2536
        %2728 = vmatpush1.bf16.msra.mxu0 %v2535
        %2729 = vmatprep.subr.bf16.mxu0 %v2538
        %2730 = vmatpush1.bf16.msra.mxu0 %v2537
        %2731 = vmatprep.subr.bf16.mxu0 %v2540
        %2732 = vmatpush1.bf16.msra.mxu0 %v2539
        %2733 = vmatprep.subr.bf16.mxu0 %v2542
        %2734 = vmatpush1.bf16.msra.mxu0 %v2541
        %2735 = vmatprep.subr.bf16.mxu0 %v2544
        %2736 = vmatpush1.bf16.msra.mxu0 %v2543
        %2737 = vmatprep.mubr.bf16.mxu0 %v2201
        %2738 = vmatmul.mubr.bf16.gmra.mrb[0].mxu0 %v2200
        %v2739 = vpop.f32.mrb[0].mxu0
        %v2740 = vadd.f32 %v2218, %v2739
        %v2741 = vpop.f32.mrb[0].mxu0
        %v2742 = vadd.f32 %v2222, %v2741
        %v2743 = vpop.f32.mrb[0].mxu0
        %v2744 = vadd.f32 %v2218, %v2743
        %v2745 = vpop.f32.mrb[0].mxu0
        %v2746 = vadd.f32 %v2222, %v2745
        %2747 = vmatprep.mubr.bf16.mxu0 %v2207
        %2748 = vmatmul.mubr.bf16.gmra.mrb[0].mxu0 %v2206
        %v2749 = vpop.f32.mrb[0].mxu0
        %v2750 = vadd.f32 %v2218, %v2749
        %v2751 = vpop.f32.mrb[0].mxu0
        %v2752 = vadd.f32 %v2222, %v2751
        %v2753 = vpop.f32.mrb[0].mxu0
        %v2754 = vpop.f32.mrb[0].mxu0
        %2755 = vdwg.mxu0
        %2756 = vmatprep.subr.bf16.mxu0 %v2546
        %2757 = vmatpush1.bf16.msra.mxu0 %v2545
        %2758 = vmatprep.subr.bf16.mxu0 %v2548
        %2759 = vmatpush1.bf16.msra.mxu0 %v2547
        %2760 = vmatprep.subr.bf16.mxu0 %v2550
        %2761 = vmatpush1.bf16.msra.mxu0 %v2549
        %2762 = vmatprep.subr.bf16.mxu0 %v2552
        %2763 = vmatpush1.bf16.msra.mxu0 %v2551
        %2764 = vmatprep.subr.bf16.mxu0 %v2554
        %2765 = vmatpush1.bf16.msra.mxu0 %v2553
        %2766 = vmatprep.subr.bf16.mxu0 %v2556
        %2767 = vmatpush1.bf16.msra.mxu0 %v2555
        %2768 = vmatprep.subr.bf16.mxu0 %v2558
        %2769 = vmatpush1.bf16.msra.mxu0 %v2557
        %2770 = vmatprep.subr.bf16.mxu0 %v2560
        %2771 = vmatpush1.bf16.msra.mxu0 %v2559
        %2772 = vmatprep.subr.bf16.mxu0 %v2562
        %2773 = vmatpush1.bf16.msra.mxu0 %v2561
        %2774 = vmatprep.subr.bf16.mxu0 %v2564
        %2775 = vmatpush1.bf16.msra.mxu0 %v2563
        %2776 = vmatprep.subr.bf16.mxu0 %v2566
        %2777 = vmatpush1.bf16.msra.mxu0 %v2565
        %2778 = vmatprep.subr.bf16.mxu0 %v2568
        %2779 = vmatpush1.bf16.msra.mxu0 %v2567
        %2780 = vmatprep.subr.bf16.mxu0 %v2570
        %2781 = vmatpush1.bf16.msra.mxu0 %v2569
        %2782 = vmatprep.subr.bf16.mxu0 %v2572
        %2783 = vmatpush1.bf16.msra.mxu0 %v2571
        %2784 = vmatprep.subr.bf16.mxu0 %v2574
        %2785 = vmatpush1.bf16.msra.mxu0 %v2573
        %2786 = vmatprep.subr.bf16.mxu0 %v2576
        %2787 = vmatpush1.bf16.msra.mxu0 %v2575
        %2788 = vmatprep.mubr.bf16.mxu0 %v2203
        %2789 = vmatmul.mubr.bf16.gmra.mrb[0].mxu0 %v2202
        %v2790 = vpop.f32.mrb[0].mxu0
        %v2791 = vadd.f32 %v2740, %v2790
        %v2792 = vpop.f32.mrb[0].mxu0
        %v2793 = vadd.f32 %v2742, %v2792
        %v2794 = vpop.f32.mrb[0].mxu0
        %v2795 = vadd.f32 %v2744, %v2794
        %v2796 = vpop.f32.mrb[0].mxu0
        %v2797 = vadd.f32 %v2746, %v2796
        %2798 = vmatprep.mubr.bf16.mxu0 %v2209
        %2799 = vmatmul.mubr.bf16.gmra.mrb[0].mxu0 %v2208
        %v2800 = vpop.f32.mrb[0].mxu0
        %v2801 = vadd.f32 %v2750, %v2800
        %v2802 = vpop.f32.mrb[0].mxu0
        %v2803 = vadd.f32 %v2752, %v2802
        %v2804 = vpop.f32.mrb[0].mxu0
        %v2805 = vpop.f32.mrb[0].mxu0
        %2806 = vdwg.mxu0
        %2807 = vmatprep.subr.bf16.mxu0 %v2578
        %2808 = vmatpush1.bf16.msra.mxu0 %v2577
        %2809 = vmatprep.subr.bf16.mxu0 %v2580
        %2810 = vmatpush1.bf16.msra.mxu0 %v2579
        %2811 = vmatprep.subr.bf16.mxu0 %v2582
        %2812 = vmatpush1.bf16.msra.mxu0 %v2581
        %2813 = vmatprep.subr.bf16.mxu0 %v2584
        %2814 = vmatpush1.bf16.msra.mxu0 %v2583
        %2815 = vmatprep.subr.bf16.mxu0 %v2586
        %2816 = vmatpush1.bf16.msra.mxu0 %v2585
        %2817 = vmatprep.subr.bf16.mxu0 %v2588
        %2818 = vmatpush1.bf16.msra.mxu0 %v2587
        %2819 = vmatprep.subr.bf16.mxu0 %v2590
        %2820 = vmatpush1.bf16.msra.mxu0 %v2589
        %2821 = vmatprep.subr.bf16.mxu0 %v2592
        %2822 = vmatpush1.bf16.msra.mxu0 %v2591
        %2823 = vmatprep.subr.bf16.mxu0 %v2594
        %2824 = vmatpush1.bf16.msra.mxu0 %v2593
        %2825 = vmatprep.subr.bf16.mxu0 %v2596
        %2826 = vmatpush1.bf16.msra.mxu0 %v2595
        %2827 = vmatprep.subr.bf16.mxu0 %v2598
        %2828 = vmatpush1.bf16.msra.mxu0 %v2597
        %2829 = vmatprep.subr.bf16.mxu0 %v2600
        %2830 = vmatpush1.bf16.msra.mxu0 %v2599
        %2831 = vmatprep.subr.bf16.mxu0 %v2602
        %2832 = vmatpush1.bf16.msra.mxu0 %v2601
        %2833 = vmatprep.subr.bf16.mxu0 %v2604
        %2834 = vmatpush1.bf16.msra.mxu0 %v2603
        %2835 = vmatprep.subr.bf16.mxu0 %v2606
        %2836 = vmatpush1.bf16.msra.mxu0 %v2605
        %2837 = vmatprep.subr.bf16.mxu0 %v2608
        %2838 = vmatpush1.bf16.msra.mxu0 %v2607
        %2839 = vmatprep.mubr.bf16.mxu0 %v2205
        %2840 = vmatmul.mubr.bf16.gmra.mrb[0].mxu0 %v2204
        %v2841 = vpop.f32.mrb[0].mxu0
        %v2842 = vadd.f32 %v2791, %v2841
        %v2843 = vpop.f32.mrb[0].mxu0
        %v2844 = vadd.f32 %v2793, %v2843
        %v2845 = vpop.f32.mrb[0].mxu0
        %v2846 = vadd.f32 %v2795, %v2845
        %v2847 = vpop.f32.mrb[0].mxu0
        %v2848 = vadd.f32 %v2797, %v2847
        %2849 = vmatprep.mubr.bf16.mxu0 %v2211
        %2850 = vmatmul.mubr.bf16.gmra.mrb[0].mxu0 %v2210
        %v2851 = vpop.f32.mrb[0].mxu0
        %v2852 = vadd.f32 %v2801, %v2851
        %v2853 = vpop.f32.mrb[0].mxu0
        %v2854 = vadd.f32 %v2803, %v2853
        %v2855 = vpop.f32.mrb[0].mxu0
        %v2856 = vpop.f32.mrb[0].mxu0
        %2857 = vdwg.mxu0
        %v2858 = vmax.f32 %v2842, 0.0
        %v2859 = vmax.f32 %v2844, 0.0
        %v2860 = vmax.f32 %v2846, 0.0
        %v2861 = vmax.f32 %v2848, 0.0
        %v2862 = vmax.f32 %v2852, 0.0
        %v2863 = vmax.f32 %v2854, 0.0
        %v2864 = vrot.slane %v2858, 1
        %v2865 = vrot.slane %v2859, 1
        %v2866 = vrot.slane %v2860, 1
        %v2867 = vrot.slane %v2861, 1
        %v2868 = vrot.slane %v2862, 1
        %v2869 = vrot.slane %v2863, 1
        %v2870 = vsel %vm461, %v2866, %v2868
        %v2871 = vsel %vm461, %v2867, %v2869
        %v2872 = vsel %vm461, %v2864, %v2866
        %v2873 = vsel %vm461, %v2865, %v2867
        %v2874 = vsel %vm461, %v2868, %v2864
        %v2875 = vsel %vm461, %v2869, %v2865
        %v2876 = vmax.f32 %v2858, %v2872
        %v2877 = vmax.f32 %v2859, %v2873
        %v2878 = vmax.f32 %v2860, %v2870
        %v2879 = vmax.f32 %v2861, %v2871
        %v2880 = vmax.f32 %v2862, %v2874
        %v2881 = vmax.f32 %v2863, %v2875
        %2882 = vrot.lane.b32.xlu0 %v2876, 64
        %v2883 = vpop.permute.xlu0 %2882
        %2884 = vrot.lane.b32.xlu0 %v2878, 64
        %v2885 = vpop.permute.xlu0 %2884
        %2886 = vrot.lane.b32.xlu0 %v2880, 64
        %v2887 = vpop.permute.xlu0 %2886
        %2888 = vrot.lane.b32.xlu0 %v2877, 64
        %v2889 = vpop.permute.xlu0 %2888
        %2890 = vrot.lane.b32.xlu0 %v2879, 64
        %v2891 = vpop.permute.xlu0 %2890
        %2892 = vrot.lane.b32.xlu0 %v2881, 64
        %v2893 = vpop.permute.xlu0 %2892
        %vm2894 = vcmp.lt.s32.totalorder %v943, 64
        %v2895 = vsel %vm2894, %v2883, %v2889
        %v2896 = vsel %vm2894, %v2885, %v2891
        %v2897 = vsel %vm2894, %v2887, %v2893
        %v2898 = vsel %vm2894, %v2889, %v2883
        %v2899 = vsel %vm2894, %v2891, %v2885
        %v2900 = vsel %vm2894, %v2893, %v2887
        %v2901 = vmax.f32 %v2876, %v2895
        %v2902 = vmax.f32 %v2877, %v2898
        %v2903 = vmax.f32 %v2878, %v2896
        %v2904 = vmax.f32 %v2879, %v2899
        %v2905 = vmax.f32 %v2880, %v2897
        %v2906 = vmax.f32 %v2881, %v2900
        %s2907 = scalar_lea.vmem [#allocation8], 40
        %v2908 = vld [vmem:[%s2907] sm:$0xf]
        %v2909 = vld [vmem:[%s2907 + $0x4] sm:$0xf]
        %v2910 = vpack.c.bf16 %v2903, %v2901
        %v2911 = vpack.c.bf16 %v2904, %v2902
        %v2912 = vpack.c.bf16 %v2905, %v2905
        %v2913 = vpack.c.bf16 %v2906, %v2906
        %v2916 = vunpack.c.l.b16 %v2908
        %v2917 = vunpack.c.l.b16 %v2909
        %v2918 = vpack.c.b16 %v2917, %v2916
        %vm2919 = vcmask 195584
        %v2921 = vsel %vm2919, %v2918, 0
        %v2924 = vsel %vm1019, %v2912, 0
        %v2927 = vsel %vm1019, %v2913, 0
        %2929 = vmatprep.subr.bf16.mxu0 %v2911
        %2930 = vmatpush1.bf16.msra.mxu0 %v2910
        %2931 = vmatprep.subr.bf16.mxu0 %v2927
        %2932 = vmatpush1.bf16.msra.mxu0 %v2924
        %2933 = vmatprep.subr.bf16.mxu0 0
        %2934 = vmatpush1.bf16.msra.mxu0 0
        %2935 = vmatprep.subr.bf16.mxu0 0
        %2936 = vmatpush1.bf16.msra.mxu0 0
        %2937 = vmatprep.subr.bf16.mxu0 0
        %2938 = vmatpush1.bf16.msra.mxu0 0
        %2939 = vmatprep.subr.bf16.mxu0 0
        %2940 = vmatpush1.bf16.msra.mxu0 0
        %2941 = vmatprep.subr.bf16.mxu0 0
        %2942 = vmatpush1.bf16.msra.mxu0 0
        %2943 = vmatprep.subr.bf16.mxu0 0
        %2944 = vmatpush1.bf16.msra.mxu0 0
        %2945 = vmatprep.subr.bf16.mxu0 0
        %2946 = vmatpush1.bf16.msra.mxu0 0
        %2947 = vmatprep.subr.bf16.mxu0 0
        %2948 = vmatpush1.bf16.msra.mxu0 0
        %2949 = vmatprep.subr.bf16.mxu0 0
        %2950 = vmatpush1.bf16.msra.mxu0 0
        %2951 = vmatprep.subr.bf16.mxu0 0
        %2952 = vmatpush1.bf16.msra.mxu0 0
        %2953 = vmatprep.subr.bf16.mxu0 0
        %2954 = vmatpush1.bf16.msra.mxu0 0
        %2955 = vmatprep.subr.bf16.mxu0 0
        %2956 = vmatpush1.bf16.msra.mxu0 0
        %2957 = vmatprep.subr.bf16.mxu0 0
        %2958 = vmatpush1.bf16.msra.mxu0 0
        %2959 = vmatprep.subr.bf16.mxu0 0
        %2960 = vmatpush1.bf16.msra.mxu0 0
        %2961 = vmatprep.mubr.bf16.mxu0 0
        %2962 = vmatmul.mubr.bf16.gmra.mrb[0].mxu0 %v2921
        %v2963 = vpop.f32.mrb[0].mxu0
        %v2964 = vadd.f32 0.0, %v2963
        %v2965 = vpop.f32.mrb[0].mxu0
        %v2966 = vadd.f32 0.0, %v2965
        %v2967 = vpop.f32.mrb[0].mxu0
        %v2968 = vadd.f32 0.0, %v2967
        %v2969 = vpop.f32.mrb[0].mxu0
        %v2970 = vadd.f32 0.0, %v2969
        %2971 = vdwg.mxu0
        %v2972 = vrot.slane %v2964, 1
        %v2973 = vrot.slane %v2966, 1
        %v2974 = vrot.slane %v2968, 1
        %v2975 = vrot.slane %v2970, 1
        %v2976 = vsel %vm461, %v2972, %v2974
        %v2977 = vsel %vm461, %v2973, %v2975
        %v2978 = vsel %vm461, %v2974, %v2972
        %v2979 = vsel %vm461, %v2975, %v2973
        %v2980 = vrot.slane %v2964, 2
        %v2981 = vrot.slane %v2966, 2
        %v2982 = vrot.slane %v2968, 2
        %v2983 = vrot.slane %v2970, 2
        %v2984 = vsel %vm480, %v2980, %v2982
        %v2985 = vsel %vm480, %v2981, %v2983
        %v2986 = vsel %vm480, %v2982, %v2980
        %v2987 = vsel %vm480, %v2983, %v2981
        %v2988 = vld [vmem:[#allocation7 + $0x6b0] sm:$0xff]
        %v2989 = vld [vmem:[#allocation7 + $0x6b8] sm:$0xff]
        %v2990 = vld [vmem:[#allocation7 + $0x6c0] sm:$0xff]
        %v2991 = vld [vmem:[#allocation7 + $0x6c8] sm:$0xff]
        %v2992 = vld [vmem:[#allocation7 + $0x6d0] sm:$0xff]
        %v2993 = vld [vmem:[#allocation7 + $0x6d8] sm:$0xff]
        %v2994 = vld [vmem:[#allocation7 + $0x6e0] sm:$0xff]
        %v2995 = vld [vmem:[#allocation7 + $0x6e8] sm:$0xff]
        %v2996 = vld [vmem:[#allocation7 + $0x6f0] sm:$0xff]
        %v2997 = vld [vmem:[#allocation7 + $0x6f8] sm:$0xff]
        %v2998 = vld [vmem:[#allocation7 + $0x700] sm:$0xff]
        %v2999 = vld [vmem:[#allocation7 + $0x708] sm:$0xff]
        %v3000 = vld [vmem:[#allocation7 + $0x710] sm:$0xff]
        %v3001 = vld [vmem:[#allocation7 + $0x718] sm:$0xff]
        %v3002 = vld [vmem:[#allocation7 + $0x720] sm:$0xff]
        %v3003 = vld [vmem:[#allocation7 + $0x728] sm:$0xff]
        %v3004 = vld [vmem:[#allocation7 + $0x730] sm:$0xff]
        %v3005 = vld [vmem:[#allocation7 + $0x738] sm:$0xff]
        %v3006 = vld [vmem:[#allocation7 + $0x740] sm:$0xff]
        %v3007 = vld [vmem:[#allocation7 + $0x748] sm:$0xff]
        %v3008 = vld [vmem:[#allocation7 + $0x750] sm:$0xff]
        %v3009 = vld [vmem:[#allocation7 + $0x758] sm:$0xff]
        %v3010 = vld [vmem:[#allocation7 + $0x760] sm:$0xff]
        %v3011 = vld [vmem:[#allocation7 + $0x768] sm:$0xff]
        %v3012 = vld [vmem:[#allocation7 + $0x770] sm:$0xff]
        %v3013 = vld [vmem:[#allocation7 + $0x778] sm:$0xff]
        %v3014 = vld [vmem:[#allocation7 + $0x780] sm:$0xff]
        %v3015 = vld [vmem:[#allocation7 + $0x788] sm:$0xff]
        %v3016 = vld [vmem:[#allocation7 + $0x790] sm:$0xff]
        %v3017 = vld [vmem:[#allocation7 + $0x798] sm:$0xff]
        %v3018 = vld [vmem:[#allocation7 + $0x7a0] sm:$0xff]
        %v3019 = vld [vmem:[#allocation7 + $0x7a8] sm:$0xff]
        %v3020 = vld [vmem:[#allocation7 + $0x7b0] sm:$0xff]
        %v3021 = vld [vmem:[#allocation7 + $0x7b8] sm:$0xff]
        %v3022 = vld [vmem:[#allocation7 + $0x7c0] sm:$0xff]
        %v3023 = vld [vmem:[#allocation7 + $0x7c8] sm:$0xff]
        %v3024 = vld [vmem:[#allocation7 + $0x7d0] sm:$0xff]
        %v3025 = vld [vmem:[#allocation7 + $0x7d8] sm:$0xff]
        %v3026 = vld [vmem:[#allocation7 + $0x7e0] sm:$0xff]
        %v3027 = vld [vmem:[#allocation7 + $0x7e8] sm:$0xff]
        %v3028 = vld [vmem:[#allocation7 + $0x7f0] sm:$0xff]
        %v3029 = vld [vmem:[#allocation7 + $0x7f8] sm:$0xff]
        %v3030 = vld [vmem:[#allocation7 + $0x800] sm:$0xff]
        %v3031 = vld [vmem:[#allocation7 + $0x808] sm:$0xff]
        %v3032 = vld [vmem:[#allocation7 + $0x810] sm:$0xff]
        %v3033 = vld [vmem:[#allocation7 + $0x818] sm:$0xff]
        %v3034 = vld [vmem:[#allocation7 + $0x820] sm:$0xff]
        %v3035 = vld [vmem:[#allocation7 + $0x828] sm:$0xff]
        %v3036 = vld [vmem:[#allocation7 + $0x830] sm:$0xff]
        %v3037 = vld [vmem:[#allocation7 + $0x838] sm:$0xff]
        %v3038 = vld [vmem:[#allocation7 + $0x840] sm:$0xff]
        %v3039 = vld [vmem:[#allocation7 + $0x848] sm:$0xff]
        %v3040 = vld [vmem:[#allocation7 + $0x850] sm:$0xff]
        %v3041 = vld [vmem:[#allocation7 + $0x858] sm:$0xff]
        %v3042 = vld [vmem:[#allocation7 + $0x860] sm:$0xff]
        %v3043 = vld [vmem:[#allocation7 + $0x868] sm:$0xff]
        %v3044 = vld [vmem:[#allocation7 + $0x870] sm:$0xff]
        %v3045 = vld [vmem:[#allocation7 + $0x878] sm:$0xff]
        %v3046 = vld [vmem:[#allocation7 + $0x880] sm:$0xff]
        %v3047 = vld [vmem:[#allocation7 + $0x888] sm:$0xff]
        %v3048 = vld [vmem:[#allocation7 + $0x890] sm:$0xff]
        %v3049 = vld [vmem:[#allocation7 + $0x898] sm:$0xff]
        %v3050 = vld [vmem:[#allocation7 + $0x8a0] sm:$0xff]
        %v3051 = vld [vmem:[#allocation7 + $0x8a8] sm:$0xff]
        %v3052 = vld [vmem:[#allocation7 + $0x8b0] sm:$0xff]
        %v3053 = vld [vmem:[#allocation7 + $0x8b8] sm:$0xff]
        %v3054 = vld [vmem:[#allocation7 + $0x8c0] sm:$0xff]
        %v3055 = vld [vmem:[#allocation7 + $0x8c8] sm:$0xff]
        %v3056 = vld [vmem:[#allocation7 + $0x8d0] sm:$0xff]
        %v3057 = vld [vmem:[#allocation7 + $0x8d8] sm:$0xff]
        %v3058 = vld [vmem:[#allocation7 + $0x8e0] sm:$0xff]
        %v3059 = vld [vmem:[#allocation7 + $0x8e8] sm:$0xff]
        %v3060 = vld [vmem:[#allocation7 + $0x8f0] sm:$0xff]
        %v3061 = vld [vmem:[#allocation7 + $0x8f8] sm:$0xff]
        %v3062 = vld [vmem:[#allocation7 + $0x900] sm:$0xff]
        %v3063 = vld [vmem:[#allocation7 + $0x908] sm:$0xff]
        %v3064 = vld [vmem:[#allocation7 + $0x910] sm:$0xff]
        %v3065 = vld [vmem:[#allocation7 + $0x918] sm:$0xff]
        %v3066 = vld [vmem:[#allocation7 + $0x920] sm:$0xff]
        %v3067 = vld [vmem:[#allocation7 + $0x928] sm:$0xff]
        %v3068 = vld [vmem:[#allocation7 + $0x930] sm:$0xff]
        %v3069 = vld [vmem:[#allocation7 + $0x938] sm:$0xff]
        %v3070 = vld [vmem:[#allocation7 + $0x940] sm:$0xff]
        %v3071 = vld [vmem:[#allocation7 + $0x948] sm:$0xff]
        %v3072 = vld [vmem:[#allocation7 + $0x950] sm:$0xff]
        %v3073 = vld [vmem:[#allocation7 + $0x958] sm:$0xff]
        %v3074 = vld [vmem:[#allocation7 + $0x960] sm:$0xff]
        %v3075 = vld [vmem:[#allocation7 + $0x968] sm:$0xff]
        %v3076 = vld [vmem:[#allocation7 + $0x970] sm:$0xff]
        %v3077 = vld [vmem:[#allocation7 + $0x978] sm:$0xff]
        %v3078 = vld [vmem:[#allocation7 + $0x980] sm:$0xff]
        %v3079 = vld [vmem:[#allocation7 + $0x988] sm:$0xff]
        %v3080 = vld [vmem:[#allocation7 + $0x990] sm:$0xff]
        %v3081 = vld [vmem:[#allocation7 + $0x998] sm:$0xff]
        %v3082 = vld [vmem:[#allocation7 + $0x9a0] sm:$0xff]
        %v3083 = vld [vmem:[#allocation7 + $0x9a8] sm:$0xff]
        %v3084 = vpack.c.bf16 %v2968, %v2964
        %v3085 = vpack.c.bf16 %v2970, %v2966
        %v3086 = vpack.c.bf16 %v2978, %v2976
        %v3087 = vpack.c.bf16 %v2979, %v2977
        %v3088 = vpack.c.bf16 %v2986, %v2984
        %v3089 = vpack.c.bf16 %v2987, %v2985
        %s3090 = scalar_lea.vmem [#allocation13], 3
        %v3091 = vld [vmem:[%s3090] ss:$8 sm:$0x3]
        %v3093 = vlaneseq
        %v3094 = vshrl.u32 %v3093, 7
        %v3095 = vsub.s32 0, %v3094
        %v3096 = vrot.slane %v3091, %v3095
        %v3097 = vlaneseq
        %v3098 = vshrl.u32 %v3097, 7
        %v3099 = vsub.s32 1, %v3098
        %v3100 = vrot.slane %v3091, %v3099
        %v3199 = vunpack.c.l.b16 %v2988
        %v3200 = vunpack.c.h.b16 %v2988
        %v3201 = vunpack.c.l.b16 %v2989
        %v3202 = vunpack.c.h.b16 %v2989
        %v3203 = vunpack.c.l.b16 %v2990
        %v3204 = vunpack.c.h.b16 %v2990
        %v3205 = vunpack.c.l.b16 %v2991
        %v3206 = vunpack.c.h.b16 %v2991
        %v3207 = vunpack.c.l.b16 %v2992
        %v3208 = vunpack.c.h.b16 %v2992
        %v3209 = vunpack.c.l.b16 %v2993
        %v3210 = vunpack.c.h.b16 %v2993
        %v3211 = vunpack.c.l.b16 %v2994
        %v3212 = vunpack.c.h.b16 %v2994
        %v3213 = vunpack.c.l.b16 %v2995
        %v3214 = vunpack.c.h.b16 %v2995
        %v3215 = vunpack.c.l.b16 %v2996
        %v3216 = vunpack.c.h.b16 %v2996
        %v3217 = vunpack.c.l.b16 %v2997
        %v3218 = vunpack.c.h.b16 %v2997
        %v3219 = vunpack.c.l.b16 %v2998
        %v3220 = vunpack.c.h.b16 %v2998
        %v3221 = vunpack.c.l.b16 %v2999
        %v3222 = vunpack.c.h.b16 %v2999
        %v3223 = vunpack.c.l.b16 %v3000
        %v3224 = vunpack.c.h.b16 %v3000
        %v3225 = vunpack.c.l.b16 %v3001
        %v3226 = vunpack.c.h.b16 %v3001
        %v3227 = vunpack.c.l.b16 %v3002
        %v3228 = vunpack.c.h.b16 %v3002
        %v3229 = vunpack.c.l.b16 %v3003
        %v3230 = vunpack.c.h.b16 %v3003
        %v3231 = vunpack.c.l.b16 %v3004
        %v3232 = vunpack.c.h.b16 %v3004
        %v3233 = vunpack.c.l.b16 %v3005
        %v3234 = vunpack.c.h.b16 %v3005
        %v3235 = vunpack.c.l.b16 %v3006
        %v3236 = vunpack.c.h.b16 %v3006
        %v3237 = vunpack.c.l.b16 %v3007
        %v3238 = vunpack.c.h.b16 %v3007
        %v3239 = vunpack.c.l.b16 %v3008
        %v3240 = vunpack.c.h.b16 %v3008
        %v3241 = vunpack.c.l.b16 %v3009
        %v3242 = vunpack.c.h.b16 %v3009
        %v3243 = vunpack.c.l.b16 %v3010
        %v3244 = vunpack.c.h.b16 %v3010
        %v3245 = vunpack.c.l.b16 %v3011
        %v3246 = vunpack.c.h.b16 %v3011
        %v3247 = vunpack.c.l.b16 %v3012
        %v3248 = vunpack.c.h.b16 %v3012
        %v3249 = vunpack.c.l.b16 %v3013
        %v3250 = vunpack.c.h.b16 %v3013
        %v3251 = vunpack.c.l.b16 %v3014
        %v3252 = vunpack.c.h.b16 %v3014
        %v3253 = vunpack.c.l.b16 %v3015
        %v3254 = vunpack.c.h.b16 %v3015
        %v3255 = vunpack.c.l.b16 %v3016
        %v3256 = vunpack.c.h.b16 %v3016
        %v3257 = vunpack.c.l.b16 %v3017
        %v3258 = vunpack.c.h.b16 %v3017
        %v3259 = vunpack.c.l.b16 %v3018
        %v3260 = vunpack.c.h.b16 %v3018
        %v3261 = vunpack.c.l.b16 %v3019
        %v3262 = vunpack.c.h.b16 %v3019
        %v3263 = vunpack.c.l.b16 %v3020
        %v3264 = vunpack.c.h.b16 %v3020
        %v3265 = vunpack.c.l.b16 %v3021
        %v3266 = vunpack.c.h.b16 %v3021
        %v3267 = vunpack.c.l.b16 %v3022
        %v3268 = vunpack.c.h.b16 %v3022
        %v3269 = vunpack.c.l.b16 %v3023
        %v3270 = vunpack.c.h.b16 %v3023
        %v3271 = vunpack.c.l.b16 %v3024
        %v3272 = vunpack.c.h.b16 %v3024
        %v3273 = vunpack.c.l.b16 %v3025
        %v3274 = vunpack.c.h.b16 %v3025
        %v3275 = vunpack.c.l.b16 %v3026
        %v3276 = vunpack.c.h.b16 %v3026
        %v3277 = vunpack.c.l.b16 %v3027
        %v3278 = vunpack.c.h.b16 %v3027
        %v3279 = vunpack.c.l.b16 %v3028
        %v3280 = vunpack.c.h.b16 %v3028
        %v3281 = vunpack.c.l.b16 %v3029
        %v3282 = vunpack.c.h.b16 %v3029
        %v3283 = vunpack.c.l.b16 %v3030
        %v3284 = vunpack.c.h.b16 %v3030
        %v3285 = vunpack.c.l.b16 %v3031
        %v3286 = vunpack.c.h.b16 %v3031
        %v3287 = vunpack.c.l.b16 %v3032
        %v3288 = vunpack.c.h.b16 %v3032
        %v3289 = vunpack.c.l.b16 %v3033
        %v3290 = vunpack.c.h.b16 %v3033
        %v3291 = vunpack.c.l.b16 %v3034
        %v3292 = vunpack.c.h.b16 %v3034
        %v3293 = vunpack.c.l.b16 %v3035
        %v3294 = vunpack.c.h.b16 %v3035
        %v3295 = vunpack.c.l.b16 %v3036
        %v3296 = vunpack.c.h.b16 %v3036
        %v3297 = vunpack.c.l.b16 %v3037
        %v3298 = vunpack.c.h.b16 %v3037
        %v3299 = vunpack.c.l.b16 %v3038
        %v3300 = vunpack.c.h.b16 %v3038
        %v3301 = vunpack.c.l.b16 %v3039
        %v3302 = vunpack.c.h.b16 %v3039
        %v3303 = vunpack.c.l.b16 %v3040
        %v3304 = vunpack.c.h.b16 %v3040
        %v3305 = vunpack.c.l.b16 %v3041
        %v3306 = vunpack.c.h.b16 %v3041
        %v3307 = vunpack.c.l.b16 %v3042
        %v3308 = vunpack.c.h.b16 %v3042
        %v3309 = vunpack.c.l.b16 %v3043
        %v3310 = vunpack.c.h.b16 %v3043
        %v3311 = vunpack.c.l.b16 %v3044
        %v3312 = vunpack.c.h.b16 %v3044
        %v3313 = vunpack.c.l.b16 %v3045
        %v3314 = vunpack.c.h.b16 %v3045
        %v3315 = vunpack.c.l.b16 %v3046
        %v3316 = vunpack.c.h.b16 %v3046
        %v3317 = vunpack.c.l.b16 %v3047
        %v3318 = vunpack.c.h.b16 %v3047
        %v3319 = vunpack.c.l.b16 %v3048
        %v3320 = vunpack.c.h.b16 %v3048
        %v3321 = vunpack.c.l.b16 %v3049
        %v3322 = vunpack.c.h.b16 %v3049
        %v3323 = vunpack.c.l.b16 %v3050
        %v3324 = vunpack.c.h.b16 %v3050
        %v3325 = vunpack.c.l.b16 %v3051
        %v3326 = vunpack.c.h.b16 %v3051
        %v3327 = vunpack.c.l.b16 %v3052
        %v3328 = vunpack.c.h.b16 %v3052
        %v3329 = vunpack.c.l.b16 %v3053
        %v3330 = vunpack.c.h.b16 %v3053
        %v3331 = vunpack.c.l.b16 %v3054
        %v3332 = vunpack.c.h.b16 %v3054
        %v3333 = vunpack.c.l.b16 %v3055
        %v3334 = vunpack.c.h.b16 %v3055
        %v3335 = vunpack.c.l.b16 %v3056
        %v3336 = vunpack.c.h.b16 %v3056
        %v3337 = vunpack.c.l.b16 %v3057
        %v3338 = vunpack.c.h.b16 %v3057
        %v3339 = vunpack.c.l.b16 %v3058
        %v3340 = vunpack.c.h.b16 %v3058
        %v3341 = vunpack.c.l.b16 %v3059
        %v3342 = vunpack.c.h.b16 %v3059
        %v3343 = vunpack.c.l.b16 %v3060
        %v3344 = vunpack.c.h.b16 %v3060
        %v3345 = vunpack.c.l.b16 %v3061
        %v3346 = vunpack.c.h.b16 %v3061
        %v3347 = vunpack.c.l.b16 %v3062
        %v3348 = vunpack.c.h.b16 %v3062
        %v3349 = vunpack.c.l.b16 %v3063
        %v3350 = vunpack.c.h.b16 %v3063
        %v3351 = vunpack.c.l.b16 %v3064
        %v3352 = vunpack.c.h.b16 %v3064
        %v3353 = vunpack.c.l.b16 %v3065
        %v3354 = vunpack.c.h.b16 %v3065
        %v3355 = vunpack.c.l.b16 %v3066
        %v3356 = vunpack.c.h.b16 %v3066
        %v3357 = vunpack.c.l.b16 %v3067
        %v3358 = vunpack.c.h.b16 %v3067
        %v3359 = vunpack.c.l.b16 %v3068
        %v3360 = vunpack.c.h.b16 %v3068
        %v3361 = vunpack.c.l.b16 %v3069
        %v3362 = vunpack.c.h.b16 %v3069
        %v3363 = vunpack.c.l.b16 %v3070
        %v3364 = vunpack.c.h.b16 %v3070
        %v3365 = vunpack.c.l.b16 %v3071
        %v3366 = vunpack.c.h.b16 %v3071
        %v3367 = vunpack.c.l.b16 %v3072
        %v3368 = vunpack.c.h.b16 %v3072
        %v3369 = vunpack.c.l.b16 %v3073
        %v3370 = vunpack.c.h.b16 %v3073
        %v3371 = vunpack.c.l.b16 %v3074
        %v3372 = vunpack.c.h.b16 %v3074
        %v3373 = vunpack.c.l.b16 %v3075
        %v3374 = vunpack.c.h.b16 %v3075
        %v3375 = vunpack.c.l.b16 %v3076
        %v3376 = vunpack.c.h.b16 %v3076
        %v3377 = vunpack.c.l.b16 %v3077
        %v3378 = vunpack.c.h.b16 %v3077
        %v3379 = vunpack.c.l.b16 %v3078
        %v3380 = vunpack.c.h.b16 %v3078
        %v3381 = vunpack.c.l.b16 %v3079
        %v3382 = vunpack.c.h.b16 %v3079
        %v3383 = vunpack.c.l.b16 %v3080
        %v3384 = vunpack.c.h.b16 %v3080
        %v3385 = vunpack.c.l.b16 %v3081
        %v3386 = vunpack.c.h.b16 %v3081
        %v3387 = vunpack.c.l.b16 %v3082
        %v3388 = vunpack.c.h.b16 %v3082
        %v3389 = vunpack.c.l.b16 %v3083
        %v3390 = vunpack.c.h.b16 %v3083
        %v3391 = vpack.c.b16 %v3201, %v3199
        %v3392 = vpack.c.b16 %v3202, %v3200
        %v3393 = vpack.c.b16 %v3205, %v3203
        %v3394 = vpack.c.b16 %v3206, %v3204
        %v3395 = vpack.c.b16 %v3209, %v3207
        %v3396 = vpack.c.b16 %v3210, %v3208
        %v3397 = vpack.c.b16 %v3213, %v3211
        %v3398 = vpack.c.b16 %v3214, %v3212
        %v3399 = vpack.c.b16 %v3217, %v3215
        %v3400 = vpack.c.b16 %v3218, %v3216
        %v3401 = vpack.c.b16 %v3221, %v3219
        %v3402 = vpack.c.b16 %v3222, %v3220
        %v3403 = vpack.c.b16 %v3225, %v3223
        %v3404 = vpack.c.b16 %v3226, %v3224
        %v3405 = vpack.c.b16 %v3229, %v3227
        %v3406 = vpack.c.b16 %v3230, %v3228
        %v3407 = vpack.c.b16 %v3233, %v3231
        %v3408 = vpack.c.b16 %v3234, %v3232
        %v3409 = vpack.c.b16 %v3237, %v3235
        %v3410 = vpack.c.b16 %v3238, %v3236
        %v3411 = vpack.c.b16 %v3241, %v3239
        %v3412 = vpack.c.b16 %v3242, %v3240
        %v3413 = vpack.c.b16 %v3245, %v3243
        %v3414 = vpack.c.b16 %v3246, %v3244
        %v3415 = vpack.c.b16 %v3249, %v3247
        %v3416 = vpack.c.b16 %v3250, %v3248
        %v3417 = vpack.c.b16 %v3253, %v3251
        %v3418 = vpack.c.b16 %v3254, %v3252
        %v3419 = vpack.c.b16 %v3257, %v3255
        %v3420 = vpack.c.b16 %v3258, %v3256
        %v3421 = vpack.c.b16 %v3261, %v3259
        %v3422 = vpack.c.b16 %v3262, %v3260
        %v3423 = vpack.c.b16 %v3265, %v3263
        %v3424 = vpack.c.b16 %v3266, %v3264
        %v3425 = vpack.c.b16 %v3269, %v3267
        %v3426 = vpack.c.b16 %v3270, %v3268
        %v3427 = vpack.c.b16 %v3273, %v3271
        %v3428 = vpack.c.b16 %v3274, %v3272
        %v3429 = vpack.c.b16 %v3277, %v3275
        %v3430 = vpack.c.b16 %v3278, %v3276
        %v3431 = vpack.c.b16 %v3281, %v3279
        %v3432 = vpack.c.b16 %v3282, %v3280
        %v3433 = vpack.c.b16 %v3285, %v3283
        %v3434 = vpack.c.b16 %v3286, %v3284
        %v3435 = vpack.c.b16 %v3289, %v3287
        %v3436 = vpack.c.b16 %v3290, %v3288
        %v3437 = vpack.c.b16 %v3293, %v3291
        %v3438 = vpack.c.b16 %v3294, %v3292
        %v3439 = vpack.c.b16 %v3297, %v3295
        %v3440 = vpack.c.b16 %v3298, %v3296
        %v3441 = vpack.c.b16 %v3301, %v3299
        %v3442 = vpack.c.b16 %v3302, %v3300
        %v3443 = vpack.c.b16 %v3305, %v3303
        %v3444 = vpack.c.b16 %v3306, %v3304
        %v3445 = vpack.c.b16 %v3309, %v3307
        %v3446 = vpack.c.b16 %v3310, %v3308
        %v3447 = vpack.c.b16 %v3313, %v3311
        %v3448 = vpack.c.b16 %v3314, %v3312
        %v3449 = vpack.c.b16 %v3317, %v3315
        %v3450 = vpack.c.b16 %v3318, %v3316
        %v3451 = vpack.c.b16 %v3321, %v3319
        %v3452 = vpack.c.b16 %v3322, %v3320
        %v3453 = vpack.c.b16 %v3325, %v3323
        %v3454 = vpack.c.b16 %v3326, %v3324
        %v3455 = vpack.c.b16 %v3329, %v3327
        %v3456 = vpack.c.b16 %v3330, %v3328
        %v3457 = vpack.c.b16 %v3333, %v3331
        %v3458 = vpack.c.b16 %v3334, %v3332
        %v3459 = vpack.c.b16 %v3337, %v3335
        %v3460 = vpack.c.b16 %v3338, %v3336
        %v3461 = vpack.c.b16 %v3341, %v3339
        %v3462 = vpack.c.b16 %v3342, %v3340
        %v3463 = vpack.c.b16 %v3345, %v3343
        %v3464 = vpack.c.b16 %v3346, %v3344
        %v3465 = vpack.c.b16 %v3349, %v3347
        %v3466 = vpack.c.b16 %v3350, %v3348
        %v3467 = vpack.c.b16 %v3353, %v3351
        %v3468 = vpack.c.b16 %v3354, %v3352
        %v3469 = vpack.c.b16 %v3357, %v3355
        %v3470 = vpack.c.b16 %v3358, %v3356
        %v3471 = vpack.c.b16 %v3361, %v3359
        %v3472 = vpack.c.b16 %v3362, %v3360
        %v3473 = vpack.c.b16 %v3365, %v3363
        %v3474 = vpack.c.b16 %v3366, %v3364
        %v3475 = vpack.c.b16 %v3369, %v3367
        %v3476 = vpack.c.b16 %v3370, %v3368
        %v3477 = vpack.c.b16 %v3373, %v3371
        %v3478 = vpack.c.b16 %v3374, %v3372
        %v3479 = vpack.c.b16 %v3377, %v3375
        %v3480 = vpack.c.b16 %v3378, %v3376
        %v3481 = vpack.c.b16 %v3381, %v3379
        %v3482 = vpack.c.b16 %v3382, %v3380
        %v3483 = vpack.c.b16 %v3385, %v3383
        %v3484 = vpack.c.b16 %v3386, %v3384
        %v3485 = vpack.c.b16 %v3389, %v3387
        %v3486 = vpack.c.b16 %v3390, %v3388
        %3583 = vmatprep.subr.bf16.mxu0 %v3392
        %3584 = vmatpush1.bf16.msra.mxu0 %v3391
        %3585 = vmatprep.subr.bf16.mxu0 %v3394
        %3586 = vmatpush1.bf16.msra.mxu0 %v3393
        %3587 = vmatprep.subr.bf16.mxu0 %v3396
        %3588 = vmatpush1.bf16.msra.mxu0 %v3395
        %3589 = vmatprep.subr.bf16.mxu0 %v3398
        %3590 = vmatpush1.bf16.msra.mxu0 %v3397
        %3591 = vmatprep.subr.bf16.mxu0 %v3400
        %3592 = vmatpush1.bf16.msra.mxu0 %v3399
        %3593 = vmatprep.subr.bf16.mxu0 %v3402
        %3594 = vmatpush1.bf16.msra.mxu0 %v3401
        %3595 = vmatprep.subr.bf16.mxu0 %v3404
        %3596 = vmatpush1.bf16.msra.mxu0 %v3403
        %3597 = vmatprep.subr.bf16.mxu0 %v3406
        %3598 = vmatpush1.bf16.msra.mxu0 %v3405
        %3599 = vmatprep.subr.bf16.mxu0 %v3408
        %3600 = vmatpush1.bf16.msra.mxu0 %v3407
        %3601 = vmatprep.subr.bf16.mxu0 %v3410
        %3602 = vmatpush1.bf16.msra.mxu0 %v3409
        %3603 = vmatprep.subr.bf16.mxu0 %v3412
        %3604 = vmatpush1.bf16.msra.mxu0 %v3411
        %3605 = vmatprep.subr.bf16.mxu0 %v3414
        %3606 = vmatpush1.bf16.msra.mxu0 %v3413
        %3607 = vmatprep.subr.bf16.mxu0 %v3416
        %3608 = vmatpush1.bf16.msra.mxu0 %v3415
        %3609 = vmatprep.subr.bf16.mxu0 %v3418
        %3610 = vmatpush1.bf16.msra.mxu0 %v3417
        %3611 = vmatprep.subr.bf16.mxu0 %v3420
        %3612 = vmatpush1.bf16.msra.mxu0 %v3419
        %3613 = vmatprep.subr.bf16.mxu0 %v3422
        %3614 = vmatpush1.bf16.msra.mxu0 %v3421
        %3615 = vmatprep.mubr.bf16.mxu0 %v3085
        %3616 = vmatmul.mubr.bf16.gmra.mrb[0].mxu0 %v3084
        %v3617 = vpop.f32.mrb[0].mxu0
        %v3618 = vadd.f32 %v3096, %v3617
        %v3619 = vpop.f32.mrb[0].mxu0
        %v3620 = vadd.f32 %v3100, %v3619
        %v3621 = vpop.f32.mrb[0].mxu0
        %v3622 = vadd.f32 %v3096, %v3621
        %v3623 = vpop.f32.mrb[0].mxu0
        %v3624 = vadd.f32 %v3100, %v3623
        %3625 = vdwg.mxu0
        %3626 = vmatprep.subr.bf16.mxu0 %v3424
        %3627 = vmatpush1.bf16.msra.mxu0 %v3423
        %3628 = vmatprep.subr.bf16.mxu0 %v3426
        %3629 = vmatpush1.bf16.msra.mxu0 %v3425
        %3630 = vmatprep.subr.bf16.mxu0 %v3428
        %3631 = vmatpush1.bf16.msra.mxu0 %v3427
        %3632 = vmatprep.subr.bf16.mxu0 %v3430
        %3633 = vmatpush1.bf16.msra.mxu0 %v3429
        %3634 = vmatprep.subr.bf16.mxu0 %v3432
        %3635 = vmatpush1.bf16.msra.mxu0 %v3431
        %3636 = vmatprep.subr.bf16.mxu0 %v3434
        %3637 = vmatpush1.bf16.msra.mxu0 %v3433
        %3638 = vmatprep.subr.bf16.mxu0 %v3436
        %3639 = vmatpush1.bf16.msra.mxu0 %v3435
        %3640 = vmatprep.subr.bf16.mxu0 %v3438
        %3641 = vmatpush1.bf16.msra.mxu0 %v3437
        %3642 = vmatprep.subr.bf16.mxu0 %v3440
        %3643 = vmatpush1.bf16.msra.mxu0 %v3439
        %3644 = vmatprep.subr.bf16.mxu0 %v3442
        %3645 = vmatpush1.bf16.msra.mxu0 %v3441
        %3646 = vmatprep.subr.bf16.mxu0 %v3444
        %3647 = vmatpush1.bf16.msra.mxu0 %v3443
        %3648 = vmatprep.subr.bf16.mxu0 %v3446
        %3649 = vmatpush1.bf16.msra.mxu0 %v3445
        %3650 = vmatprep.subr.bf16.mxu0 %v3448
        %3651 = vmatpush1.bf16.msra.mxu0 %v3447
        %3652 = vmatprep.subr.bf16.mxu0 %v3450
        %3653 = vmatpush1.bf16.msra.mxu0 %v3449
        %3654 = vmatprep.subr.bf16.mxu0 %v3452
        %3655 = vmatpush1.bf16.msra.mxu0 %v3451
        %3656 = vmatprep.subr.bf16.mxu0 %v3454
        %3657 = vmatpush1.bf16.msra.mxu0 %v3453
        %3658 = vmatprep.mubr.bf16.mxu0 %v3087
        %3659 = vmatmul.mubr.bf16.gmra.mrb[0].mxu0 %v3086
        %v3660 = vpop.f32.mrb[0].mxu0
        %v3661 = vadd.f32 %v3618, %v3660
        %v3662 = vpop.f32.mrb[0].mxu0
        %v3663 = vadd.f32 %v3620, %v3662
        %v3664 = vpop.f32.mrb[0].mxu0
        %v3665 = vadd.f32 %v3622, %v3664
        %v3666 = vpop.f32.mrb[0].mxu0
        %v3667 = vadd.f32 %v3624, %v3666
        %3668 = vdwg.mxu0
        %3669 = vmatprep.subr.bf16.mxu0 %v3456
        %3670 = vmatpush1.bf16.msra.mxu0 %v3455
        %3671 = vmatprep.subr.bf16.mxu0 %v3458
        %3672 = vmatpush1.bf16.msra.mxu0 %v3457
        %3673 = vmatprep.subr.bf16.mxu0 %v3460
        %3674 = vmatpush1.bf16.msra.mxu0 %v3459
        %3675 = vmatprep.subr.bf16.mxu0 %v3462
        %3676 = vmatpush1.bf16.msra.mxu0 %v3461
        %3677 = vmatprep.subr.bf16.mxu0 %v3464
        %3678 = vmatpush1.bf16.msra.mxu0 %v3463
        %3679 = vmatprep.subr.bf16.mxu0 %v3466
        %3680 = vmatpush1.bf16.msra.mxu0 %v3465
        %3681 = vmatprep.subr.bf16.mxu0 %v3468
        %3682 = vmatpush1.bf16.msra.mxu0 %v3467
        %3683 = vmatprep.subr.bf16.mxu0 %v3470
        %3684 = vmatpush1.bf16.msra.mxu0 %v3469
        %3685 = vmatprep.subr.bf16.mxu0 %v3472
        %3686 = vmatpush1.bf16.msra.mxu0 %v3471
        %3687 = vmatprep.subr.bf16.mxu0 %v3474
        %3688 = vmatpush1.bf16.msra.mxu0 %v3473
        %3689 = vmatprep.subr.bf16.mxu0 %v3476
        %3690 = vmatpush1.bf16.msra.mxu0 %v3475
        %3691 = vmatprep.subr.bf16.mxu0 %v3478
        %3692 = vmatpush1.bf16.msra.mxu0 %v3477
        %3693 = vmatprep.subr.bf16.mxu0 %v3480
        %3694 = vmatpush1.bf16.msra.mxu0 %v3479
        %3695 = vmatprep.subr.bf16.mxu0 %v3482
        %3696 = vmatpush1.bf16.msra.mxu0 %v3481
        %3697 = vmatprep.subr.bf16.mxu0 %v3484
        %3698 = vmatpush1.bf16.msra.mxu0 %v3483
        %3699 = vmatprep.subr.bf16.mxu0 %v3486
        %3700 = vmatpush1.bf16.msra.mxu0 %v3485
        %3701 = vmatprep.mubr.bf16.mxu0 %v3089
        %3702 = vmatmul.mubr.bf16.gmra.mrb[0].mxu0 %v3088
        %v3703 = vpop.f32.mrb[0].mxu0
        %v3704 = vadd.f32 %v3661, %v3703
        %v3705 = vpop.f32.mrb[0].mxu0
        %v3706 = vadd.f32 %v3663, %v3705
        %v3707 = vpop.f32.mrb[0].mxu0
        %v3708 = vadd.f32 %v3665, %v3707
        %v3709 = vpop.f32.mrb[0].mxu0
        %v3710 = vadd.f32 %v3667, %v3709
        %3711 = vdwg.mxu0
        %v3712 = vmax.f32 %v3704, 0.0
        %v3713 = vmax.f32 %v3706, 0.0
        %v3714 = vmax.f32 %v3708, 0.0
        %v3715 = vmax.f32 %v3710, 0.0
        %v3716 = vrot.slane %v3712, 1
        %v3717 = vrot.slane %v3713, 1
        %v3718 = vrot.slane %v3714, 1
        %v3719 = vrot.slane %v3715, 1
        %v3720 = vsel %vm461, %v3716, %v3718
        %v3721 = vsel %vm461, %v3717, %v3719
        %v3722 = vsel %vm461, %v3718, %v3716
        %v3723 = vsel %vm461, %v3719, %v3717
        %v3724 = vmax.f32 %v3712, %v3720
        %v3725 = vmax.f32 %v3713, %v3721
        %v3726 = vmax.f32 %v3714, %v3722
        %v3727 = vmax.f32 %v3715, %v3723
        %v3728 = vmax.f32 %v3724, %v3725
        %v3729 = vmax.f32 %v3726, %v3727
        %s3730 = scalar_lea.vmem [#allocation8], 60
        %v3731 = vld [vmem:[%s3730] sm:$0xf]
        %v3732 = vpack.c.bf16 %v3729, %v3728
        %vm3733 = vcmask 130048
        %v3735 = vsel %vm3733, %v3731, 0
        %3737 = vmatprep.subr.bf16.mxu0 %v3732
        %3738 = vmatpush1.bf16.msra.mxu0 %v3732
        %3739 = vmatprep.subr.bf16.mxu0 0
        %3740 = vmatpush1.bf16.msra.mxu0 0
        %3741 = vmatprep.subr.bf16.mxu0 0
        %3742 = vmatpush1.bf16.msra.mxu0 0
        %3743 = vmatprep.subr.bf16.mxu0 0
        %3744 = vmatpush1.bf16.msra.mxu0 0
        %3745 = vmatprep.subr.bf16.mxu0 0
        %3746 = vmatpush1.bf16.msra.mxu0 0
        %3747 = vmatprep.subr.bf16.mxu0 0
        %3748 = vmatpush1.bf16.msra.mxu0 0
        %3749 = vmatprep.subr.bf16.mxu0 0
        %3750 = vmatpush1.bf16.msra.mxu0 0
        %3751 = vmatprep.subr.bf16.mxu0 0
        %3752 = vmatpush1.bf16.msra.mxu0 0
        %3753 = vmatprep.subr.bf16.mxu0 0
        %3754 = vmatpush1.bf16.msra.mxu0 0
        %3755 = vmatprep.subr.bf16.mxu0 0
        %3756 = vmatpush1.bf16.msra.mxu0 0
        %3757 = vmatprep.subr.bf16.mxu0 0
        %3758 = vmatpush1.bf16.msra.mxu0 0
        %3759 = vmatprep.subr.bf16.mxu0 0
        %3760 = vmatpush1.bf16.msra.mxu0 0
        %3761 = vmatprep.subr.bf16.mxu0 0
        %3762 = vmatpush1.bf16.msra.mxu0 0
        %3763 = vmatprep.subr.bf16.mxu0 0
        %3764 = vmatpush1.bf16.msra.mxu0 0
        %3765 = vmatprep.subr.bf16.mxu0 0
        %3766 = vmatpush1.bf16.msra.mxu0 0
        %3767 = vmatprep.subr.bf16.mxu0 0
        %3768 = vmatpush1.bf16.msra.mxu0 0
        %3769 = vmatprep.mubr.bf16.mxu0 0
        %3770 = vmatmul.mubr.bf16.gmra.mrb[0].mxu0 %v3735
        %v3771 = vpop.f32.mrb[0].mxu0
        %v3772 = vadd.f32 0.0, %v3771
        %v3773 = vpop.f32.mrb[0].mxu0
        %v3774 = vadd.f32 0.0, %v3773
        %v3775 = vpop.f32.mrb[0].mxu0
        %v3776 = vpop.f32.mrb[0].mxu0
        %3777 = vdwg.mxu0
        %v3778 = vld [vmem:[#allocation10] sm:$0xff]
        %v3779 = vld [vmem:[#allocation10 + $0x8] sm:$0xff]
        %v3780 = vld [vmem:[#allocation10 + $0x10] sm:$0xff]
        %v3781 = vld [vmem:[#allocation10 + $0x18] sm:$0xff]
        %v3782 = vld [vmem:[#allocation10 + $0x20] sm:$0xff]
        %v3783 = vld [vmem:[#allocation10 + $0x28] sm:$0xff]
        %v3784 = vld [vmem:[#allocation10 + $0x30] sm:$0xff]
        %v3785 = vld [vmem:[#allocation10 + $0x38] sm:$0xff]
        %v3786 = vld [vmem:[#allocation10 + $0x40] sm:$0xff]
        %v3787 = vld [vmem:[#allocation10 + $0x48] sm:$0xff]
        %v3788 = vld [vmem:[#allocation10 + $0x50] sm:$0xff]
        %v3789 = vld [vmem:[#allocation10 + $0x58] sm:$0xff]
        %v3790 = vld [vmem:[#allocation10 + $0x60] sm:$0xff]
        %v3791 = vld [vmem:[#allocation10 + $0x68] sm:$0xff]
        %v3792 = vld [vmem:[#allocation10 + $0x70] sm:$0xff]
        %v3793 = vld [vmem:[#allocation10 + $0x78] sm:$0xff]
        %v3794 = vld [vmem:[#allocation10 + $0x80] sm:$0xff]
        %v3795 = vld [vmem:[#allocation10 + $0x88] sm:$0xff]
        %v3796 = vld [vmem:[#allocation10 + $0x90] sm:$0xff]
        %v3797 = vld [vmem:[#allocation10 + $0x98] sm:$0xff]
        %v3798 = vld [vmem:[#allocation10 + $0xa0] sm:$0xff]
        %v3799 = vld [vmem:[#allocation10 + $0xa8] sm:$0xff]
        %v3800 = vld [vmem:[#allocation10 + $0xb0] sm:$0xff]
        %v3801 = vld [vmem:[#allocation10 + $0xb8] sm:$0xff]
        %v3802 = vld [vmem:[#allocation10 + $0xc0] sm:$0xff]
        %v3803 = vld [vmem:[#allocation10 + $0xc8] sm:$0xff]
        %v3804 = vld [vmem:[#allocation10 + $0xd0] sm:$0xff]
        %v3805 = vld [vmem:[#allocation10 + $0xd8] sm:$0xff]
        %v3806 = vld [vmem:[#allocation10 + $0xe0] sm:$0xff]
        %v3807 = vld [vmem:[#allocation10 + $0xe8] sm:$0xff]
        %v3808 = vld [vmem:[#allocation10 + $0xf0] sm:$0xff]
        %v3809 = vld [vmem:[#allocation10 + $0xf8] sm:$0xff]
        %v3810 = vld [vmem:[#allocation10 + $0x100] sm:$0xff]
        %v3811 = vld [vmem:[#allocation10 + $0x108] sm:$0xff]
        %v3812 = vld [vmem:[#allocation10 + $0x110] sm:$0xff]
        %v3813 = vld [vmem:[#allocation10 + $0x118] sm:$0xff]
        %v3814 = vld [vmem:[#allocation10 + $0x120] sm:$0xff]
        %v3815 = vld [vmem:[#allocation10 + $0x128] sm:$0xff]
        %v3816 = vld [vmem:[#allocation10 + $0x130] sm:$0xff]
        %v3817 = vld [vmem:[#allocation10 + $0x138] sm:$0xff]
        %v3818 = vld [vmem:[#allocation10 + $0x140] sm:$0xff]
        %v3819 = vld [vmem:[#allocation10 + $0x148] sm:$0xff]
        %v3820 = vld [vmem:[#allocation10 + $0x150] sm:$0xff]
        %v3821 = vld [vmem:[#allocation10 + $0x158] sm:$0xff]
        %v3822 = vld [vmem:[#allocation10 + $0x160] sm:$0xff]
        %v3823 = vld [vmem:[#allocation10 + $0x168] sm:$0xff]
        %v3824 = vld [vmem:[#allocation10 + $0x170] sm:$0xff]
        %v3825 = vld [vmem:[#allocation10 + $0x178] sm:$0xff]
        %v3826 = vld [vmem:[#allocation10 + $0x180] sm:$0xff]
        %v3827 = vld [vmem:[#allocation10 + $0x188] sm:$0xff]
        %v3828 = vld [vmem:[#allocation10 + $0x190] sm:$0xff]
        %v3829 = vld [vmem:[#allocation10 + $0x198] sm:$0xff]
        %v3830 = vld [vmem:[#allocation10 + $0x1a0] sm:$0xff]
        %v3831 = vld [vmem:[#allocation10 + $0x1a8] sm:$0xff]
        %v3832 = vld [vmem:[#allocation10 + $0x1b0] sm:$0xff]
        %v3833 = vld [vmem:[#allocation10 + $0x1b8] sm:$0xff]
        %s3834 = scalar_lea.vmem [#allocation13], 4
        %v3835 = vld [vmem:[%s3834] ss:$8 sm:$0x3]
        %s3836 = scalar_lea.vmem [#allocation13], 5
        %v3837 = vld [vmem:[%s3836] ss:$8 sm:$0x3]
        %v3838 = vpack.c.bf16 %v3772, %v3772
        %v3839 = vpack.c.bf16 %v3774, %v3774
        %v3841 = vlaneseq
        %v3842 = vshrl.u32 %v3841, 7
        %v3843 = vsub.s32 0, %v3842
        %v3844 = vrot.slane %v3835, %v3843
        %v3845 = vlaneseq
        %v3846 = vshrl.u32 %v3845, 7
        %v3847 = vsub.s32 1, %v3846
        %v3848 = vrot.slane %v3835, %v3847
        %v3883 = vunpack.c.l.b16 %v3778
        %v3884 = vunpack.c.h.b16 %v3778
        %v3885 = vunpack.c.l.b16 %v3779
        %v3886 = vunpack.c.h.b16 %v3779
        %v3887 = vunpack.c.l.b16 %v3780
        %v3888 = vunpack.c.h.b16 %v3780
        %v3889 = vunpack.c.l.b16 %v3781
        %v3890 = vunpack.c.h.b16 %v3781
        %v3891 = vunpack.c.l.b16 %v3782
        %v3892 = vunpack.c.h.b16 %v3782
        %v3893 = vunpack.c.l.b16 %v3783
        %v3894 = vunpack.c.h.b16 %v3783
        %v3895 = vunpack.c.l.b16 %v3784
        %v3896 = vunpack.c.h.b16 %v3784
        %v3897 = vunpack.c.l.b16 %v3785
        %v3898 = vunpack.c.h.b16 %v3785
        %v3899 = vunpack.c.l.b16 %v3786
        %v3900 = vunpack.c.h.b16 %v3786
        %v3901 = vunpack.c.l.b16 %v3787
        %v3902 = vunpack.c.h.b16 %v3787
        %v3903 = vunpack.c.l.b16 %v3788
        %v3904 = vunpack.c.h.b16 %v3788
        %v3905 = vunpack.c.l.b16 %v3789
        %v3906 = vunpack.c.h.b16 %v3789
        %v3907 = vunpack.c.l.b16 %v3790
        %v3908 = vunpack.c.h.b16 %v3790
        %v3909 = vunpack.c.l.b16 %v3791
        %v3910 = vunpack.c.h.b16 %v3791
        %v3911 = vunpack.c.l.b16 %v3792
        %v3912 = vunpack.c.h.b16 %v3792
        %v3913 = vunpack.c.l.b16 %v3793
        %v3914 = vunpack.c.h.b16 %v3793
        %v3915 = vunpack.c.l.b16 %v3794
        %v3916 = vunpack.c.h.b16 %v3794
        %v3917 = vunpack.c.l.b16 %v3795
        %v3918 = vunpack.c.h.b16 %v3795
        %v3919 = vunpack.c.l.b16 %v3796
        %v3920 = vunpack.c.h.b16 %v3796
        %v3921 = vunpack.c.l.b16 %v3797
        %v3922 = vunpack.c.h.b16 %v3797
        %v3923 = vunpack.c.l.b16 %v3798
        %v3924 = vunpack.c.h.b16 %v3798
        %v3925 = vunpack.c.l.b16 %v3799
        %v3926 = vunpack.c.h.b16 %v3799
        %v3927 = vunpack.c.l.b16 %v3800
        %v3928 = vunpack.c.h.b16 %v3800
        %v3929 = vunpack.c.l.b16 %v3801
        %v3930 = vunpack.c.h.b16 %v3801
        %v3931 = vunpack.c.l.b16 %v3802
        %v3932 = vunpack.c.h.b16 %v3802
        %v3933 = vunpack.c.l.b16 %v3803
        %v3934 = vunpack.c.h.b16 %v3803
        %v3935 = vunpack.c.l.b16 %v3804
        %v3936 = vunpack.c.h.b16 %v3804
        %v3937 = vunpack.c.l.b16 %v3805
        %v3938 = vunpack.c.h.b16 %v3805
        %v3939 = vunpack.c.l.b16 %v3806
        %v3940 = vunpack.c.h.b16 %v3806
        %v3941 = vunpack.c.l.b16 %v3807
        %v3942 = vunpack.c.h.b16 %v3807
        %v3943 = vunpack.c.l.b16 %v3808
        %v3944 = vunpack.c.h.b16 %v3808
        %v3945 = vunpack.c.l.b16 %v3809
        %v3946 = vunpack.c.h.b16 %v3809
        %v3947 = vpack.c.b16 %v3885, %v3883
        %v3948 = vpack.c.b16 %v3886, %v3884
        %v3949 = vpack.c.b16 %v3889, %v3887
        %v3950 = vpack.c.b16 %v3890, %v3888
        %v3951 = vpack.c.b16 %v3893, %v3891
        %v3952 = vpack.c.b16 %v3894, %v3892
        %v3953 = vpack.c.b16 %v3897, %v3895
        %v3954 = vpack.c.b16 %v3898, %v3896
        %v3955 = vpack.c.b16 %v3901, %v3899
        %v3956 = vpack.c.b16 %v3902, %v3900
        %v3957 = vpack.c.b16 %v3905, %v3903
        %v3958 = vpack.c.b16 %v3906, %v3904
        %v3959 = vpack.c.b16 %v3909, %v3907
        %v3960 = vpack.c.b16 %v3910, %v3908
        %v3961 = vpack.c.b16 %v3913, %v3911
        %v3962 = vpack.c.b16 %v3914, %v3912
        %v3963 = vpack.c.b16 %v3917, %v3915
        %v3964 = vpack.c.b16 %v3918, %v3916
        %v3965 = vpack.c.b16 %v3921, %v3919
        %v3966 = vpack.c.b16 %v3922, %v3920
        %v3967 = vpack.c.b16 %v3925, %v3923
        %v3968 = vpack.c.b16 %v3926, %v3924
        %v3969 = vpack.c.b16 %v3929, %v3927
        %v3970 = vpack.c.b16 %v3930, %v3928
        %v3971 = vpack.c.b16 %v3933, %v3931
        %v3972 = vpack.c.b16 %v3934, %v3932
        %v3973 = vpack.c.b16 %v3937, %v3935
        %v3974 = vpack.c.b16 %v3938, %v3936
        %v3975 = vpack.c.b16 %v3941, %v3939
        %v3976 = vpack.c.b16 %v3942, %v3940
        %v3977 = vpack.c.b16 %v3945, %v3943
        %v3978 = vpack.c.b16 %v3946, %v3944
        %4011 = vmatprep.subr.bf16.mxu0 %v3948
        %4012 = vmatpush1.bf16.msra.mxu0 %v3947
        %4013 = vmatprep.subr.bf16.mxu0 %v3950
        %4014 = vmatpush1.bf16.msra.mxu0 %v3949
        %4015 = vmatprep.subr.bf16.mxu0 %v3952
        %4016 = vmatpush1.bf16.msra.mxu0 %v3951
        %4017 = vmatprep.subr.bf16.mxu0 %v3954
        %4018 = vmatpush1.bf16.msra.mxu0 %v3953
        %4019 = vmatprep.subr.bf16.mxu0 %v3956
        %4020 = vmatpush1.bf16.msra.mxu0 %v3955
        %4021 = vmatprep.subr.bf16.mxu0 %v3958
        %4022 = vmatpush1.bf16.msra.mxu0 %v3957
        %4023 = vmatprep.subr.bf16.mxu0 %v3960
        %4024 = vmatpush1.bf16.msra.mxu0 %v3959
        %4025 = vmatprep.subr.bf16.mxu0 %v3962
        %4026 = vmatpush1.bf16.msra.mxu0 %v3961
        %4027 = vmatprep.subr.bf16.mxu0 %v3964
        %4028 = vmatpush1.bf16.msra.mxu0 %v3963
        %4029 = vmatprep.subr.bf16.mxu0 %v3966
        %4030 = vmatpush1.bf16.msra.mxu0 %v3965
        %4031 = vmatprep.subr.bf16.mxu0 %v3968
        %4032 = vmatpush1.bf16.msra.mxu0 %v3967
        %4033 = vmatprep.subr.bf16.mxu0 %v3970
        %4034 = vmatpush1.bf16.msra.mxu0 %v3969
        %4035 = vmatprep.subr.bf16.mxu0 %v3972
        %4036 = vmatpush1.bf16.msra.mxu0 %v3971
        %4037 = vmatprep.subr.bf16.mxu0 %v3974
        %4038 = vmatpush1.bf16.msra.mxu0 %v3973
        %4039 = vmatprep.subr.bf16.mxu0 %v3976
        %4040 = vmatpush1.bf16.msra.mxu0 %v3975
        %4041 = vmatprep.subr.bf16.mxu0 %v3978
        %4042 = vmatpush1.bf16.msra.mxu0 %v3977
        %4043 = vmatprep.mubr.bf16.mxu0 %v3839
        %4044 = vmatmul.mubr.bf16.gmra.mrb[0].mxu0 %v3838
        %v4045 = vpop.f32.mrb[0].mxu0
        %v4046 = vadd.f32 %v3844, %v4045
        %v4047 = vpop.f32.mrb[0].mxu0
        %v4048 = vadd.f32 %v3848, %v4047
        %v4049 = vpop.f32.mrb[0].mxu0
        %v4050 = vpop.f32.mrb[0].mxu0
        %4051 = vdwg.mxu0
        %v4052 = vxor.u32 %v4046, 2147483648
        %v4053 = vmul.f32 %v4052, 1.442695
        %v4054 = vpow.pop %v4053
        %v4055 = vadd.f32 %v4054, 1.0
        %v4056 = vrcp.pop %v4055
        %v4057 = vmul.f32 1.0, %v4056
        %v4058 = vtanh.pop %v4048
        %v4059 = vxor.u32 %v4048, 2147483648
        %v4060 = vmul.f32 %v4059, 1.442695
        %v4061 = vpow.pop %v4060
        %v4062 = vadd.f32 %v4061, 1.0
        %v4063 = vrcp.pop %v4062
        %v4064 = vmul.f32 1.0, %v4063
        %v4065 = vmul.f32 %v4057, 0.0
        %v4066 = vmul.f32 %v4057, %v4058
        %4068 = vrot.lane.b32.xlu0 %v4066, 64
        %v4069 = vpop.permute.xlu0 %4068
        %v4071 = vadd.f32 %v4065, %v4069
        %v4072 = vtanh.pop %v4071
        %v4073 = vmul.f32 %v4064, %v4072
        %v4074 = vpack.c.bf16 %v4073, %v4073
        %4076 = vrot.lane.b32.xlu0 %v4074, 64
        %v4077 = vpop.permute.xlu0 %4076
        %v4086 = vunpack.c.l.b16 %v3818
        %v4087 = vunpack.c.h.b16 %v3818
        %v4088 = vunpack.c.l.b16 %v3819
        %v4089 = vunpack.c.h.b16 %v3819
        %v4090 = vunpack.c.l.b16 %v3820
        %v4091 = vunpack.c.h.b16 %v3820
        %v4092 = vunpack.c.l.b16 %v3821
        %v4093 = vunpack.c.h.b16 %v3821
        %v4094 = vunpack.c.l.b16 %v3822
        %v4095 = vunpack.c.h.b16 %v3822
        %v4096 = vunpack.c.l.b16 %v3823
        %v4097 = vunpack.c.h.b16 %v3823
        %v4098 = vunpack.c.l.b16 %v3824
        %v4099 = vunpack.c.h.b16 %v3824
        %v4100 = vunpack.c.l.b16 %v3825
        %v4101 = vunpack.c.h.b16 %v3825
        %v4102 = vpack.c.b16 %v4088, %v4086
        %v4103 = vpack.c.b16 %v4089, %v4087
        %v4104 = vpack.c.b16 %v4092, %v4090
        %v4105 = vpack.c.b16 %v4093, %v4091
        %v4106 = vpack.c.b16 %v4096, %v4094
        %v4107 = vpack.c.b16 %v4097, %v4095
        %v4108 = vpack.c.b16 %v4100, %v4098
        %v4109 = vpack.c.b16 %v4101, %v4099
        %v4119 = vlaneseq
        %v4120 = vshrl.u32 %v4119, 7
        %v4121 = vsub.s32 0, %v4120
        %v4122 = vrot.slane %v3837, %v4121
        %v4123 = vlaneseq
        %v4124 = vshrl.u32 %v4123, 7
        %v4125 = vsub.s32 1, %v4124
        %v4126 = vrot.slane %v3837, %v4125
        %vm4129 = vcmask 523264
        %v4131 = vsel %vm4129, %v4077, 0
        %4133 = vmatprep.subr.bf16.mxu0 %v4103
        %4134 = vmatpush1.bf16.msra.mxu0 %v4102
        %4135 = vmatprep.subr.bf16.mxu0 %v4105
        %4136 = vmatpush1.bf16.msra.mxu0 %v4104
        %4137 = vmatprep.subr.bf16.mxu0 %v4107
        %4138 = vmatpush1.bf16.msra.mxu0 %v4106
        %4139 = vmatprep.subr.bf16.mxu0 %v4109
        %4140 = vmatpush1.bf16.msra.mxu0 %v4108
        %4141 = vmatprep.subr.bf16.mxu0 0
        %4142 = vmatpush1.bf16.msra.mxu0 0
        %4143 = vmatprep.subr.bf16.mxu0 0
        %4144 = vmatpush1.bf16.msra.mxu0 0
        %4145 = vmatprep.subr.bf16.mxu0 0
        %4146 = vmatpush1.bf16.msra.mxu0 0
        %4147 = vmatprep.subr.bf16.mxu0 0
        %4148 = vmatpush1.bf16.msra.mxu0 0
        %4149 = vmatprep.subr.bf16.mxu0 0
        %4150 = vmatpush1.bf16.msra.mxu0 0
        %4151 = vmatprep.subr.bf16.mxu0 0
        %4152 = vmatpush1.bf16.msra.mxu0 0
        %4153 = vmatprep.subr.bf16.mxu0 0
        %4154 = vmatpush1.bf16.msra.mxu0 0
        %4155 = vmatprep.subr.bf16.mxu0 0
        %4156 = vmatpush1.bf16.msra.mxu0 0
        %4157 = vmatprep.subr.bf16.mxu0 0
        %4158 = vmatpush1.bf16.msra.mxu0 0
        %4159 = vmatprep.subr.bf16.mxu0 0
        %4160 = vmatpush1.bf16.msra.mxu0 0
        %4161 = vmatprep.subr.bf16.mxu0 0
        %4162 = vmatpush1.bf16.msra.mxu0 0
        %4163 = vmatprep.subr.bf16.mxu0 0
        %4164 = vmatpush1.bf16.msra.mxu0 0
        %4165 = vmatprep.mubr.bf16.mxu0 0
        %4166 = vmatmul.mubr.bf16.gmra.mrb[0].mxu0 %v4131
        %v4167 = vpop.f32.mrb[0].mxu0
        %v4168 = vadd.f32 %v4122, %v4167
        %v4169 = vpop.f32.mrb[0].mxu0
        %v4170 = vadd.f32 %v4126, %v4169
        %v4171 = vpop.f32.mrb[0].mxu0
        %v4172 = vpop.f32.mrb[0].mxu0
        %4173 = vdwg.mxu0
        %v4174 = vxor.u32 %v4168, 2147483648
        %v4175 = vmul.f32 %v4174, 1.442695
        %v4176 = vpow.pop %v4175
        %v4177 = vadd.f32 %v4176, 1.0
        %v4178 = vrcp.pop %v4177
        %v4179 = vmul.f32 1.0, %v4178
        %v4180 = vtanh.pop %v4170
        %v4181 = vxor.u32 %v4170, 2147483648
        %v4182 = vmul.f32 %v4181, 1.442695
        %v4183 = vpow.pop %v4182
        %v4184 = vadd.f32 %v4183, 1.0
        %v4185 = vrcp.pop %v4184
        %v4186 = vmul.f32 1.0, %v4185
        %v4187 = vmul.f32 %v4179, 0.0
        %v4188 = vmul.f32 %v4179, %v4180
        %4190 = vrot.lane.b32.xlu0 %v4188, 64
        %v4191 = vpop.permute.xlu0 %4190
        %v4193 = vadd.f32 %v4187, %v4191
        %v4194 = vtanh.pop %v4193
        %v4195 = vmul.f32 %v4186, %v4194
        %v4204 = vunpack.c.l.b16 %v3810
        %v4205 = vunpack.c.h.b16 %v3810
        %v4206 = vunpack.c.l.b16 %v3811
        %v4207 = vunpack.c.h.b16 %v3811
        %v4208 = vunpack.c.l.b16 %v3812
        %v4209 = vunpack.c.h.b16 %v3812
        %v4210 = vunpack.c.l.b16 %v3813
        %v4211 = vunpack.c.h.b16 %v3813
        %v4212 = vunpack.c.l.b16 %v3814
        %v4213 = vunpack.c.h.b16 %v3814
        %v4214 = vunpack.c.l.b16 %v3815
        %v4215 = vunpack.c.h.b16 %v3815
        %v4216 = vunpack.c.l.b16 %v3816
        %v4217 = vunpack.c.h.b16 %v3816
        %v4218 = vunpack.c.l.b16 %v3817
        %v4219 = vunpack.c.h.b16 %v3817
        %v4220 = vpack.c.b16 %v4206, %v4204
        %v4221 = vpack.c.b16 %v4207, %v4205
        %v4222 = vpack.c.b16 %v4210, %v4208
        %v4223 = vpack.c.b16 %v4211, %v4209
        %v4224 = vpack.c.b16 %v4214, %v4212
        %v4225 = vpack.c.b16 %v4215, %v4213
        %v4226 = vpack.c.b16 %v4218, %v4216
        %v4227 = vpack.c.b16 %v4219, %v4217
        %4236 = vmatprep.subr.bf16.mxu0 %v4221
        %4237 = vmatpush1.bf16.msra.mxu0 %v4220
        %4238 = vmatprep.subr.bf16.mxu0 %v4223
        %4239 = vmatpush1.bf16.msra.mxu0 %v4222
        %4240 = vmatprep.subr.bf16.mxu0 %v4225
        %4241 = vmatpush1.bf16.msra.mxu0 %v4224
        %4242 = vmatprep.subr.bf16.mxu0 %v4227
        %4243 = vmatpush1.bf16.msra.mxu0 %v4226
        %4244 = vmatprep.subr.bf16.mxu0 0
        %4245 = vmatpush1.bf16.msra.mxu0 0
        %4246 = vmatprep.subr.bf16.mxu0 0
        %4247 = vmatpush1.bf16.msra.mxu0 0
        %4248 = vmatprep.subr.bf16.mxu0 0
        %4249 = vmatpush1.bf16.msra.mxu0 0
        %4250 = vmatprep.subr.bf16.mxu0 0
        %4251 = vmatpush1.bf16.msra.mxu0 0
        %4252 = vmatprep.subr.bf16.mxu0 0
        %4253 = vmatpush1.bf16.msra.mxu0 0
        %4254 = vmatprep.subr.bf16.mxu0 0
        %4255 = vmatpush1.bf16.msra.mxu0 0
        %4256 = vmatprep.subr.bf16.mxu0 0
        %4257 = vmatpush1.bf16.msra.mxu0 0
        %4258 = vmatprep.subr.bf16.mxu0 0
        %4259 = vmatpush1.bf16.msra.mxu0 0
        %4260 = vmatprep.subr.bf16.mxu0 0
        %4261 = vmatpush1.bf16.msra.mxu0 0
        %4262 = vmatprep.subr.bf16.mxu0 0
        %4263 = vmatpush1.bf16.msra.mxu0 0
        %4264 = vmatprep.subr.bf16.mxu0 0
        %4265 = vmatpush1.bf16.msra.mxu0 0
        %4266 = vmatprep.subr.bf16.mxu0 0
        %4267 = vmatpush1.bf16.msra.mxu0 0
        %4268 = vmatprep.mubr.bf16.mxu0 0
        %4269 = vmatmul.mubr.bf16.gmra.mrb[0].mxu0 %v4131
        %v4270 = vpop.f32.mrb[0].mxu0
        %v4271 = vadd.f32 0.0, %v4270
        %v4272 = vpop.f32.mrb[0].mxu0
        %v4273 = vadd.f32 0.0, %v4272
        %v4274 = vpop.f32.mrb[0].mxu0
        %v4275 = vpop.f32.mrb[0].mxu0
        %4276 = vdwg.mxu0
        %v4279 = vrot.slane %v4271, 7
        %v4280 = vrot.slane %v4273, 7
        %v4283 = vadd.f32 %v4046, %v4279
        %v4284 = vadd.f32 %v4048, %v4280
        %v4285 = vxor.u32 %v4283, 2147483648
        %v4286 = vmul.f32 %v4285, 1.442695
        %v4287 = vpow.pop %v4286
        %v4288 = vadd.f32 %v4287, 1.0
        %v4289 = vrcp.pop %v4288
        %v4290 = vmul.f32 1.0, %v4289
        %v4291 = vtanh.pop %v4284
        %v4292 = vxor.u32 %v4284, 2147483648
        %v4293 = vmul.f32 %v4292, 1.442695
        %v4294 = vpow.pop %v4293
        %v4295 = vadd.f32 %v4294, 1.0
        %v4296 = vrcp.pop %v4295
        %v4297 = vmul.f32 1.0, %v4296
        %v4299 = vrot.slane %v4071, 7
        %v4301 = vmul.f32 %v4290, %v4299
        %v4302 = vmul.f32 %v4290, %v4291
        %4304 = vrot.lane.b32.xlu0 %v4302, 64
        %v4305 = vpop.permute.xlu0 %4304
        %v4307 = vadd.f32 %v4301, %v4305
        %v4308 = vtanh.pop %v4307
        %v4309 = vmul.f32 %v4297, %v4308
        %v4310 = vpack.c.bf16 %v4309, %v4309
        %v4312 = vshrl.u32 %v4310, 16
        %4314 = vrot.lane.b32.xlu0 %v4312, 64
        %v4315 = vpop.permute.xlu0 %4314
        %v4317 = vsel %vm4129, %v4315, 0
        %4319 = vmatprep.subr.bf16.mxu0 %v4103
        %4320 = vmatpush1.bf16.msra.mxu0 %v4102
        %4321 = vmatprep.subr.bf16.mxu0 %v4105
        %4322 = vmatpush1.bf16.msra.mxu0 %v4104
        %4323 = vmatprep.subr.bf16.mxu0 %v4107
        %4324 = vmatpush1.bf16.msra.mxu0 %v4106
        %4325 = vmatprep.subr.bf16.mxu0 %v4109
        %4326 = vmatpush1.bf16.msra.mxu0 %v4108
        %4327 = vmatprep.subr.bf16.mxu0 0
        %4328 = vmatpush1.bf16.msra.mxu0 0
        %4329 = vmatprep.subr.bf16.mxu0 0
        %4330 = vmatpush1.bf16.msra.mxu0 0
        %4331 = vmatprep.subr.bf16.mxu0 0
        %4332 = vmatpush1.bf16.msra.mxu0 0
        %4333 = vmatprep.subr.bf16.mxu0 0
        %4334 = vmatpush1.bf16.msra.mxu0 0
        %4335 = vmatprep.subr.bf16.mxu0 0
        %4336 = vmatpush1.bf16.msra.mxu0 0
        %4337 = vmatprep.subr.bf16.mxu0 0
        %4338 = vmatpush1.bf16.msra.mxu0 0
        %4339 = vmatprep.subr.bf16.mxu0 0
        %4340 = vmatpush1.bf16.msra.mxu0 0
        %4341 = vmatprep.subr.bf16.mxu0 0
        %4342 = vmatpush1.bf16.msra.mxu0 0
        %4343 = vmatprep.subr.bf16.mxu0 0
        %4344 = vmatpush1.bf16.msra.mxu0 0
        %4345 = vmatprep.subr.bf16.mxu0 0
        %4346 = vmatpush1.bf16.msra.mxu0 0
        %4347 = vmatprep.subr.bf16.mxu0 0
        %4348 = vmatpush1.bf16.msra.mxu0 0
        %4349 = vmatprep.subr.bf16.mxu0 0
        %4350 = vmatpush1.bf16.msra.mxu0 0
        %4351 = vmatprep.mubr.bf16.mxu0 0
        %4352 = vmatmul.mubr.bf16.gmra.mrb[0].mxu0 %v4317
        %v4353 = vpop.f32.mrb[0].mxu0
        %v4354 = vadd.f32 %v4122, %v4353
        %v4355 = vpop.f32.mrb[0].mxu0
        %v4356 = vadd.f32 %v4126, %v4355
        %v4357 = vpop.f32.mrb[0].mxu0
        %v4358 = vpop.f32.mrb[0].mxu0
        %4359 = vdwg.mxu0
        %v4360 = vpack.c.bf16 %v4195, %v4195
        %4362 = vrot.lane.b32.xlu0 %v4360, 64
        %v4363 = vpop.permute.xlu0 %4362
        %v4372 = vunpack.c.l.b16 %v3826
        %v4373 = vunpack.c.h.b16 %v3826
        %v4374 = vunpack.c.l.b16 %v3827
        %v4375 = vunpack.c.h.b16 %v3827
        %v4376 = vunpack.c.l.b16 %v3828
        %v4377 = vunpack.c.h.b16 %v3828
        %v4378 = vunpack.c.l.b16 %v3829
        %v4379 = vunpack.c.h.b16 %v3829
        %v4380 = vunpack.c.l.b16 %v3830
        %v4381 = vunpack.c.h.b16 %v3830
        %v4382 = vunpack.c.l.b16 %v3831
        %v4383 = vunpack.c.h.b16 %v3831
        %v4384 = vunpack.c.l.b16 %v3832
        %v4385 = vunpack.c.h.b16 %v3832
        %v4386 = vunpack.c.l.b16 %v3833
        %v4387 = vunpack.c.h.b16 %v3833
        %v4388 = vpack.c.b16 %v4374, %v4372
        %v4389 = vpack.c.b16 %v4375, %v4373
        %v4390 = vpack.c.b16 %v4378, %v4376
        %v4391 = vpack.c.b16 %v4379, %v4377
        %v4392 = vpack.c.b16 %v4382, %v4380
        %v4393 = vpack.c.b16 %v4383, %v4381
        %v4394 = vpack.c.b16 %v4386, %v4384
        %v4395 = vpack.c.b16 %v4387, %v4385
        %v4405 = vsel %vm4129, %v4363, 0
        %4407 = vmatprep.subr.bf16.mxu0 %v4389
        %4408 = vmatpush1.bf16.msra.mxu0 %v4388
        %4409 = vmatprep.subr.bf16.mxu0 %v4391
        %4410 = vmatpush1.bf16.msra.mxu0 %v4390
        %4411 = vmatprep.subr.bf16.mxu0 %v4393
        %4412 = vmatpush1.bf16.msra.mxu0 %v4392
        %4413 = vmatprep.subr.bf16.mxu0 %v4395
        %4414 = vmatpush1.bf16.msra.mxu0 %v4394
        %4415 = vmatprep.subr.bf16.mxu0 0
        %4416 = vmatpush1.bf16.msra.mxu0 0
        %4417 = vmatprep.subr.bf16.mxu0 0
        %4418 = vmatpush1.bf16.msra.mxu0 0
        %4419 = vmatprep.subr.bf16.mxu0 0
        %4420 = vmatpush1.bf16.msra.mxu0 0
        %4421 = vmatprep.subr.bf16.mxu0 0
        %4422 = vmatpush1.bf16.msra.mxu0 0
        %4423 = vmatprep.subr.bf16.mxu0 0
        %4424 = vmatpush1.bf16.msra.mxu0 0
        %4425 = vmatprep.subr.bf16.mxu0 0
        %4426 = vmatpush1.bf16.msra.mxu0 0
        %4427 = vmatprep.subr.bf16.mxu0 0
        %4428 = vmatpush1.bf16.msra.mxu0 0
        %4429 = vmatprep.subr.bf16.mxu0 0
        %4430 = vmatpush1.bf16.msra.mxu0 0
        %4431 = vmatprep.subr.bf16.mxu0 0
        %4432 = vmatpush1.bf16.msra.mxu0 0
        %4433 = vmatprep.subr.bf16.mxu0 0
        %4434 = vmatpush1.bf16.msra.mxu0 0
        %4435 = vmatprep.subr.bf16.mxu0 0
        %4436 = vmatpush1.bf16.msra.mxu0 0
        %4437 = vmatprep.subr.bf16.mxu0 0
        %4438 = vmatpush1.bf16.msra.mxu0 0
        %4439 = vmatprep.mubr.bf16.mxu0 0
        %4440 = vmatmul.mubr.bf16.gmra.mrb[0].mxu0 %v4405
        %v4441 = vpop.f32.mrb[0].mxu0
        %v4442 = vadd.f32 0.0, %v4441
        %v4443 = vpop.f32.mrb[0].mxu0
        %v4444 = vadd.f32 0.0, %v4443
        %v4445 = vpop.f32.mrb[0].mxu0
        %v4446 = vpop.f32.mrb[0].mxu0
        %4447 = vdwg.mxu0
        %v4448 = vadd.f32 %v4354, %v4442
        %v4449 = vadd.f32 %v4356, %v4444
        %v4450 = vxor.u32 %v4448, 2147483648
        %v4451 = vmul.f32 %v4450, 1.442695
        %v4452 = vpow.pop %v4451
        %v4453 = vadd.f32 %v4452, 1.0
        %v4454 = vrcp.pop %v4453
        %v4455 = vmul.f32 1.0, %v4454
        %v4456 = vtanh.pop %v4449
        %v4457 = vxor.u32 %v4449, 2147483648
        %v4458 = vmul.f32 %v4457, 1.442695
        %v4459 = vpow.pop %v4458
        %v4460 = vadd.f32 %v4459, 1.0
        %v4461 = vrcp.pop %v4460
        %v4462 = vmul.f32 1.0, %v4461
        %v4463 = vmul.f32 %v4455, %v4193
        %v4464 = vmul.f32 %v4455, %v4456
        %4466 = vrot.lane.b32.xlu0 %v4464, 64
        %v4467 = vpop.permute.xlu0 %4466
        %v4469 = vadd.f32 %v4463, %v4467
        %v4470 = vtanh.pop %v4469
        %v4471 = vmul.f32 %v4462, %v4470
        %4472 = vmatprep.subr.bf16.mxu0 %v4221
        %4473 = vmatpush1.bf16.msra.mxu0 %v4220
        %4474 = vmatprep.subr.bf16.mxu0 %v4223
        %4475 = vmatpush1.bf16.msra.mxu0 %v4222
        %4476 = vmatprep.subr.bf16.mxu0 %v4225
        %4477 = vmatpush1.bf16.msra.mxu0 %v4224
        %4478 = vmatprep.subr.bf16.mxu0 %v4227
        %4479 = vmatpush1.bf16.msra.mxu0 %v4226
        %4480 = vmatprep.subr.bf16.mxu0 0
        %4481 = vmatpush1.bf16.msra.mxu0 0
        %4482 = vmatprep.subr.bf16.mxu0 0
        %4483 = vmatpush1.bf16.msra.mxu0 0
        %4484 = vmatprep.subr.bf16.mxu0 0
        %4485 = vmatpush1.bf16.msra.mxu0 0
        %4486 = vmatprep.subr.bf16.mxu0 0
        %4487 = vmatpush1.bf16.msra.mxu0 0
        %4488 = vmatprep.subr.bf16.mxu0 0
        %4489 = vmatpush1.bf16.msra.mxu0 0
        %4490 = vmatprep.subr.bf16.mxu0 0
        %4491 = vmatpush1.bf16.msra.mxu0 0
        %4492 = vmatprep.subr.bf16.mxu0 0
        %4493 = vmatpush1.bf16.msra.mxu0 0
        %4494 = vmatprep.subr.bf16.mxu0 0
        %4495 = vmatpush1.bf16.msra.mxu0 0
        %4496 = vmatprep.subr.bf16.mxu0 0
        %4497 = vmatpush1.bf16.msra.mxu0 0
        %4498 = vmatprep.subr.bf16.mxu0 0
        %4499 = vmatpush1.bf16.msra.mxu0 0
        %4500 = vmatprep.subr.bf16.mxu0 0
        %4501 = vmatpush1.bf16.msra.mxu0 0
        %4502 = vmatprep.subr.bf16.mxu0 0
        %4503 = vmatpush1.bf16.msra.mxu0 0
        %4504 = vmatprep.mubr.bf16.mxu0 0
        %4505 = vmatmul.mubr.bf16.gmra.mrb[0].mxu0 %v4317
        %v4506 = vpop.f32.mrb[0].mxu0
        %v4507 = vadd.f32 0.0, %v4506
        %v4508 = vpop.f32.mrb[0].mxu0
        %v4509 = vadd.f32 0.0, %v4508
        %v4510 = vpop.f32.mrb[0].mxu0
        %v4511 = vpop.f32.mrb[0].mxu0
        %4512 = vdwg.mxu0
        %v4515 = vrot.slane %v4507, 6
        %v4516 = vrot.slane %v4509, 6
        %v4519 = vadd.f32 %v4046, %v4515
        %v4520 = vadd.f32 %v4048, %v4516
        %v4521 = vxor.u32 %v4519, 2147483648
        %v4522 = vmul.f32 %v4521, 1.442695
        %v4523 = vpow.pop %v4522
        %v4524 = vadd.f32 %v4523, 1.0
        %v4525 = vrcp.pop %v4524
        %v4526 = vmul.f32 1.0, %v4525
        %v4527 = vtanh.pop %v4520
        %v4528 = vxor.u32 %v4520, 2147483648
        %v4529 = vmul.f32 %v4528, 1.442695
        %v4530 = vpow.pop %v4529
        %v4531 = vadd.f32 %v4530, 1.0
        %v4532 = vrcp.pop %v4531
        %v4533 = vmul.f32 1.0, %v4532
        %v4535 = vrot.slane %v4307, 7
        %v4537 = vmul.f32 %v4526, %v4535
        %v4538 = vmul.f32 %v4526, %v4527
        %4540 = vrot.lane.b32.xlu0 %v4538, 64
        %v4541 = vpop.permute.xlu0 %4540
        %v4543 = vadd.f32 %v4537, %v4541
        %v4544 = vtanh.pop %v4543
        %v4545 = vmul.f32 %v4533, %v4544
        %v4546 = vpack.c.bf16 %v4545, %v4545
        %v4548 = vrot.slane %v4546, 1
        %4549 = vrot.lane.b32.xlu0 %v4548, 64
        %v4550 = vpop.permute.xlu0 %4549
        %v4552 = vsel %vm4129, %v4550, 0
        %4554 = vmatprep.subr.bf16.mxu0 %v4103
        %4555 = vmatpush1.bf16.msra.mxu0 %v4102
        %4556 = vmatprep.subr.bf16.mxu0 %v4105
        %4557 = vmatpush1.bf16.msra.mxu0 %v4104
        %4558 = vmatprep.subr.bf16.mxu0 %v4107
        %4559 = vmatpush1.bf16.msra.mxu0 %v4106
        %4560 = vmatprep.subr.bf16.mxu0 %v4109
        %4561 = vmatpush1.bf16.msra.mxu0 %v4108
        %4562 = vmatprep.subr.bf16.mxu0 0
        %4563 = vmatpush1.bf16.msra.mxu0 0
        %4564 = vmatprep.subr.bf16.mxu0 0
        %4565 = vmatpush1.bf16.msra.mxu0 0
        %4566 = vmatprep.subr.bf16.mxu0 0
        %4567 = vmatpush1.bf16.msra.mxu0 0
        %4568 = vmatprep.subr.bf16.mxu0 0
        %4569 = vmatpush1.bf16.msra.mxu0 0
        %4570 = vmatprep.subr.bf16.mxu0 0
        %4571 = vmatpush1.bf16.msra.mxu0 0
        %4572 = vmatprep.subr.bf16.mxu0 0
        %4573 = vmatpush1.bf16.msra.mxu0 0
        %4574 = vmatprep.subr.bf16.mxu0 0
        %4575 = vmatpush1.bf16.msra.mxu0 0
        %4576 = vmatprep.subr.bf16.mxu0 0
        %4577 = vmatpush1.bf16.msra.mxu0 0
        %4578 = vmatprep.subr.bf16.mxu0 0
        %4579 = vmatpush1.bf16.msra.mxu0 0
        %4580 = vmatprep.subr.bf16.mxu0 0
        %4581 = vmatpush1.bf16.msra.mxu0 0
        %4582 = vmatprep.subr.bf16.mxu0 0
        %4583 = vmatpush1.bf16.msra.mxu0 0
        %4584 = vmatprep.subr.bf16.mxu0 0
        %4585 = vmatpush1.bf16.msra.mxu0 0
        %4586 = vmatprep.mubr.bf16.mxu0 0
        %4587 = vmatmul.mubr.bf16.gmra.mrb[0].mxu0 %v4552
        %v4588 = vpop.f32.mrb[0].mxu0
        %v4589 = vadd.f32 %v4122, %v4588
        %v4590 = vpop.f32.mrb[0].mxu0
        %v4591 = vadd.f32 %v4126, %v4590
        %v4592 = vpop.f32.mrb[0].mxu0
        %v4593 = vpop.f32.mrb[0].mxu0
        %4594 = vdwg.mxu0
        %v4595 = vpack.c.bf16 %v4471, %v4471
        %4597 = vrot.lane.b32.xlu0 %v4595, 64
        %v4598 = vpop.permute.xlu0 %4597
        %v4600 = vsel %vm4129, %v4598, 0
        %4602 = vmatprep.subr.bf16.mxu0 %v4389
        %4603 = vmatpush1.bf16.msra.mxu0 %v4388
        %4604 = vmatprep.subr.bf16.mxu0 %v4391
        %4605 = vmatpush1.bf16.msra.mxu0 %v4390
        %4606 = vmatprep.subr.bf16.mxu0 %v4393
        %4607 = vmatpush1.bf16.msra.mxu0 %v4392
        %4608 = vmatprep.subr.bf16.mxu0 %v4395
        %4609 = vmatpush1.bf16.msra.mxu0 %v4394
        %4610 = vmatprep.subr.bf16.mxu0 0
        %4611 = vmatpush1.bf16.msra.mxu0 0
        %4612 = vmatprep.subr.bf16.mxu0 0
        %4613 = vmatpush1.bf16.msra.mxu0 0
        %4614 = vmatprep.subr.bf16.mxu0 0
        %4615 = vmatpush1.bf16.msra.mxu0 0
        %4616 = vmatprep.subr.bf16.mxu0 0
        %4617 = vmatpush1.bf16.msra.mxu0 0
        %4618 = vmatprep.subr.bf16.mxu0 0
        %4619 = vmatpush1.bf16.msra.mxu0 0
        %4620 = vmatprep.subr.bf16.mxu0 0
        %4621 = vmatpush1.bf16.msra.mxu0 0
        %4622 = vmatprep.subr.bf16.mxu0 0
        %4623 = vmatpush1.bf16.msra.mxu0 0
        %4624 = vmatprep.subr.bf16.mxu0 0
        %4625 = vmatpush1.bf16.msra.mxu0 0
        %4626 = vmatprep.subr.bf16.mxu0 0
        %4627 = vmatpush1.bf16.msra.mxu0 0
        %4628 = vmatprep.subr.bf16.mxu0 0
        %4629 = vmatpush1.bf16.msra.mxu0 0
        %4630 = vmatprep.subr.bf16.mxu0 0
        %4631 = vmatpush1.bf16.msra.mxu0 0
        %4632 = vmatprep.subr.bf16.mxu0 0
        %4633 = vmatpush1.bf16.msra.mxu0 0
        %4634 = vmatprep.mubr.bf16.mxu0 0
        %4635 = vmatmul.mubr.bf16.gmra.mrb[0].mxu0 %v4600
        %v4636 = vpop.f32.mrb[0].mxu0
        %v4637 = vadd.f32 0.0, %v4636
        %v4638 = vpop.f32.mrb[0].mxu0
        %v4639 = vadd.f32 0.0, %v4638
        %v4640 = vpop.f32.mrb[0].mxu0
        %v4641 = vpop.f32.mrb[0].mxu0
        %4642 = vdwg.mxu0
        %v4643 = vadd.f32 %v4589, %v4637
        %v4644 = vadd.f32 %v4591, %v4639
        %v4645 = vxor.u32 %v4643, 2147483648
        %v4646 = vmul.f32 %v4645, 1.442695
        %v4647 = vpow.pop %v4646
        %v4648 = vadd.f32 %v4647, 1.0
        %v4649 = vrcp.pop %v4648
        %v4650 = vmul.f32 1.0, %v4649
        %v4651 = vtanh.pop %v4644
        %v4652 = vxor.u32 %v4644, 2147483648
        %v4653 = vmul.f32 %v4652, 1.442695
        %v4654 = vpow.pop %v4653
        %v4655 = vadd.f32 %v4654, 1.0
        %v4656 = vrcp.pop %v4655
        %v4657 = vmul.f32 1.0, %v4656
        %v4658 = vmul.f32 %v4650, %v4469
        %v4659 = vmul.f32 %v4650, %v4651
        %4661 = vrot.lane.b32.xlu0 %v4659, 64
        %v4662 = vpop.permute.xlu0 %4661
        %v4664 = vadd.f32 %v4658, %v4662
        %v4665 = vtanh.pop %v4664
        %v4666 = vmul.f32 %v4657, %v4665
        %4667 = vmatprep.subr.bf16.mxu0 %v4221
        %4668 = vmatpush1.bf16.msra.mxu0 %v4220
        %4669 = vmatprep.subr.bf16.mxu0 %v4223
        %4670 = vmatpush1.bf16.msra.mxu0 %v4222
        %4671 = vmatprep.subr.bf16.mxu0 %v4225
        %4672 = vmatpush1.bf16.msra.mxu0 %v4224
        %4673 = vmatprep.subr.bf16.mxu0 %v4227
        %4674 = vmatpush1.bf16.msra.mxu0 %v4226
        %4675 = vmatprep.subr.bf16.mxu0 0
        %4676 = vmatpush1.bf16.msra.mxu0 0
        %4677 = vmatprep.subr.bf16.mxu0 0
        %4678 = vmatpush1.bf16.msra.mxu0 0
        %4679 = vmatprep.subr.bf16.mxu0 0
        %4680 = vmatpush1.bf16.msra.mxu0 0
        %4681 = vmatprep.subr.bf16.mxu0 0
        %4682 = vmatpush1.bf16.msra.mxu0 0
        %4683 = vmatprep.subr.bf16.mxu0 0
        %4684 = vmatpush1.bf16.msra.mxu0 0
        %4685 = vmatprep.subr.bf16.mxu0 0
        %4686 = vmatpush1.bf16.msra.mxu0 0
        %4687 = vmatprep.subr.bf16.mxu0 0
        %4688 = vmatpush1.bf16.msra.mxu0 0
        %4689 = vmatprep.subr.bf16.mxu0 0
        %4690 = vmatpush1.bf16.msra.mxu0 0
        %4691 = vmatprep.subr.bf16.mxu0 0
        %4692 = vmatpush1.bf16.msra.mxu0 0
        %4693 = vmatprep.subr.bf16.mxu0 0
        %4694 = vmatpush1.bf16.msra.mxu0 0
        %4695 = vmatprep.subr.bf16.mxu0 0
        %4696 = vmatpush1.bf16.msra.mxu0 0
        %4697 = vmatprep.subr.bf16.mxu0 0
        %4698 = vmatpush1.bf16.msra.mxu0 0
        %4699 = vmatprep.mubr.bf16.mxu0 0
        %4700 = vmatmul.mubr.bf16.gmra.mrb[0].mxu0 %v4552
        %v4701 = vpop.f32.mrb[0].mxu0
        %v4702 = vadd.f32 0.0, %v4701
        %v4703 = vpop.f32.mrb[0].mxu0
        %v4704 = vadd.f32 0.0, %v4703
        %v4705 = vpop.f32.mrb[0].mxu0
        %v4706 = vpop.f32.mrb[0].mxu0
        %4707 = vdwg.mxu0
        %v4710 = vrot.slane %v4702, 5
        %v4711 = vrot.slane %v4704, 5
        %v4714 = vadd.f32 %v4046, %v4710
        %v4715 = vadd.f32 %v4048, %v4711
        %v4716 = vxor.u32 %v4714, 2147483648
        %v4717 = vmul.f32 %v4716, 1.442695
        %v4718 = vpow.pop %v4717
        %v4719 = vadd.f32 %v4718, 1.0
        %v4720 = vrcp.pop %v4719
        %v4721 = vmul.f32 1.0, %v4720
        %v4722 = vtanh.pop %v4715
        %v4723 = vxor.u32 %v4715, 2147483648
        %v4724 = vmul.f32 %v4723, 1.442695
        %v4725 = vpow.pop %v4724
        %v4726 = vadd.f32 %v4725, 1.0
        %v4727 = vrcp.pop %v4726
        %v4728 = vmul.f32 1.0, %v4727
        %v4730 = vrot.slane %v4543, 7
        %v4732 = vmul.f32 %v4721, %v4730
        %v4733 = vmul.f32 %v4721, %v4722
        %4735 = vrot.lane.b32.xlu0 %v4733, 64
        %v4736 = vpop.permute.xlu0 %4735
        %v4738 = vadd.f32 %v4732, %v4736
        %v4739 = vtanh.pop %v4738
        %v4740 = vmul.f32 %v4728, %v4739
        %v4741 = vpack.c.bf16 %v4740, %v4740
        %v4743 = vshrl.u32 %v4741, 16
        %v4745 = vrot.slane %v4743, 1
        %4746 = vrot.lane.b32.xlu0 %v4745, 64
        %v4747 = vpop.permute.xlu0 %4746
        %v4749 = vsel %vm4129, %v4747, 0
        %4751 = vmatprep.subr.bf16.mxu0 %v4103
        %4752 = vmatpush1.bf16.msra.mxu0 %v4102
        %4753 = vmatprep.subr.bf16.mxu0 %v4105
        %4754 = vmatpush1.bf16.msra.mxu0 %v4104
        %4755 = vmatprep.subr.bf16.mxu0 %v4107
        %4756 = vmatpush1.bf16.msra.mxu0 %v4106
        %4757 = vmatprep.subr.bf16.mxu0 %v4109
        %4758 = vmatpush1.bf16.msra.mxu0 %v4108
        %4759 = vmatprep.subr.bf16.mxu0 0
        %4760 = vmatpush1.bf16.msra.mxu0 0
        %4761 = vmatprep.subr.bf16.mxu0 0
        %4762 = vmatpush1.bf16.msra.mxu0 0
        %4763 = vmatprep.subr.bf16.mxu0 0
        %4764 = vmatpush1.bf16.msra.mxu0 0
        %4765 = vmatprep.subr.bf16.mxu0 0
        %4766 = vmatpush1.bf16.msra.mxu0 0
        %4767 = vmatprep.subr.bf16.mxu0 0
        %4768 = vmatpush1.bf16.msra.mxu0 0
        %4769 = vmatprep.subr.bf16.mxu0 0
        %4770 = vmatpush1.bf16.msra.mxu0 0
        %4771 = vmatprep.subr.bf16.mxu0 0
        %4772 = vmatpush1.bf16.msra.mxu0 0
        %4773 = vmatprep.subr.bf16.mxu0 0
        %4774 = vmatpush1.bf16.msra.mxu0 0
        %4775 = vmatprep.subr.bf16.mxu0 0
        %4776 = vmatpush1.bf16.msra.mxu0 0
        %4777 = vmatprep.subr.bf16.mxu0 0
        %4778 = vmatpush1.bf16.msra.mxu0 0
        %4779 = vmatprep.subr.bf16.mxu0 0
        %4780 = vmatpush1.bf16.msra.mxu0 0
        %4781 = vmatprep.subr.bf16.mxu0 0
        %4782 = vmatpush1.bf16.msra.mxu0 0
        %4783 = vmatprep.mubr.bf16.mxu0 0
        %4784 = vmatmul.mubr.bf16.gmra.mrb[0].mxu0 %v4749
        %v4785 = vpop.f32.mrb[0].mxu0
        %v4786 = vadd.f32 %v4122, %v4785
        %v4787 = vpop.f32.mrb[0].mxu0
        %v4788 = vadd.f32 %v4126, %v4787
        %v4789 = vpop.f32.mrb[0].mxu0
        %v4790 = vpop.f32.mrb[0].mxu0
        %4791 = vdwg.mxu0
        %v4792 = vpack.c.bf16 %v4666, %v4666
        %4794 = vrot.lane.b32.xlu0 %v4792, 64
        %v4795 = vpop.permute.xlu0 %4794
        %v4797 = vsel %vm4129, %v4795, 0
        %4799 = vmatprep.subr.bf16.mxu0 %v4389
        %4800 = vmatpush1.bf16.msra.mxu0 %v4388
        %4801 = vmatprep.subr.bf16.mxu0 %v4391
        %4802 = vmatpush1.bf16.msra.mxu0 %v4390
        %4803 = vmatprep.subr.bf16.mxu0 %v4393
        %4804 = vmatpush1.bf16.msra.mxu0 %v4392
        %4805 = vmatprep.subr.bf16.mxu0 %v4395
        %4806 = vmatpush1.bf16.msra.mxu0 %v4394
        %4807 = vmatprep.subr.bf16.mxu0 0
        %4808 = vmatpush1.bf16.msra.mxu0 0
        %4809 = vmatprep.subr.bf16.mxu0 0
        %4810 = vmatpush1.bf16.msra.mxu0 0
        %4811 = vmatprep.subr.bf16.mxu0 0
        %4812 = vmatpush1.bf16.msra.mxu0 0
        %4813 = vmatprep.subr.bf16.mxu0 0
        %4814 = vmatpush1.bf16.msra.mxu0 0
        %4815 = vmatprep.subr.bf16.mxu0 0
        %4816 = vmatpush1.bf16.msra.mxu0 0
        %4817 = vmatprep.subr.bf16.mxu0 0
        %4818 = vmatpush1.bf16.msra.mxu0 0
        %4819 = vmatprep.subr.bf16.mxu0 0
        %4820 = vmatpush1.bf16.msra.mxu0 0
        %4821 = vmatprep.subr.bf16.mxu0 0
        %4822 = vmatpush1.bf16.msra.mxu0 0
        %4823 = vmatprep.subr.bf16.mxu0 0
        %4824 = vmatpush1.bf16.msra.mxu0 0
        %4825 = vmatprep.subr.bf16.mxu0 0
        %4826 = vmatpush1.bf16.msra.mxu0 0
        %4827 = vmatprep.subr.bf16.mxu0 0
        %4828 = vmatpush1.bf16.msra.mxu0 0
        %4829 = vmatprep.subr.bf16.mxu0 0
        %4830 = vmatpush1.bf16.msra.mxu0 0
        %4831 = vmatprep.mubr.bf16.mxu0 0
        %4832 = vmatmul.mubr.bf16.gmra.mrb[0].mxu0 %v4797
        %v4833 = vpop.f32.mrb[0].mxu0
        %v4834 = vadd.f32 0.0, %v4833
        %v4835 = vpop.f32.mrb[0].mxu0
        %v4836 = vadd.f32 0.0, %v4835
        %v4837 = vpop.f32.mrb[0].mxu0
        %v4838 = vpop.f32.mrb[0].mxu0
        %4839 = vdwg.mxu0
        %v4840 = vadd.f32 %v4786, %v4834
        %v4841 = vadd.f32 %v4788, %v4836
        %v4842 = vxor.u32 %v4840, 2147483648
        %v4843 = vmul.f32 %v4842, 1.442695
        %v4844 = vpow.pop %v4843
        %v4845 = vadd.f32 %v4844, 1.0
        %v4846 = vrcp.pop %v4845
        %v4847 = vmul.f32 1.0, %v4846
        %v4848 = vtanh.pop %v4841
        %v4849 = vxor.u32 %v4841, 2147483648
        %v4850 = vmul.f32 %v4849, 1.442695
        %v4851 = vpow.pop %v4850
        %v4852 = vadd.f32 %v4851, 1.0
        %v4853 = vrcp.pop %v4852
        %v4854 = vmul.f32 1.0, %v4853
        %v4855 = vmul.f32 %v4847, %v4664
        %v4856 = vmul.f32 %v4847, %v4848
        %4858 = vrot.lane.b32.xlu0 %v4856, 64
        %v4859 = vpop.permute.xlu0 %4858
        %v4861 = vadd.f32 %v4855, %v4859
        %v4862 = vtanh.pop %v4861
        %v4863 = vmul.f32 %v4854, %v4862
        %v4864 = vld [vmem:[%s380] sm:$0x1]
        %v4865 = vld [vmem:[#allocation11] sm:$0xf]
        %v4866 = vld [vmem:[#allocation11 + $0x4] sm:$0xf]
        %v4867 = vld [vmem:[#allocation11 + $0x8] sm:$0x3]
        %v4868 = vpack.c.bf16 %v4864, %v4864
        %v4869 = vld [vmem:[#allocation14] sm:$0x1]
        %v4873 = vunpack.c.l.b16 %v4865
        %v4874 = vunpack.c.l.b16 %v4866
        %v4875 = vunpack.c.l.b16 %v4867
        %v4876 = vpack.c.b16 %v4874, %v4873
        %v4877 = vpack.c.b16 %v4875, %v4875
        %vm4879 = vcmask 162816
        %v4881 = vsel %vm4879, %v4868, 0
        %vm4883 = vcmask 1041408
        %v4885 = vsel %vm4883, %v4877, 0
        %4887 = vmatprep.subr.bf16.mxu0 0
        %4888 = vmatpush1.bf16.msra.mxu0 %v4876
        %4889 = vmatprep.subr.bf16.mxu0 0
        %4890 = vmatpush1.bf16.msra.mxu0 %v4885
        %4891 = vmatprep.subr.bf16.mxu0 0
        %4892 = vmatpush1.bf16.msra.mxu0 0
        %4893 = vmatprep.subr.bf16.mxu0 0
        %4894 = vmatpush1.bf16.msra.mxu0 0
        %4895 = vmatprep.subr.bf16.mxu0 0
        %4896 = vmatpush1.bf16.msra.mxu0 0
        %4897 = vmatprep.subr.bf16.mxu0 0
        %4898 = vmatpush1.bf16.msra.mxu0 0
        %4899 = vmatprep.subr.bf16.mxu0 0
        %4900 = vmatpush1.bf16.msra.mxu0 0
        %4901 = vmatprep.subr.bf16.mxu0 0
        %4902 = vmatpush1.bf16.msra.mxu0 0
        %4903 = vmatprep.subr.bf16.mxu0 0
        %4904 = vmatpush1.bf16.msra.mxu0 0
        %4905 = vmatprep.subr.bf16.mxu0 0
        %4906 = vmatpush1.bf16.msra.mxu0 0
        %4907 = vmatprep.subr.bf16.mxu0 0
        %4908 = vmatpush1.bf16.msra.mxu0 0
        %4909 = vmatprep.subr.bf16.mxu0 0
        %4910 = vmatpush1.bf16.msra.mxu0 0
        %4911 = vmatprep.subr.bf16.mxu0 0
        %4912 = vmatpush1.bf16.msra.mxu0 0
        %4913 = vmatprep.subr.bf16.mxu0 0
        %4914 = vmatpush1.bf16.msra.mxu0 0
        %4915 = vmatprep.subr.bf16.mxu0 0
        %4916 = vmatpush1.bf16.msra.mxu0 0
        %4917 = vmatprep.subr.bf16.mxu0 0
        %4918 = vmatpush1.bf16.msra.mxu0 0
        %4919 = vmatprep.mubr.bf16.mxu0 0
        %4920 = vmatmul.mubr.bf16.gmra.mrb[0].mxu0 %v4881
        %v4921 = vpop.f32.mrb[0].mxu0
        %v4922 = vadd.f32 %v4869, %v4921
        %v4923 = vpop.f32.mrb[0].mxu0
        %v4924 = vpop.f32.mrb[0].mxu0
        %v4925 = vpop.f32.mrb[0].mxu0
        %4926 = vdwg.mxu0
        %v4927 = vmax.f32 %v4922, 0.0
        %v4928 = vld [vmem:[#allocation11 + $0x10] sm:$0xf]
        %v4929 = vld [vmem:[#allocation11 + $0x14] sm:$0xf]
        %v4930 = vld [vmem:[#allocation11 + $0x18] sm:$0xf]
        %v4931 = vld [vmem:[#allocation11 + $0x1c] sm:$0xf]
        %v4932 = vld [vmem:[#allocation11 + $0x20] sm:$0xf]
        %v4933 = vld [vmem:[#allocation11 + $0x24] sm:$0xf]
        %v4934 = vld [vmem:[#allocation11 + $0x28] sm:$0xf]
        %v4935 = vld [vmem:[#allocation11 + $0x2c] sm:$0xf]
        %v4936 = vpack.c.bf16 %v4863, %v4863
        %v4937 = vld [vmem:[#allocation11 + $0x30] sm:$0xf]
        %v4938 = vld [vmem:[#allocation11 + $0x34] sm:$0xf]
        %v4939 = vld [vmem:[#allocation11 + $0x38] sm:$0xf]
        %v4940 = vld [vmem:[#allocation11 + $0x3c] sm:$0xf]
        %v4941 = vpack.c.bf16 %v4927, %v4927
        %v4946 = vunpack.c.l.b16 %v4937
        %v4947 = vunpack.c.l.b16 %v4938
        %v4948 = vunpack.c.l.b16 %v4939
        %v4949 = vunpack.c.l.b16 %v4940
        %v4950 = vpack.c.b16 %v4947, %v4946
        %v4951 = vpack.c.b16 %v4949, %v4948
        %vm4954 = vcmask 261120
        %v4956 = vsel %vm4954, %v4941, 0
        %4958 = vmatprep.subr.bf16.mxu0 0
        %4959 = vmatpush1.bf16.msra.mxu0 %v4950
        %4960 = vmatprep.subr.bf16.mxu0 0
        %4961 = vmatpush1.bf16.msra.mxu0 %v4951
        %4962 = vmatprep.subr.bf16.mxu0 0
        %4963 = vmatpush1.bf16.msra.mxu0 0
        %4964 = vmatprep.subr.bf16.mxu0 0
        %4965 = vmatpush1.bf16.msra.mxu0 0
        %4966 = vmatprep.subr.bf16.mxu0 0
        %4967 = vmatpush1.bf16.msra.mxu0 0
        %4968 = vmatprep.subr.bf16.mxu0 0
        %4969 = vmatpush1.bf16.msra.mxu0 0
        %4970 = vmatprep.subr.bf16.mxu0 0
        %4971 = vmatpush1.bf16.msra.mxu0 0
        %4972 = vmatprep.subr.bf16.mxu0 0
        %4973 = vmatpush1.bf16.msra.mxu0 0
        %4974 = vmatprep.subr.bf16.mxu0 0
        %4975 = vmatpush1.bf16.msra.mxu0 0
        %4976 = vmatprep.subr.bf16.mxu0 0
        %4977 = vmatpush1.bf16.msra.mxu0 0
        %4978 = vmatprep.subr.bf16.mxu0 0
        %4979 = vmatpush1.bf16.msra.mxu0 0
        %4980 = vmatprep.subr.bf16.mxu0 0
        %4981 = vmatpush1.bf16.msra.mxu0 0
        %4982 = vmatprep.subr.bf16.mxu0 0
        %4983 = vmatpush1.bf16.msra.mxu0 0
        %4984 = vmatprep.subr.bf16.mxu0 0
        %4985 = vmatpush1.bf16.msra.mxu0 0
        %4986 = vmatprep.subr.bf16.mxu0 0
        %4987 = vmatpush1.bf16.msra.mxu0 0
        %4988 = vmatprep.subr.bf16.mxu0 0
        %4989 = vmatpush1.bf16.msra.mxu0 0
        %4990 = vmatprep.mubr.bf16.mxu0 0
        %4991 = vmatmul.mubr.bf16.gmra.mrb[0].mxu0 %v4956
        %v4992 = vpop.f32.mrb[0].mxu0
        %v4993 = vadd.f32 0.0, %v4992
        %v4994 = vpop.f32.mrb[0].mxu0
        %v4995 = vpop.f32.mrb[0].mxu0
        %v4996 = vpop.f32.mrb[0].mxu0
        %4997 = vdwg.mxu0
        %4999 = vrot.lane.b32.xlu0 %v4936, 64
        %v5000 = vpop.permute.xlu0 %4999
        %v5009 = vunpack.c.l.b16 %v4928
        %v5010 = vunpack.c.l.b16 %v4929
        %v5011 = vunpack.c.l.b16 %v4930
        %v5012 = vunpack.c.l.b16 %v4931
        %v5013 = vunpack.c.l.b16 %v4932
        %v5014 = vunpack.c.l.b16 %v4933
        %v5015 = vunpack.c.l.b16 %v4934
        %v5016 = vunpack.c.l.b16 %v4935
        %v5017 = vpack.c.b16 %v5010, %v5009
        %v5018 = vpack.c.b16 %v5012, %v5011
        %v5019 = vpack.c.b16 %v5014, %v5013
        %v5020 = vpack.c.b16 %v5016, %v5015
        %v5026 = vsel %vm4129, %v5000, 0
        %5028 = vmatprep.subr.bf16.mxu0 0
        %5029 = vmatpush1.bf16.msra.mxu0 %v5017
        %5030 = vmatprep.subr.bf16.mxu0 0
        %5031 = vmatpush1.bf16.msra.mxu0 %v5018
        %5032 = vmatprep.subr.bf16.mxu0 0
        %5033 = vmatpush1.bf16.msra.mxu0 %v5019
        %5034 = vmatprep.subr.bf16.mxu0 0
        %5035 = vmatpush1.bf16.msra.mxu0 %v5020
        %5036 = vmatprep.subr.bf16.mxu0 0
        %5037 = vmatpush1.bf16.msra.mxu0 0
        %5038 = vmatprep.subr.bf16.mxu0 0
        %5039 = vmatpush1.bf16.msra.mxu0 0
        %5040 = vmatprep.subr.bf16.mxu0 0
        %5041 = vmatpush1.bf16.msra.mxu0 0
        %5042 = vmatprep.subr.bf16.mxu0 0
        %5043 = vmatpush1.bf16.msra.mxu0 0
        %5044 = vmatprep.subr.bf16.mxu0 0
        %5045 = vmatpush1.bf16.msra.mxu0 0
        %5046 = vmatprep.subr.bf16.mxu0 0
        %5047 = vmatpush1.bf16.msra.mxu0 0
        %5048 = vmatprep.subr.bf16.mxu0 0
        %5049 = vmatpush1.bf16.msra.mxu0 0
        %5050 = vmatprep.subr.bf16.mxu0 0
        %5051 = vmatpush1.bf16.msra.mxu0 0
        %5052 = vmatprep.subr.bf16.mxu0 0
        %5053 = vmatpush1.bf16.msra.mxu0 0
        %5054 = vmatprep.subr.bf16.mxu0 0
        %5055 = vmatpush1.bf16.msra.mxu0 0
        %5056 = vmatprep.subr.bf16.mxu0 0
        %5057 = vmatpush1.bf16.msra.mxu0 0
        %5058 = vmatprep.subr.bf16.mxu0 0
        %5059 = vmatpush1.bf16.msra.mxu0 0
        %5060 = vmatprep.mubr.bf16.mxu0 0
        %5061 = vmatmul.mubr.bf16.gmra.mrb[0].mxu0 %v5026
        %v5062 = vpop.f32.mrb[0].mxu0
        %v5063 = vadd.f32 %v4993, %v5062
        %v5064 = vpop.f32.mrb[0].mxu0
        %v5065 = vpop.f32.mrb[0].mxu0
        %v5066 = vpop.f32.mrb[0].mxu0
        %5067 = vdwg.mxu0
        %v5068 = vld [vmem:[#allocation14 + $0x1] sm:$0x1]
        %v5069 = vadd.f32 %v5063, %v5068
        %v5070 = vmax.f32 %v5069, 0.0
        %v5071 = vld [vmem:[#allocation11 + $0x40] sm:$0xf]
        %v5072 = vld [vmem:[#allocation11 + $0x44] sm:$0xf]
        %v5073 = vld [vmem:[#allocation11 + $0x48] sm:$0xf]
        %v5074 = vld [vmem:[#allocation11 + $0x4c] sm:$0xf]
        %v5075 = vpack.c.bf16 %v5070, %v5070
        %v5076 = vld [vmem:[#allocation14 + $0x2] sm:$0x1]
        %v5081 = vunpack.c.l.b16 %v5071
        %v5082 = vunpack.c.l.b16 %v5072
        %v5083 = vunpack.c.l.b16 %v5073
        %v5084 = vunpack.c.l.b16 %v5074
        %v5085 = vpack.c.b16 %v5082, %v5081
        %v5086 = vpack.c.b16 %v5084, %v5083
        %v5090 = vsel %vm4954, %v5075, 0
        %5092 = vmatprep.subr.bf16.mxu0 0
        %5093 = vmatpush1.bf16.msra.mxu0 %v5085
        %5094 = vmatprep.subr.bf16.mxu0 0
        %5095 = vmatpush1.bf16.msra.mxu0 %v5086
        %5096 = vmatprep.subr.bf16.mxu0 0
        %5097 = vmatpush1.bf16.msra.mxu0 0
        %5098 = vmatprep.subr.bf16.mxu0 0
        %5099 = vmatpush1.bf16.msra.mxu0 0
        %5100 = vmatprep.subr.bf16.mxu0 0
        %5101 = vmatpush1.bf16.msra.mxu0 0
        %5102 = vmatprep.subr.bf16.mxu0 0
        %5103 = vmatpush1.bf16.msra.mxu0 0
        %5104 = vmatprep.subr.bf16.mxu0 0
        %5105 = vmatpush1.bf16.msra.mxu0 0
        %5106 = vmatprep.subr.bf16.mxu0 0
        %5107 = vmatpush1.bf16.msra.mxu0 0
        %5108 = vmatprep.subr.bf16.mxu0 0
        %5109 = vmatpush1.bf16.msra.mxu0 0
        %5110 = vmatprep.subr.bf16.mxu0 0
        %5111 = vmatpush1.bf16.msra.mxu0 0
        %5112 = vmatprep.subr.bf16.mxu0 0
        %5113 = vmatpush1.bf16.msra.mxu0 0
        %5114 = vmatprep.subr.bf16.mxu0 0
        %5115 = vmatpush1.bf16.msra.mxu0 0
        %5116 = vmatprep.subr.bf16.mxu0 0
        %5117 = vmatpush1.bf16.msra.mxu0 0
        %5118 = vmatprep.subr.bf16.mxu0 0
        %5119 = vmatpush1.bf16.msra.mxu0 0
        %5120 = vmatprep.subr.bf16.mxu0 0
        %5121 = vmatpush1.bf16.msra.mxu0 0
        %5122 = vmatprep.subr.bf16.mxu0 0
        %5123 = vmatpush1.bf16.msra.mxu0 0
        %5124 = vmatprep.mubr.bf16.mxu0 0
        %5125 = vmatmul.mubr.bf16.gmra.mrb[0].mxu0 %v5090
        %v5126 = vpop.f32.mrb[0].mxu0
        %v5127 = vadd.f32 %v5076, %v5126
        %v5128 = vpop.f32.mrb[0].mxu0
        %v5129 = vpop.f32.mrb[0].mxu0
        %v5130 = vpop.f32.mrb[0].mxu0
        %5131 = vdwg.mxu0
        %vm5132 = vcmask 8192
        %5133 = vst.msk [vmem:[%s439] sm:$0x1] %vm5132, %v5127
        %s5134 = sand.u32 %s217, 1
        %s5135 = scalar_lea.sflag [#allocation4], %s5134
        %s5136 = sand.u32 %s217, 1
        %s5137 = scalar_lea.vmem [#allocation16], %s5136
        // Predicated region
        $region85: #{lie_detection_forward.1} parent=51 // pred_check
          %p5138 = pneg %p227
        $region86: #{lie_detection_forward.1} parent=51 // pred_check_branch
          %5140 = sbr.rel (%p5138) target = $region88
        $region87: #{lie_detection_forward.1} parent=51 // pred_region
          %s5142 = ssub.s32 16, 16
          %5143 = vsyncadd %s5135, %s5142
          %s5144 = smul.addr %s31, 16
          %s5145 = scalar_lea.hbm %s8, %s5144
          %s5147 = sshll.u32 %s5137, 4
          %s5148 = int_to_ptr.vmem [resolvable:$true] %s5147
          %5150 = dma.vmem_to_hbm [thread:$0]  %s5148, 16, %s5145, %s5135
        $region88: #{lie_detection_forward.1} parent=51 // pred_fallthru
          _
      $region52: #{lie_detection_forward.1} parent=5 // pred_fallthru
        _
      %p5151 = scmp.le.s32.totalorder 2, %s26
      // Predicated region
      $region89: #{lie_detection_forward.1} parent=5 // pred_check
        %p5152 = pneg %p5151
      $region90: #{lie_detection_forward.1} parent=5 // pred_check_branch
        %5154 = sbr.rel (%p5152) target = $region92
      $region91: #{lie_detection_forward.1} parent=5 // pred_region
        %s5155 = ssub.s32 %s26, 2
        // Predicated region
        $region93: #{lie_detection_forward.1} parent=91 // pred_check
          %p5156 = pneg %p233
        $region94: #{lie_detection_forward.1} parent=91 // pred_check_branch
          %5158 = sbr.rel (%p5156) target = $region96
        $region95: #{lie_detection_forward.1} parent=91 // pred_region
          %s5159 = sand.u32 %s218, 1
          %s5160 = scalar_lea.sflag [#allocation4], %s5159
          %s5161 = sand.u32 %s218, 1
          %s5162 = scalar_lea.vmem [#allocation16], %s5161
          %5163 = dma.done %s5160, 16
        $region96: #{lie_detection_forward.1} parent=91 // pred_fallthru
          _
      $region92: #{lie_detection_forward.1} parent=5 // pred_fallthru
        _
    $region6: #{lie_detection_forward.1} parent=1 // loop_footer
      %s30 = sadd.s32 1, %s26
    $region7: #{lie_detection_forward.1} parent=1 // loop_footer_branch
      %25 = sbr.rel target = $region3
    $region8: #{lie_detection_forward.1} parent=1 // loop_exit
      _
    %5164 = vsyncpa [#allocation3], 1
    %s5165 = scalar_lea.sflag [#allocation3], 1
    %5166 = vsyncpa %s5165, 1
    %5167 = vsyncpa [#allocation6], 1
    %s5168 = scalar_lea.sflag [#allocation6], 1
    %5169 = vsyncpa %s5168, 1
    %5170 = vsyncpa [#allocation9], 1
    %5171 = vsyncpa [#allocation12], 1
    %5172 = vsyncpa [#allocation15], 1
    %5173 = vsyncpa [#allocation4], 1
    %s5174 = scalar_lea.sflag [#allocation4], 1
    %5175 = vsyncpa %s5174, 1

</llo_original>
